<compile_context>
chip_gen: v7x
topology: tpu7x:2x2x1
jax: 0.10.0
libtpu: 0.0.40
codegen_flags: <defaults>
</compile_context>

<pallas_src>
import functools

import jax
import jax.numpy as jnp
from jax.experimental import pallas as pl
from jax.experimental.pallas import tpu as pltpu  # noqa: F401  (TPU backend)


_APAD = 8  # lane-aligned column offset of the "a2" half inside packed attention vecs


def _elu(v):
    # F.elu.  exp() input is clamped at 0 so the (discarded) negative branch
    # never overflows; matches expm1 semantics to ~1e-7 absolute (inference OK).
    return jnp.where(v > 0, v, jnp.exp(jnp.minimum(v, 0.0)) - 1.0)


# ---------------------------------------------------------------------------
# Fused Pallas kernel: the whole forward pass in one gridless pallas_call
# ---------------------------------------------------------------------------

def gat_forward(slab, x, adj, *, layout, alpha, cnv_dim, n_graph, feat_dim,
                nheads, nhids):
    """Single fused pallas_call for the whole GAT forward (eval mode)."""
    bs = x.shape[0]
    n_stack = bs * n_graph
    d1 = nheads[0] * nhids[0]
    d2 = nheads[1] * nhids[1]

    def kernel(x_ref, adj_ref, slab_ref, out_ref):
        def get(name):
            r0, nr, nc = layout[name]          # static Python ints
            return slab_ref[r0:r0 + nr, 0:nc]

        neg = jnp.float32(-9.0e15)

        # Block-diagonal (bs*N, bs*N) adjacency mask built ONCE: cross-batch
        # blocks are zero so the stacked softmax never mixes samples.
        adj_v = adj_ref[...]
        zero_blk = jnp.zeros((n_graph, n_graph), jnp.float32)
        adj_block = jnp.concatenate(
            [jnp.concatenate([adj_v if bj == bi else zero_blk
                              for bj in range(bs)], axis=1)
             for bi in range(bs)], axis=0)                          # (Ns, Ns)
        adj_mask = adj_block > 0

        # Feature means (cnv branch + x0) — batched, lane-dense rows.
        cnv = jnp.mean(x_ref[:, 0:cnv_dim, :], axis=-1)             # (bs, 80)
        xg3 = x_ref[:, cnv_dim:cnv_dim + n_graph, :]                # (bs, N, Fin)
        x0 = jnp.mean(xg3, axis=-1)                                 # (bs, N)
        xg = xg3.reshape(n_stack, feat_dim)                         # (Ns, Fin)
        # dropout_layer -> identity (eval)

        def gat_layer(xin, wname, aname, mname, nheads_l):
            w_all = get(wname)                                      # (din, d)
            ae = get(aname)                                         # (d, 16)
            mask = get(mname)                                       # (H, d)
            # One lane-dense projection for ALL heads at once.
            h_all = jnp.dot(xin, w_all, preferred_element_type=jnp.float32)
            # Attention coefficients for all heads in one MXU push: columns
            # [0,H) hold f1 per head, columns [8,8+H) hold f2 per head.
            f = jnp.dot(h_all, ae, preferred_element_type=jnp.float32)  # (Ns,16)
            f2t = jnp.swapaxes(f[:, _APAD:2 * _APAD], 0, 1)             # (8, Ns)
            acc = jnp.zeros_like(h_all)
            for h in range(nheads_l):                               # tiny static loop
                e = f[:, h:h + 1] + f2t[h:h + 1, :]                 # (Ns, Ns)
                e = jnp.where(e > 0, e, alpha * e)                  # LeakyReLU
                s = jnp.where(adj_mask, e, neg)                     # masked logits
                mx = jnp.max(s, axis=-1, keepdims=True)
                p = jnp.exp(s - mx)
                attn = p / jnp.sum(p, axis=-1, keepdims=True)       # exact softmax
                # (attention dropout is identity in eval mode)
                hp = jnp.dot(attn, h_all, preferred_element_type=jnp.float32)
                acc = acc + mask[h:h + 1, :] * hp   # head h's columns only
            # ELU hoisted out of the head loop (masks partition the width).
            return _elu(acc)                        # == torch.cat(elu heads, -1)

        scal = get("scalars")                                       # (1,2)=[p1b,p2b]

        h1 = gat_layer(xg, "W1_all", "aeT1", "mask1", nheads[0])    # (Ns, d1)
        x1 = (jnp.sum(h1.reshape(bs, n_graph, d1) * get("p1w"), axis=-1)
              + scal[0:1, 0:1])                                     # (bs, N)
        h2 = gat_layer(h1, "W2_all", "aeT2", "mask2", nheads[1])    # (Ns, d2)
        x2 = (jnp.sum(h2.reshape(bs, n_graph, d2) * get("p2w"), axis=-1)
              + scal[0:1, 1:2])                                     # (bs, N)

        # Encoder fc1: the [cnv | x0 | x1 | x2] concat is folded into
        # pre-split weights; all FC layers run lane-dense in row orientation
        # so both batch rows share every MXU push.
        z = (jnp.dot(cnv, get("fc1_cnv"), preferred_element_type=jnp.float32)
             + jnp.dot(x0, get("fc1_x0"), preferred_element_type=jnp.float32)
             + jnp.dot(x1, get("fc1_x1"), preferred_element_type=jnp.float32)
             + jnp.dot(x2, get("fc1_x2"), preferred_element_type=jnp.float32)
             + get("fc1_b"))
        y = _elu(z)                                                 # (bs, 64)
        y = _elu(jnp.dot(y, get("fc2_w"),
                         preferred_element_type=jnp.float32) + get("fc2_b"))
        y = _elu(jnp.dot(y, get("fc3_w"),
                         preferred_element_type=jnp.float32) + get("fc3_b"))
        y = _elu(jnp.dot(y, get("fc4_w"),
                         preferred_element_type=jnp.float32) + get("fc4_b"))
        o = jnp.dot(y, get("cls_w"),
                    preferred_element_type=jnp.float32) + get("cls_b")  # (bs,1)
        # classifier + Sigmoid act * output_range + output_shift
        out_ref[...] = (jax.nn.sigmoid(o) * 6.0 - 3.0).astype(out_ref.dtype)

    return pl.pallas_call(
        kernel,
        out_shape=jax.ShapeDtypeStruct((bs, 1), jnp.float32),
    )(x, adj, slab)


# ---------------------------------------------------------------------------
# Parameter construction (deterministic, synthetic) + single-slab packing
# ---------------------------------------------------------------------------

def _xavier_uniform(key, shape, fan_in, fan_out, gain=1.414):
    bound = gain * (6.0 / (fan_in + fan_out)) ** 0.5
    return jax.random.uniform(key, shape, jnp.float32, -bound, bound)


def _linear_init(key, fan_in, fan_out):
    kw, kb = jax.random.split(key)
    bound = 1.0 / (fan_in ** 0.5)
    w = jax.random.uniform(kw, (fan_in, fan_out), jnp.float32, -bound, bound)
    b = jax.random.uniform(kb, (1, fan_out), jnp.float32, -bound, bound)
    return w, b


def init_gat_params(key, input_dim, nhids, nheads, fc_dim, omic_dim, label_dim,
                    lin_input_dim):
    keys = jax.random.split(key, 16)
    p = {}
    p["W1"] = _xavier_uniform(keys[0], (nheads[0], input_dim, nhids[0]),
                              input_dim, nhids[0])
    p["a1"] = _xavier_uniform(keys[1], (nheads[0], 2, nhids[0]), 2 * nhids[0], 1)
    in2 = nhids[0] * nheads[0]
    p["W2"] = _xavier_uniform(keys[2], (nheads[1], in2, nhids[1]), in2, nhids[1])
    p["a2"] = _xavier_uniform(keys[3], (nheads[1], 2, nhids[1]), 2 * nhids[1], 1)
    p["pool1_w"], p["pool1_b"] = _linear_init(keys[4], in2, 1)
    p["pool2_w"], p["pool2_b"] = _linear_init(keys[5], nhids[1] * nheads[1], 1)
    dims = [lin_input_dim] + fc_dim + [omic_dim]
    for i in range(4):
        p[f"fc{i+1}_w"], p[f"fc{i+1}_b"] = _linear_init(keys[6 + i],
                                                        dims[i], dims[i + 1])
    p["cls_w"], p["cls_b"] = _linear_init(keys[10], omic_dim, label_dim)
    return p


def build_param_slab(p, *, cnv_dim, n_graph, feat_dim, nhids, nheads):
    """Pack ALL parameters into one (R,128) f32 slab (one HBM->VMEM DMA)."""
    H1, H2 = nheads[0], nheads[1]
    Fh1, Fh2 = nhids[0], nhids[1]
    d1, d2 = H1 * Fh1, H2 * Fh2
    LANES = 128

    entries = []
    def add(name, arr):
        arr = jnp.asarray(arr, jnp.float32)
        assert arr.ndim == 2 and arr.shape[1] <= LANES, (name, arr.shape)
        entries.append((name, arr))

    # GAT layer 1: head projections stacked along output columns; attention
    # vectors packed as (d,16): a1 half in cols [0,H), a2 half in cols [8,8+H).
    add("W1_all", jnp.transpose(p["W1"], (1, 0, 2)).reshape(feat_dim, d1))
    aeT1 = jnp.zeros((d1, 2 * _APAD), jnp.float32)
    m1 = jnp.zeros((H1, d1), jnp.float32)
    for h in range(H1):
        aeT1 = aeT1.at[h * Fh1:(h + 1) * Fh1, h].set(p["a1"][h, 0])
        aeT1 = aeT1.at[h * Fh1:(h + 1) * Fh1, _APAD + h].set(p["a1"][h, 1])
        m1 = m1.at[h, h * Fh1:(h + 1) * Fh1].set(1.0)
    add("aeT1", aeT1); add("mask1", m1)
    add("p1w", p["pool1_w"].reshape(1, d1))

    # GAT layer 2
    add("W2_all", jnp.transpose(p["W2"], (1, 0, 2)).reshape(d1, d2))
    aeT2 = jnp.zeros((d2, 2 * _APAD), jnp.float32)
    m2 = jnp.zeros((H2, d2), jnp.float32)
    for h in range(H2):
        aeT2 = aeT2.at[h * Fh2:(h + 1) * Fh2, h].set(p["a2"][h, 0])
        aeT2 = aeT2.at[h * Fh2:(h + 1) * Fh2, _APAD + h].set(p["a2"][h, 1])
        m2 = m2.at[h, h * Fh2:(h + 1) * Fh2].set(1.0)
    add("aeT2", aeT2); add("mask2", m2)
    add("p2w", p["pool2_w"].reshape(1, d2))

    # Encoder / classifier: natural (in,out) orientation; fc1 pre-split by
    # feature source so the [cnv|x0|x1|x2] concat disappears.
    w1 = p["fc1_w"]
    add("fc1_cnv", w1[0:cnv_dim, :])
    add("fc1_x0", w1[cnv_dim:cnv_dim + n_graph, :])
    add("fc1_x1", w1[cnv_dim + n_graph:cnv_dim + 2 * n_graph, :])
    add("fc1_x2", w1[cnv_dim + 2 * n_graph:cnv_dim + 3 * n_graph, :])
    add("fc1_b", p["fc1_b"])
    for i in (2, 3, 4):
        add(f"fc{i}_w", p[f"fc{i}_w"]); add(f"fc{i}_b", p[f"fc{i}_b"])
    add("cls_w", p["cls_w"]); add("cls_b", p["cls_b"])
    add("scalars", jnp.concatenate([p["pool1_b"], p["pool2_b"]], axis=1))  # (1,2)

    layout = {}
    blocks = []
    r = 0
    for name, arr in entries:
        nr, nc = arr.shape
        nr_pad = -(-nr // 8) * 8                 # sublane-aligned row blocks
        layout[name] = (r, nr, nc)
        blk = jnp.zeros((nr_pad, LANES), jnp.float32).at[0:nr, 0:nc].set(arr)
        blocks.append(blk)
        r += nr_pad
    slab = jnp.concatenate(blocks, axis=0)       # (512, 128) ~ 256 KiB
    return slab, layout


# ---------------------------------------------------------------------------
# Main
# ---------------------------------------------------------------------------

if __name__ == "__main__":
    key = jax.random.PRNGKey(0)
    k_x, k_adj, k_par = jax.random.split(key, 3)

    BATCH = 2
    CNV_DIM = 80
    N_GRAPH = 16
    FEAT_DIM = 32
    NHIDS = [8, 16, 12]
    NHEADS = [4, 3, 4]
    FC_DIM = [64, 48, 32]
    OMIC_DIM = 16
    LABEL_DIM = 1
    LIN_INPUT_DIM = CNV_DIM + 3 * N_GRAPH   # 128 (emulates the 800/720 branch)

    x = jax.random.normal(k_x, (BATCH, CNV_DIM + N_GRAPH, FEAT_DIM),
                          dtype=jnp.float32)
    adj = (jax.random.uniform(k_adj, (N_GRAPH, N_GRAPH)) > 0.5).astype(jnp.float32)
    adj = jnp.maximum(adj, jnp.eye(N_GRAPH, dtype=jnp.float32))  # self loops

    params = init_gat_params(k_par, FEAT_DIM, NHIDS, NHEADS, FC_DIM,
                             OMIC_DIM, LABEL_DIM, LIN_INPUT_DIM)
    slab, layout = build_param_slab(params, cnv_dim=CNV_DIM, n_graph=N_GRAPH,
                                    feat_dim=FEAT_DIM, nhids=NHIDS,
                                    nheads=NHEADS)

    fwd = jax.jit(functools.partial(
        gat_forward, layout=layout, alpha=0.2, cnv_dim=CNV_DIM,
        n_graph=N_GRAPH, feat_dim=FEAT_DIM,
        nheads=tuple(NHEADS), nhids=tuple(NHIDS)))
    out = fwd(slab, x, adj)
    jax.block_until_ready(out)
    assert out.shape == (BATCH, LABEL_DIM)
    assert bool(jnp.all(jnp.isfinite(out)))
    # sigmoid * 6 - 3  =>  output must lie in (-3, 3)
    assert bool(jnp.all(jnp.abs(out) <= 3.0))
    print("KERNEL_OK")
</pallas_src>

<mosaic_0001>
module attributes {stable_mosaic.version = 11 : i64} {
  func.func @kernel(%arg0: memref<2x96x32xf32, #tpu.memory_space<vmem>>, %arg1: memref<16x16xf32, #tpu.memory_space<vmem>>, %arg2: memref<512x128xf32, #tpu.memory_space<vmem>>, %arg3: memref<2x1xf32, #tpu.memory_space<vmem>>) attributes {dimension_semantics = [], scalar_prefetch = 0 : i64, scratch_operands = 0 : i64, tpu.core_type = #tpu.core_type<tc>} {
    %c0 = arith.constant 0 : index
    %c0_0 = arith.constant 0 : index
    %0 = vector.load %arg1[%c0, %c0_0] : memref<16x16xf32, #tpu.memory_space<vmem>>, vector<16x16xf32>
    %cst = arith.constant 0.000000e+00 : f32
    %1 = vector.broadcast %cst : f32 to vector<16x16xf32>
    %2 = tpu.concatenate %0, %1 in 1 : vector<16x16xf32>, vector<16x16xf32> -> vector<16x32xf32>
    %3 = tpu.concatenate %1, %0 in 1 : vector<16x16xf32>, vector<16x16xf32> -> vector<16x32xf32>
    %4 = tpu.concatenate %2, %3 in 0 : vector<16x32xf32>, vector<16x32xf32> -> vector<32x32xf32>
    %cst_1 = arith.constant 0.000000e+00 : f32
    %5 = vector.broadcast %cst_1 : f32 to vector<32x32xf32>
    %6 = arith.cmpf ogt, %4, %5 : vector<32x32xf32>
    %c0_2 = arith.constant 0 : index
    %c0_3 = arith.constant 0 : index
    %c0_4 = arith.constant 0 : index
    %7 = vector.load %arg0[%c0_2, %c0_3, %c0_4] : memref<2x96x32xf32, #tpu.memory_space<vmem>>, vector<2x80x32xf32>
    %cst_5 = arith.constant dense<0.000000e+00> : vector<2x80xf32>
    %8 = vector.multi_reduction <add>, %7, %cst_5 [2] : vector<2x80x32xf32> to vector<2x80xf32>
    %cst_6 = arith.constant 3.200000e+01 : f32
    %9 = vector.broadcast %cst_6 : f32 to vector<2x80xf32>
    %10 = arith.divf %8, %9 : vector<2x80xf32>
    %c0_7 = arith.constant 0 : index
    %c80 = arith.constant 80 : index
    %c0_8 = arith.constant 0 : index
    %11 = vector.load %arg0[%c0_7, %c80, %c0_8] : memref<2x96x32xf32, #tpu.memory_space<vmem>>, vector<2x16x32xf32>
    %cst_9 = arith.constant dense<0.000000e+00> : vector<2x16xf32>
    %12 = vector.multi_reduction <add>, %11, %cst_9 [2] : vector<2x16x32xf32> to vector<2x16xf32>
    %cst_10 = arith.constant 3.200000e+01 : f32
    %13 = vector.broadcast %cst_10 : f32 to vector<2x16xf32>
    %14 = arith.divf %12, %13 : vector<2x16xf32>
    %15 = vector.shape_cast %11 : vector<2x16x32xf32> to vector<32x32xf32>
    %c504 = arith.constant 504 : index
    %c0_11 = arith.constant 0 : index
    %16 = vector.load %arg2[%c504, %c0_11] : memref<512x128xf32, #tpu.memory_space<vmem>>, vector<1x2xf32>
    %c0_12 = arith.constant 0 : index
    %c0_13 = arith.constant 0 : index
    %17 = vector.load %arg2[%c0_12, %c0_13] : memref<512x128xf32, #tpu.memory_space<vmem>>, vector<32x32xf32>
    %c32 = arith.constant 32 : index
    %c0_14 = arith.constant 0 : index
    %18 = vector.load %arg2[%c32, %c0_14] : memref<512x128xf32, #tpu.memory_space<vmem>>, vector<32x16xf32>
    %c64 = arith.constant 64 : index
    %c0_15 = arith.constant 0 : index
    %19 = vector.load %arg2[%c64, %c0_15] : memref<512x128xf32, #tpu.memory_space<vmem>>, vector<4x32xf32>
    %cst_16 = arith.constant dense<0.000000e+00> : vector<32x32xf32>
    %20 = tpu.matmul %15, %17, %cst_16 {dimension_numbers = #tpu.dot_dimension_numbers<[1], [0], [0], [1], [0, 0, 1, 1], [], []>} : vector<32x32xf32>, vector<32x32xf32>, vector<32x32xf32> -> vector<32x32xf32>
    %cst_17 = arith.constant dense<0.000000e+00> : vector<32x16xf32>
    %21 = tpu.matmul %20, %18, %cst_17 {dimension_numbers = #tpu.dot_dimension_numbers<[1], [0], [0], [1], [0, 0, 1, 1], [], []>} : vector<32x32xf32>, vector<32x16xf32>, vector<32x16xf32> -> vector<32x16xf32>
    %22 = vector.extract_strided_slice %21 {offsets = [0, 8], sizes = [32, 8], strides = [1, 1]} : vector<32x16xf32> to vector<32x8xf32>
    %23 = tpu.transpose %22, [1, 0] : vector<32x8xf32> -> vector<8x32xf32>
    %cst_18 = arith.constant 0.000000e+00 : f32
    %24 = vector.broadcast %cst_18 : f32 to vector<32x32xf32>
    %25 = vector.extract_strided_slice %21 {offsets = [0, 0], sizes = [32, 1], strides = [1, 1]} : vector<32x16xf32> to vector<32x1xf32>
    %26 = vector.extract_strided_slice %23 {offsets = [0, 0], sizes = [1, 32], strides = [1, 1]} : vector<8x32xf32> to vector<1x32xf32>
    %27 = vector.broadcast %25 : vector<32x1xf32> to vector<32x32xf32>
    %28 = vector.broadcast %26 : vector<1x32xf32> to vector<32x32xf32>
    %29 = arith.addf %27, %28 : vector<32x32xf32>
    %cst_19 = arith.constant 0.000000e+00 : f32
    %30 = vector.broadcast %cst_19 : f32 to vector<32x32xf32>
    %31 = arith.cmpf ogt, %29, %30 : vector<32x32xf32>
    %cst_20 = arith.constant 2.000000e-01 : f32
    %32 = vector.broadcast %cst_20 : f32 to vector<32x32xf32>
    %33 = arith.mulf %32, %29 : vector<32x32xf32>
    %34 = arith.select %31, %29, %33 : vector<32x32xi1>, vector<32x32xf32>
    %cst_21 = arith.constant -9.000000e+15 : f32
    %35 = vector.broadcast %cst_21 : f32 to vector<32x32xf32>
    %36 = arith.select %6, %34, %35 : vector<32x32xi1>, vector<32x32xf32>
    %cst_22 = arith.constant dense<0xFF800000> : vector<32xf32>
    %37 = vector.multi_reduction <maximumf>, %36, %cst_22 [1] : vector<32x32xf32> to vector<32xf32>
    %38 = vector.shape_cast %37 : vector<32xf32> to vector<32x1xf32>
    %39 = vector.broadcast %38 : vector<32x1xf32> to vector<32x32xf32>
    %40 = arith.subf %36, %39 : vector<32x32xf32>
    %41 = math.exp %40 : vector<32x32xf32>
    %cst_23 = arith.constant dense<0.000000e+00> : vector<32xf32>
    %42 = vector.multi_reduction <add>, %41, %cst_23 [1] : vector<32x32xf32> to vector<32xf32>
    %43 = vector.shape_cast %42 : vector<32xf32> to vector<32x1xf32>
    %44 = vector.broadcast %43 : vector<32x1xf32> to vector<32x32xf32>
    %45 = arith.divf %41, %44 : vector<32x32xf32>
    %cst_24 = arith.constant dense<0.000000e+00> : vector<32x32xf32>
    %46 = tpu.matmul %45, %20, %cst_24 {dimension_numbers = #tpu.dot_dimension_numbers<[1], [0], [0], [1], [0, 0, 1, 1], [], []>} : vector<32x32xf32>, vector<32x32xf32>, vector<32x32xf32> -> vector<32x32xf32>
    %47 = vector.extract_strided_slice %19 {offsets = [0, 0], sizes = [1, 32], strides = [1, 1]} : vector<4x32xf32> to vector<1x32xf32>
    %48 = vector.broadcast %47 : vector<1x32xf32> to vector<32x32xf32>
    %49 = arith.mulf %48, %46 : vector<32x32xf32>
    %50 = arith.addf %24, %49 : vector<32x32xf32>
    %51 = vector.extract_strided_slice %21 {offsets = [0, 1], sizes = [32, 1], strides = [1, 1]} : vector<32x16xf32> to vector<32x1xf32>
    %52 = vector.extract_strided_slice %23 {offsets = [1, 0], sizes = [1, 32], strides = [1, 1]} : vector<8x32xf32> to vector<1x32xf32>
    %53 = vector.broadcast %51 : vector<32x1xf32> to vector<32x32xf32>
    %54 = vector.broadcast %52 : vector<1x32xf32> to vector<32x32xf32>
    %55 = arith.addf %53, %54 : vector<32x32xf32>
    %cst_25 = arith.constant 0.000000e+00 : f32
    %56 = vector.broadcast %cst_25 : f32 to vector<32x32xf32>
    %57 = arith.cmpf ogt, %55, %56 : vector<32x32xf32>
    %cst_26 = arith.constant 2.000000e-01 : f32
    %58 = vector.broadcast %cst_26 : f32 to vector<32x32xf32>
    %59 = arith.mulf %58, %55 : vector<32x32xf32>
    %60 = arith.select %57, %55, %59 : vector<32x32xi1>, vector<32x32xf32>
    %cst_27 = arith.constant -9.000000e+15 : f32
    %61 = vector.broadcast %cst_27 : f32 to vector<32x32xf32>
    %62 = arith.select %6, %60, %61 : vector<32x32xi1>, vector<32x32xf32>
    %cst_28 = arith.constant dense<0xFF800000> : vector<32xf32>
    %63 = vector.multi_reduction <maximumf>, %62, %cst_28 [1] : vector<32x32xf32> to vector<32xf32>
    %64 = vector.shape_cast %63 : vector<32xf32> to vector<32x1xf32>
    %65 = vector.broadcast %64 : vector<32x1xf32> to vector<32x32xf32>
    %66 = arith.subf %62, %65 : vector<32x32xf32>
    %67 = math.exp %66 : vector<32x32xf32>
    %cst_29 = arith.constant dense<0.000000e+00> : vector<32xf32>
    %68 = vector.multi_reduction <add>, %67, %cst_29 [1] : vector<32x32xf32> to vector<32xf32>
    %69 = vector.shape_cast %68 : vector<32xf32> to vector<32x1xf32>
    %70 = vector.broadcast %69 : vector<32x1xf32> to vector<32x32xf32>
    %71 = arith.divf %67, %70 : vector<32x32xf32>
    %cst_30 = arith.constant dense<0.000000e+00> : vector<32x32xf32>
    %72 = tpu.matmul %71, %20, %cst_30 {dimension_numbers = #tpu.dot_dimension_numbers<[1], [0], [0], [1], [0, 0, 1, 1], [], []>} : vector<32x32xf32>, vector<32x32xf32>, vector<32x32xf32> -> vector<32x32xf32>
    %73 = vector.extract_strided_slice %19 {offsets = [1, 0], sizes = [1, 32], strides = [1, 1]} : vector<4x32xf32> to vector<1x32xf32>
    %74 = vector.broadcast %73 : vector<1x32xf32> to vector<32x32xf32>
    %75 = arith.mulf %74, %72 : vector<32x32xf32>
    %76 = arith.addf %50, %75 : vector<32x32xf32>
    %77 = vector.extract_strided_slice %21 {offsets = [0, 2], sizes = [32, 1], strides = [1, 1]} : vector<32x16xf32> to vector<32x1xf32>
    %78 = vector.extract_strided_slice %23 {offsets = [2, 0], sizes = [1, 32], strides = [1, 1]} : vector<8x32xf32> to vector<1x32xf32>
    %79 = vector.broadcast %77 : vector<32x1xf32> to vector<32x32xf32>
    %80 = vector.broadcast %78 : vector<1x32xf32> to vector<32x32xf32>
    %81 = arith.addf %79, %80 : vector<32x32xf32>
    %cst_31 = arith.constant 0.000000e+00 : f32
    %82 = vector.broadcast %cst_31 : f32 to vector<32x32xf32>
    %83 = arith.cmpf ogt, %81, %82 : vector<32x32xf32>
    %cst_32 = arith.constant 2.000000e-01 : f32
    %84 = vector.broadcast %cst_32 : f32 to vector<32x32xf32>
    %85 = arith.mulf %84, %81 : vector<32x32xf32>
    %86 = arith.select %83, %81, %85 : vector<32x32xi1>, vector<32x32xf32>
    %cst_33 = arith.constant -9.000000e+15 : f32
    %87 = vector.broadcast %cst_33 : f32 to vector<32x32xf32>
    %88 = arith.select %6, %86, %87 : vector<32x32xi1>, vector<32x32xf32>
    %cst_34 = arith.constant dense<0xFF800000> : vector<32xf32>
    %89 = vector.multi_reduction <maximumf>, %88, %cst_34 [1] : vector<32x32xf32> to vector<32xf32>
    %90 = vector.shape_cast %89 : vector<32xf32> to vector<32x1xf32>
    %91 = vector.broadcast %90 : vector<32x1xf32> to vector<32x32xf32>
    %92 = arith.subf %88, %91 : vector<32x32xf32>
    %93 = math.exp %92 : vector<32x32xf32>
    %cst_35 = arith.constant dense<0.000000e+00> : vector<32xf32>
    %94 = vector.multi_reduction <add>, %93, %cst_35 [1] : vector<32x32xf32> to vector<32xf32>
    %95 = vector.shape_cast %94 : vector<32xf32> to vector<32x1xf32>
    %96 = vector.broadcast %95 : vector<32x1xf32> to vector<32x32xf32>
    %97 = arith.divf %93, %96 : vector<32x32xf32>
    %cst_36 = arith.constant dense<0.000000e+00> : vector<32x32xf32>
    %98 = tpu.matmul %97, %20, %cst_36 {dimension_numbers = #tpu.dot_dimension_numbers<[1], [0], [0], [1], [0, 0, 1, 1], [], []>} : vector<32x32xf32>, vector<32x32xf32>, vector<32x32xf32> -> vector<32x32xf32>
    %99 = vector.extract_strided_slice %19 {offsets = [2, 0], sizes = [1, 32], strides = [1, 1]} : vector<4x32xf32> to vector<1x32xf32>
    %100 = vector.broadcast %99 : vector<1x32xf32> to vector<32x32xf32>
    %101 = arith.mulf %100, %98 : vector<32x32xf32>
    %102 = arith.addf %76, %101 : vector<32x32xf32>
    %103 = vector.extract_strided_slice %21 {offsets = [0, 3], sizes = [32, 1], strides = [1, 1]} : vector<32x16xf32> to vector<32x1xf32>
    %104 = vector.extract_strided_slice %23 {offsets = [3, 0], sizes = [1, 32], strides = [1, 1]} : vector<8x32xf32> to vector<1x32xf32>
    %105 = vector.broadcast %103 : vector<32x1xf32> to vector<32x32xf32>
    %106 = vector.broadcast %104 : vector<1x32xf32> to vector<32x32xf32>
    %107 = arith.addf %105, %106 : vector<32x32xf32>
    %cst_37 = arith.constant 0.000000e+00 : f32
    %108 = vector.broadcast %cst_37 : f32 to vector<32x32xf32>
    %109 = arith.cmpf ogt, %107, %108 : vector<32x32xf32>
    %cst_38 = arith.constant 2.000000e-01 : f32
    %110 = vector.broadcast %cst_38 : f32 to vector<32x32xf32>
    %111 = arith.mulf %110, %107 : vector<32x32xf32>
    %112 = arith.select %109, %107, %111 : vector<32x32xi1>, vector<32x32xf32>
    %cst_39 = arith.constant -9.000000e+15 : f32
    %113 = vector.broadcast %cst_39 : f32 to vector<32x32xf32>
    %114 = arith.select %6, %112, %113 : vector<32x32xi1>, vector<32x32xf32>
    %cst_40 = arith.constant dense<0xFF800000> : vector<32xf32>
    %115 = vector.multi_reduction <maximumf>, %114, %cst_40 [1] : vector<32x32xf32> to vector<32xf32>
    %116 = vector.shape_cast %115 : vector<32xf32> to vector<32x1xf32>
    %117 = vector.broadcast %116 : vector<32x1xf32> to vector<32x32xf32>
    %118 = arith.subf %114, %117 : vector<32x32xf32>
    %119 = math.exp %118 : vector<32x32xf32>
    %cst_41 = arith.constant dense<0.000000e+00> : vector<32xf32>
    %120 = vector.multi_reduction <add>, %119, %cst_41 [1] : vector<32x32xf32> to vector<32xf32>
    %121 = vector.shape_cast %120 : vector<32xf32> to vector<32x1xf32>
    %122 = vector.broadcast %121 : vector<32x1xf32> to vector<32x32xf32>
    %123 = arith.divf %119, %122 : vector<32x32xf32>
    %cst_42 = arith.constant dense<0.000000e+00> : vector<32x32xf32>
    %124 = tpu.matmul %123, %20, %cst_42 {dimension_numbers = #tpu.dot_dimension_numbers<[1], [0], [0], [1], [0, 0, 1, 1], [], []>} : vector<32x32xf32>, vector<32x32xf32>, vector<32x32xf32> -> vector<32x32xf32>
    %125 = vector.extract_strided_slice %19 {offsets = [3, 0], sizes = [1, 32], strides = [1, 1]} : vector<4x32xf32> to vector<1x32xf32>
    %126 = vector.broadcast %125 : vector<1x32xf32> to vector<32x32xf32>
    %127 = arith.mulf %126, %124 : vector<32x32xf32>
    %128 = arith.addf %102, %127 : vector<32x32xf32>
    %cst_43 = arith.constant 0.000000e+00 : f32
    %129 = vector.broadcast %cst_43 : f32 to vector<32x32xf32>
    %130 = arith.cmpf ogt, %128, %129 : vector<32x32xf32>
    %cst_44 = arith.constant 0.000000e+00 : f32
    %131 = vector.broadcast %cst_44 : f32 to vector<32x32xf32>
    %132 = arith.minimumf %128, %131 : vector<32x32xf32>
    %133 = math.exp %132 : vector<32x32xf32>
    %cst_45 = arith.constant 1.000000e+00 : f32
    %134 = vector.broadcast %cst_45 : f32 to vector<32x32xf32>
    %135 = arith.subf %133, %134 : vector<32x32xf32>
    %136 = arith.select %130, %128, %135 : vector<32x32xi1>, vector<32x32xf32>
    %137 = vector.shape_cast %136 : vector<32x32xf32> to vector<2x16x32xf32>
    %c72 = arith.constant 72 : index
    %c0_46 = arith.constant 0 : index
    %138 = vector.load %arg2[%c72, %c0_46] : memref<512x128xf32, #tpu.memory_space<vmem>>, vector<1x32xf32>
    %139 = vector.shape_cast %138 : vector<1x32xf32> to vector<1x1x32xf32>
    %140 = vector.broadcast %139 : vector<1x1x32xf32> to vector<2x16x32xf32>
    %141 = arith.mulf %137, %140 : vector<2x16x32xf32>
    %cst_47 = arith.constant dense<0.000000e+00> : vector<2x16xf32>
    %142 = vector.multi_reduction <add>, %141, %cst_47 [2] : vector<2x16x32xf32> to vector<2x16xf32>
    %143 = vector.extract_strided_slice %16 {offsets = [0, 0], sizes = [1, 1], strides = [1, 1]} : vector<1x2xf32> to vector<1x1xf32>
    %144 = vector.broadcast %143 : vector<1x1xf32> to vector<2x16xf32>
    %145 = arith.addf %142, %144 : vector<2x16xf32>
    %c80_48 = arith.constant 80 : index
    %c0_49 = arith.constant 0 : index
    %146 = vector.load %arg2[%c80_48, %c0_49] : memref<512x128xf32, #tpu.memory_space<vmem>>, vector<32x48xf32>
    %c112 = arith.constant 112 : index
    %c0_50 = arith.constant 0 : index
    %147 = vector.load %arg2[%c112, %c0_50] : memref<512x128xf32, #tpu.memory_space<vmem>>, vector<48x16xf32>
    %c160 = arith.constant 160 : index
    %c0_51 = arith.constant 0 : index
    %148 = vector.load %arg2[%c160, %c0_51] : memref<512x128xf32, #tpu.memory_space<vmem>>, vector<3x48xf32>
    %cst_52 = arith.constant dense<0.000000e+00> : vector<32x48xf32>
    %149 = tpu.matmul %136, %146, %cst_52 {dimension_numbers = #tpu.dot_dimension_numbers<[1], [0], [0], [1], [0, 0, 1, 1], [], []>} : vector<32x32xf32>, vector<32x48xf32>, vector<32x48xf32> -> vector<32x48xf32>
    %cst_53 = arith.constant dense<0.000000e+00> : vector<32x16xf32>
    %150 = tpu.matmul %149, %147, %cst_53 {dimension_numbers = #tpu.dot_dimension_numbers<[1], [0], [0], [1], [0, 0, 1, 1], [], []>} : vector<32x48xf32>, vector<48x16xf32>, vector<32x16xf32> -> vector<32x16xf32>
    %151 = vector.extract_strided_slice %150 {offsets = [0, 8], sizes = [32, 8], strides = [1, 1]} : vector<32x16xf32> to vector<32x8xf32>
    %152 = tpu.transpose %151, [1, 0] : vector<32x8xf32> -> vector<8x32xf32>
    %cst_54 = arith.constant 0.000000e+00 : f32
    %153 = vector.broadcast %cst_54 : f32 to vector<32x48xf32>
    %154 = vector.extract_strided_slice %150 {offsets = [0, 0], sizes = [32, 1], strides = [1, 1]} : vector<32x16xf32> to vector<32x1xf32>
    %155 = vector.extract_strided_slice %152 {offsets = [0, 0], sizes = [1, 32], strides = [1, 1]} : vector<8x32xf32> to vector<1x32xf32>
    %156 = vector.broadcast %154 : vector<32x1xf32> to vector<32x32xf32>
    %157 = vector.broadcast %155 : vector<1x32xf32> to vector<32x32xf32>
    %158 = arith.addf %156, %157 : vector<32x32xf32>
    %cst_55 = arith.constant 0.000000e+00 : f32
    %159 = vector.broadcast %cst_55 : f32 to vector<32x32xf32>
    %160 = arith.cmpf ogt, %158, %159 : vector<32x32xf32>
    %cst_56 = arith.constant 2.000000e-01 : f32
    %161 = vector.broadcast %cst_56 : f32 to vector<32x32xf32>
    %162 = arith.mulf %161, %158 : vector<32x32xf32>
    %163 = arith.select %160, %158, %162 : vector<32x32xi1>, vector<32x32xf32>
    %cst_57 = arith.constant -9.000000e+15 : f32
    %164 = vector.broadcast %cst_57 : f32 to vector<32x32xf32>
    %165 = arith.select %6, %163, %164 : vector<32x32xi1>, vector<32x32xf32>
    %cst_58 = arith.constant dense<0xFF800000> : vector<32xf32>
    %166 = vector.multi_reduction <maximumf>, %165, %cst_58 [1] : vector<32x32xf32> to vector<32xf32>
    %167 = vector.shape_cast %166 : vector<32xf32> to vector<32x1xf32>
    %168 = vector.broadcast %167 : vector<32x1xf32> to vector<32x32xf32>
    %169 = arith.subf %165, %168 : vector<32x32xf32>
    %170 = math.exp %169 : vector<32x32xf32>
    %cst_59 = arith.constant dense<0.000000e+00> : vector<32xf32>
    %171 = vector.multi_reduction <add>, %170, %cst_59 [1] : vector<32x32xf32> to vector<32xf32>
    %172 = vector.shape_cast %171 : vector<32xf32> to vector<32x1xf32>
    %173 = vector.broadcast %172 : vector<32x1xf32> to vector<32x32xf32>
    %174 = arith.divf %170, %173 : vector<32x32xf32>
    %cst_60 = arith.constant dense<0.000000e+00> : vector<32x48xf32>
    %175 = tpu.matmul %174, %149, %cst_60 {dimension_numbers = #tpu.dot_dimension_numbers<[1], [0], [0], [1], [0, 0, 1, 1], [], []>} : vector<32x32xf32>, vector<32x48xf32>, vector<32x48xf32> -> vector<32x48xf32>
    %176 = vector.extract_strided_slice %148 {offsets = [0, 0], sizes = [1, 48], strides = [1, 1]} : vector<3x48xf32> to vector<1x48xf32>
    %177 = vector.broadcast %176 : vector<1x48xf32> to vector<32x48xf32>
    %178 = arith.mulf %177, %175 : vector<32x48xf32>
    %179 = arith.addf %153, %178 : vector<32x48xf32>
    %180 = vector.extract_strided_slice %150 {offsets = [0, 1], sizes = [32, 1], strides = [1, 1]} : vector<32x16xf32> to vector<32x1xf32>
    %181 = vector.extract_strided_slice %152 {offsets = [1, 0], sizes = [1, 32], strides = [1, 1]} : vector<8x32xf32> to vector<1x32xf32>
    %182 = vector.broadcast %180 : vector<32x1xf32> to vector<32x32xf32>
    %183 = vector.broadcast %181 : vector<1x32xf32> to vector<32x32xf32>
    %184 = arith.addf %182, %183 : vector<32x32xf32>
    %cst_61 = arith.constant 0.000000e+00 : f32
    %185 = vector.broadcast %cst_61 : f32 to vector<32x32xf32>
    %186 = arith.cmpf ogt, %184, %185 : vector<32x32xf32>
    %cst_62 = arith.constant 2.000000e-01 : f32
    %187 = vector.broadcast %cst_62 : f32 to vector<32x32xf32>
    %188 = arith.mulf %187, %184 : vector<32x32xf32>
    %189 = arith.select %186, %184, %188 : vector<32x32xi1>, vector<32x32xf32>
    %cst_63 = arith.constant -9.000000e+15 : f32
    %190 = vector.broadcast %cst_63 : f32 to vector<32x32xf32>
    %191 = arith.select %6, %189, %190 : vector<32x32xi1>, vector<32x32xf32>
    %cst_64 = arith.constant dense<0xFF800000> : vector<32xf32>
    %192 = vector.multi_reduction <maximumf>, %191, %cst_64 [1] : vector<32x32xf32> to vector<32xf32>
    %193 = vector.shape_cast %192 : vector<32xf32> to vector<32x1xf32>
    %194 = vector.broadcast %193 : vector<32x1xf32> to vector<32x32xf32>
    %195 = arith.subf %191, %194 : vector<32x32xf32>
    %196 = math.exp %195 : vector<32x32xf32>
    %cst_65 = arith.constant dense<0.000000e+00> : vector<32xf32>
    %197 = vector.multi_reduction <add>, %196, %cst_65 [1] : vector<32x32xf32> to vector<32xf32>
    %198 = vector.shape_cast %197 : vector<32xf32> to vector<32x1xf32>
    %199 = vector.broadcast %198 : vector<32x1xf32> to vector<32x32xf32>
    %200 = arith.divf %196, %199 : vector<32x32xf32>
    %cst_66 = arith.constant dense<0.000000e+00> : vector<32x48xf32>
    %201 = tpu.matmul %200, %149, %cst_66 {dimension_numbers = #tpu.dot_dimension_numbers<[1], [0], [0], [1], [0, 0, 1, 1], [], []>} : vector<32x32xf32>, vector<32x48xf32>, vector<32x48xf32> -> vector<32x48xf32>
    %202 = vector.extract_strided_slice %148 {offsets = [1, 0], sizes = [1, 48], strides = [1, 1]} : vector<3x48xf32> to vector<1x48xf32>
    %203 = vector.broadcast %202 : vector<1x48xf32> to vector<32x48xf32>
    %204 = arith.mulf %203, %201 : vector<32x48xf32>
    %205 = arith.addf %179, %204 : vector<32x48xf32>
    %206 = vector.extract_strided_slice %150 {offsets = [0, 2], sizes = [32, 1], strides = [1, 1]} : vector<32x16xf32> to vector<32x1xf32>
    %207 = vector.extract_strided_slice %152 {offsets = [2, 0], sizes = [1, 32], strides = [1, 1]} : vector<8x32xf32> to vector<1x32xf32>
    %208 = vector.broadcast %206 : vector<32x1xf32> to vector<32x32xf32>
    %209 = vector.broadcast %207 : vector<1x32xf32> to vector<32x32xf32>
    %210 = arith.addf %208, %209 : vector<32x32xf32>
    %cst_67 = arith.constant 0.000000e+00 : f32
    %211 = vector.broadcast %cst_67 : f32 to vector<32x32xf32>
    %212 = arith.cmpf ogt, %210, %211 : vector<32x32xf32>
    %cst_68 = arith.constant 2.000000e-01 : f32
    %213 = vector.broadcast %cst_68 : f32 to vector<32x32xf32>
    %214 = arith.mulf %213, %210 : vector<32x32xf32>
    %215 = arith.select %212, %210, %214 : vector<32x32xi1>, vector<32x32xf32>
    %cst_69 = arith.constant -9.000000e+15 : f32
    %216 = vector.broadcast %cst_69 : f32 to vector<32x32xf32>
    %217 = arith.select %6, %215, %216 : vector<32x32xi1>, vector<32x32xf32>
    %cst_70 = arith.constant dense<0xFF800000> : vector<32xf32>
    %218 = vector.multi_reduction <maximumf>, %217, %cst_70 [1] : vector<32x32xf32> to vector<32xf32>
    %219 = vector.shape_cast %218 : vector<32xf32> to vector<32x1xf32>
    %220 = vector.broadcast %219 : vector<32x1xf32> to vector<32x32xf32>
    %221 = arith.subf %217, %220 : vector<32x32xf32>
    %222 = math.exp %221 : vector<32x32xf32>
    %cst_71 = arith.constant dense<0.000000e+00> : vector<32xf32>
    %223 = vector.multi_reduction <add>, %222, %cst_71 [1] : vector<32x32xf32> to vector<32xf32>
    %224 = vector.shape_cast %223 : vector<32xf32> to vector<32x1xf32>
    %225 = vector.broadcast %224 : vector<32x1xf32> to vector<32x32xf32>
    %226 = arith.divf %222, %225 : vector<32x32xf32>
    %cst_72 = arith.constant dense<0.000000e+00> : vector<32x48xf32>
    %227 = tpu.matmul %226, %149, %cst_72 {dimension_numbers = #tpu.dot_dimension_numbers<[1], [0], [0], [1], [0, 0, 1, 1], [], []>} : vector<32x32xf32>, vector<32x48xf32>, vector<32x48xf32> -> vector<32x48xf32>
    %228 = vector.extract_strided_slice %148 {offsets = [2, 0], sizes = [1, 48], strides = [1, 1]} : vector<3x48xf32> to vector<1x48xf32>
    %229 = vector.broadcast %228 : vector<1x48xf32> to vector<32x48xf32>
    %230 = arith.mulf %229, %227 : vector<32x48xf32>
    %231 = arith.addf %205, %230 : vector<32x48xf32>
    %cst_73 = arith.constant 0.000000e+00 : f32
    %232 = vector.broadcast %cst_73 : f32 to vector<32x48xf32>
    %233 = arith.cmpf ogt, %231, %232 : vector<32x48xf32>
    %cst_74 = arith.constant 0.000000e+00 : f32
    %234 = vector.broadcast %cst_74 : f32 to vector<32x48xf32>
    %235 = arith.minimumf %231, %234 : vector<32x48xf32>
    %236 = math.exp %235 : vector<32x48xf32>
    %cst_75 = arith.constant 1.000000e+00 : f32
    %237 = vector.broadcast %cst_75 : f32 to vector<32x48xf32>
    %238 = arith.subf %236, %237 : vector<32x48xf32>
    %239 = arith.select %233, %231, %238 : vector<32x48xi1>, vector<32x48xf32>
    %240 = vector.shape_cast %239 : vector<32x48xf32> to vector<2x16x48xf32>
    %c168 = arith.constant 168 : index
    %c0_76 = arith.constant 0 : index
    %241 = vector.load %arg2[%c168, %c0_76] : memref<512x128xf32, #tpu.memory_space<vmem>>, vector<1x48xf32>
    %242 = vector.shape_cast %241 : vector<1x48xf32> to vector<1x1x48xf32>
    %243 = vector.broadcast %242 : vector<1x1x48xf32> to vector<2x16x48xf32>
    %244 = arith.mulf %240, %243 : vector<2x16x48xf32>
    %cst_77 = arith.constant dense<0.000000e+00> : vector<2x16xf32>
    %245 = vector.multi_reduction <add>, %244, %cst_77 [2] : vector<2x16x48xf32> to vector<2x16xf32>
    %246 = vector.extract_strided_slice %16 {offsets = [0, 1], sizes = [1, 1], strides = [1, 1]} : vector<1x2xf32> to vector<1x1xf32>
    %247 = vector.broadcast %246 : vector<1x1xf32> to vector<2x16xf32>
    %248 = arith.addf %245, %247 : vector<2x16xf32>
    %c176 = arith.constant 176 : index
    %c0_78 = arith.constant 0 : index
    %249 = vector.load %arg2[%c176, %c0_78] : memref<512x128xf32, #tpu.memory_space<vmem>>, vector<80x64xf32>
    %cst_79 = arith.constant dense<0.000000e+00> : vector<2x64xf32>
    %250 = tpu.matmul %10, %249, %cst_79 {dimension_numbers = #tpu.dot_dimension_numbers<[1], [0], [0], [1], [0, 0, 1, 1], [], []>} : vector<2x80xf32>, vector<80x64xf32>, vector<2x64xf32> -> vector<2x64xf32>
    %c256 = arith.constant 256 : index
    %c0_80 = arith.constant 0 : index
    %251 = vector.load %arg2[%c256, %c0_80] : memref<512x128xf32, #tpu.memory_space<vmem>>, vector<16x64xf32>
    %cst_81 = arith.constant dense<0.000000e+00> : vector<2x64xf32>
    %252 = tpu.matmul %14, %251, %cst_81 {dimension_numbers = #tpu.dot_dimension_numbers<[1], [0], [0], [1], [0, 0, 1, 1], [], []>} : vector<2x16xf32>, vector<16x64xf32>, vector<2x64xf32> -> vector<2x64xf32>
    %253 = arith.addf %250, %252 : vector<2x64xf32>
    %c272 = arith.constant 272 : index
    %c0_82 = arith.constant 0 : index
    %254 = vector.load %arg2[%c272, %c0_82] : memref<512x128xf32, #tpu.memory_space<vmem>>, vector<16x64xf32>
    %cst_83 = arith.constant dense<0.000000e+00> : vector<2x64xf32>
    %255 = tpu.matmul %145, %254, %cst_83 {dimension_numbers = #tpu.dot_dimension_numbers<[1], [0], [0], [1], [0, 0, 1, 1], [], []>} : vector<2x16xf32>, vector<16x64xf32>, vector<2x64xf32> -> vector<2x64xf32>
    %256 = arith.addf %253, %255 : vector<2x64xf32>
    %c288 = arith.constant 288 : index
    %c0_84 = arith.constant 0 : index
    %257 = vector.load %arg2[%c288, %c0_84] : memref<512x128xf32, #tpu.memory_space<vmem>>, vector<16x64xf32>
    %cst_85 = arith.constant dense<0.000000e+00> : vector<2x64xf32>
    %258 = tpu.matmul %248, %257, %cst_85 {dimension_numbers = #tpu.dot_dimension_numbers<[1], [0], [0], [1], [0, 0, 1, 1], [], []>} : vector<2x16xf32>, vector<16x64xf32>, vector<2x64xf32> -> vector<2x64xf32>
    %259 = arith.addf %256, %258 : vector<2x64xf32>
    %c304 = arith.constant 304 : index
    %c0_86 = arith.constant 0 : index
    %260 = vector.load %arg2[%c304, %c0_86] : memref<512x128xf32, #tpu.memory_space<vmem>>, vector<1x64xf32>
    %261 = vector.broadcast %260 : vector<1x64xf32> to vector<2x64xf32>
    %262 = arith.addf %259, %261 : vector<2x64xf32>
    %cst_87 = arith.constant 0.000000e+00 : f32
    %263 = vector.broadcast %cst_87 : f32 to vector<2x64xf32>
    %264 = arith.cmpf ogt, %262, %263 : vector<2x64xf32>
    %cst_88 = arith.constant 0.000000e+00 : f32
    %265 = vector.broadcast %cst_88 : f32 to vector<2x64xf32>
    %266 = arith.minimumf %262, %265 : vector<2x64xf32>
    %267 = math.exp %266 : vector<2x64xf32>
    %cst_89 = arith.constant 1.000000e+00 : f32
    %268 = vector.broadcast %cst_89 : f32 to vector<2x64xf32>
    %269 = arith.subf %267, %268 : vector<2x64xf32>
    %270 = arith.select %264, %262, %269 : vector<2x64xi1>, vector<2x64xf32>
    %c312 = arith.constant 312 : index
    %c0_90 = arith.constant 0 : index
    %271 = vector.load %arg2[%c312, %c0_90] : memref<512x128xf32, #tpu.memory_space<vmem>>, vector<64x48xf32>
    %cst_91 = arith.constant dense<0.000000e+00> : vector<2x48xf32>
    %272 = tpu.matmul %270, %271, %cst_91 {dimension_numbers = #tpu.dot_dimension_numbers<[1], [0], [0], [1], [0, 0, 1, 1], [], []>} : vector<2x64xf32>, vector<64x48xf32>, vector<2x48xf32> -> vector<2x48xf32>
    %c376 = arith.constant 376 : index
    %c0_92 = arith.constant 0 : index
    %273 = vector.load %arg2[%c376, %c0_92] : memref<512x128xf32, #tpu.memory_space<vmem>>, vector<1x48xf32>
    %274 = vector.broadcast %273 : vector<1x48xf32> to vector<2x48xf32>
    %275 = arith.addf %272, %274 : vector<2x48xf32>
    %cst_93 = arith.constant 0.000000e+00 : f32
    %276 = vector.broadcast %cst_93 : f32 to vector<2x48xf32>
    %277 = arith.cmpf ogt, %275, %276 : vector<2x48xf32>
    %cst_94 = arith.constant 0.000000e+00 : f32
    %278 = vector.broadcast %cst_94 : f32 to vector<2x48xf32>
    %279 = arith.minimumf %275, %278 : vector<2x48xf32>
    %280 = math.exp %279 : vector<2x48xf32>
    %cst_95 = arith.constant 1.000000e+00 : f32
    %281 = vector.broadcast %cst_95 : f32 to vector<2x48xf32>
    %282 = arith.subf %280, %281 : vector<2x48xf32>
    %283 = arith.select %277, %275, %282 : vector<2x48xi1>, vector<2x48xf32>
    %c384 = arith.constant 384 : index
    %c0_96 = arith.constant 0 : index
    %284 = vector.load %arg2[%c384, %c0_96] : memref<512x128xf32, #tpu.memory_space<vmem>>, vector<48x32xf32>
    %cst_97 = arith.constant dense<0.000000e+00> : vector<2x32xf32>
    %285 = tpu.matmul %283, %284, %cst_97 {dimension_numbers = #tpu.dot_dimension_numbers<[1], [0], [0], [1], [0, 0, 1, 1], [], []>} : vector<2x48xf32>, vector<48x32xf32>, vector<2x32xf32> -> vector<2x32xf32>
    %c432 = arith.constant 432 : index
    %c0_98 = arith.constant 0 : index
    %286 = vector.load %arg2[%c432, %c0_98] : memref<512x128xf32, #tpu.memory_space<vmem>>, vector<1x32xf32>
    %287 = vector.broadcast %286 : vector<1x32xf32> to vector<2x32xf32>
    %288 = arith.addf %285, %287 : vector<2x32xf32>
    %cst_99 = arith.constant 0.000000e+00 : f32
    %289 = vector.broadcast %cst_99 : f32 to vector<2x32xf32>
    %290 = arith.cmpf ogt, %288, %289 : vector<2x32xf32>
    %cst_100 = arith.constant 0.000000e+00 : f32
    %291 = vector.broadcast %cst_100 : f32 to vector<2x32xf32>
    %292 = arith.minimumf %288, %291 : vector<2x32xf32>
    %293 = math.exp %292 : vector<2x32xf32>
    %cst_101 = arith.constant 1.000000e+00 : f32
    %294 = vector.broadcast %cst_101 : f32 to vector<2x32xf32>
    %295 = arith.subf %293, %294 : vector<2x32xf32>
    %296 = arith.select %290, %288, %295 : vector<2x32xi1>, vector<2x32xf32>
    %c440 = arith.constant 440 : index
    %c0_102 = arith.constant 0 : index
    %297 = vector.load %arg2[%c440, %c0_102] : memref<512x128xf32, #tpu.memory_space<vmem>>, vector<32x16xf32>
    %cst_103 = arith.constant dense<0.000000e+00> : vector<2x16xf32>
    %298 = tpu.matmul %296, %297, %cst_103 {dimension_numbers = #tpu.dot_dimension_numbers<[1], [0], [0], [1], [0, 0, 1, 1], [], []>} : vector<2x32xf32>, vector<32x16xf32>, vector<2x16xf32> -> vector<2x16xf32>
    %c472 = arith.constant 472 : index
    %c0_104 = arith.constant 0 : index
    %299 = vector.load %arg2[%c472, %c0_104] : memref<512x128xf32, #tpu.memory_space<vmem>>, vector<1x16xf32>
    %300 = vector.broadcast %299 : vector<1x16xf32> to vector<2x16xf32>
    %301 = arith.addf %298, %300 : vector<2x16xf32>
    %cst_105 = arith.constant 0.000000e+00 : f32
    %302 = vector.broadcast %cst_105 : f32 to vector<2x16xf32>
    %303 = arith.cmpf ogt, %301, %302 : vector<2x16xf32>
    %cst_106 = arith.constant 0.000000e+00 : f32
    %304 = vector.broadcast %cst_106 : f32 to vector<2x16xf32>
    %305 = arith.minimumf %301, %304 : vector<2x16xf32>
    %306 = math.exp %305 : vector<2x16xf32>
    %cst_107 = arith.constant 1.000000e+00 : f32
    %307 = vector.broadcast %cst_107 : f32 to vector<2x16xf32>
    %308 = arith.subf %306, %307 : vector<2x16xf32>
    %309 = arith.select %303, %301, %308 : vector<2x16xi1>, vector<2x16xf32>
    %c480 = arith.constant 480 : index
    %c0_108 = arith.constant 0 : index
    %310 = vector.load %arg2[%c480, %c0_108] : memref<512x128xf32, #tpu.memory_space<vmem>>, vector<16x1xf32>
    %cst_109 = arith.constant dense<0.000000e+00> : vector<2x1xf32>
    %311 = tpu.matmul %309, %310, %cst_109 {dimension_numbers = #tpu.dot_dimension_numbers<[1], [0], [0], [1], [0, 0, 1, 1], [], []>} : vector<2x16xf32>, vector<16x1xf32>, vector<2x1xf32> -> vector<2x1xf32>
    %c496 = arith.constant 496 : index
    %c0_110 = arith.constant 0 : index
    %312 = vector.load %arg2[%c496, %c0_110] : memref<512x128xf32, #tpu.memory_space<vmem>>, vector<1x1xf32>
    %313 = vector.broadcast %312 : vector<1x1xf32> to vector<2x1xf32>
    %314 = arith.addf %311, %313 : vector<2x1xf32>
    %315 = arith.negf %314 : vector<2x1xf32>
    %316 = math.exp %315 : vector<2x1xf32>
    %cst_111 = arith.constant 1.000000e+00 : f32
    %317 = vector.broadcast %cst_111 : f32 to vector<2x1xf32>
    %318 = arith.addf %317, %316 : vector<2x1xf32>
    %319 = arith.divf %317, %318 : vector<2x1xf32>
    %cst_112 = arith.constant 6.000000e+00 : f32
    %320 = vector.broadcast %cst_112 : f32 to vector<2x1xf32>
    %321 = arith.mulf %319, %320 : vector<2x1xf32>
    %cst_113 = arith.constant 3.000000e+00 : f32
    %322 = vector.broadcast %cst_113 : f32 to vector<2x1xf32>
    %323 = arith.subf %321, %322 : vector<2x1xf32>
    %c0_114 = arith.constant 0 : index
    %c0_115 = arith.constant 0 : index
    %324 = vector.load %arg3[%c0_114, %c0_115] : memref<2x1xf32, #tpu.memory_space<vmem>>, vector<2x1xf32>
    tpu.vector_store %arg3[%c0_114, %c0_115], %323 {strides = array<i32>} : memref<2x1xf32, #tpu.memory_space<vmem>>, vector<2x1xf32>,
    return
  }
}

</mosaic_0001>

<llo_original>
// kernel: gat_forward.1
$region0: #{gat_forward.1}
  #allocation0 [shape = 'u32[]', space=smem, size = 0x4, offset = 0x4, fixed_abs, tag = 'smem constant byte address 0x4 - core index']
  #allocation1 [shape = 'u32[144,128]{1,0:T(1,128)}', space=vmem, size = 0x12000, scoped, tag = 'internal scratch']
  %s0 = inlined_call_operand.vmem [shape: f32[2,96,32], index: 0, kind: input, shape index: {}]
  %s1 = inlined_call_operand.vmem [shape: f32[16,16], index: 1, kind: input, shape index: {}]
  %s2 = inlined_call_operand.hbm [shape: f32[512,128], index: 2, kind: input, shape index: {}]
  %s3 = inlined_call_operand.vmem [shape: f32[2,1], index: 3, kind: output, shape index: {}]
  %s4 = sld [smem:[#allocation0]]
  $region26: #{gat_forward.1} parent=0
    _
  %s6 = ssub.s32 1, %s4
  %s7 = scalar_select 0, %s6, %s4
  $region1: #{gat_forward.1} parent=0
    #allocation2 [shape = 'u8[262144]{0}', space=vmem, size = 0x40000, scoped, tag = 'input window, operand 2, single buffered']
    #allocation3 [shape = 's32[1]{0}', space=sflag, size = 0x4, scoped, tag = 'scoped memory for gat_forward.1']
    %8 = vsyncpa [#allocation3], 0
    // Predicated region
    $region2: #{gat_forward.1} parent=1 // pred_check
      _
    $region3: #{gat_forward.1} parent=1 // pred_check_branch
      %10 = sbr.rel (0) target = $region5
    $region4: #{gat_forward.1} parent=1 // pred_region
      _
    $region5: #{gat_forward.1} parent=1 // pred_fallthru
      _
    // Predicated region
    $region6: #{gat_forward.1} parent=1 // pred_check
      _
    $region7: #{gat_forward.1} parent=1 // pred_check_branch
      %12 = sbr.rel (0) target = $region9
    $region8: #{gat_forward.1} parent=1 // pred_region
      _
    $region9: #{gat_forward.1} parent=1 // pred_fallthru
      _
    // Predicated region
    $region10: #{gat_forward.1} parent=1 // pred_check
      _
    $region11: #{gat_forward.1} parent=1 // pred_check_branch
      %14 = sbr.rel (0) target = $region13
    $region12: #{gat_forward.1} parent=1 // pred_region
      %s16 = ssub.s32 8192, 8192
      %17 = vsyncadd [#allocation3], %s16
      %s18 = sshll.u32 [#allocation2], 4
      %s19 = int_to_ptr.vmem [resolvable:$true] %s18
      %24 = dma.hbm_to_vmem [thread:$0]  %s2, 8192, %s19, [#allocation3], 128, 128, 8
    $region13: #{gat_forward.1} parent=1 // pred_fallthru
      _
    // Predicated region
    $region14: #{gat_forward.1} parent=1 // pred_check
      _
    $region15: #{gat_forward.1} parent=1 // pred_check_branch
      %26 = sbr.rel (0) target = $region17
    $region16: #{gat_forward.1} parent=1 // pred_region
      %27 = dma.done [#allocation3], 8192
    $region17: #{gat_forward.1} parent=1 // pred_fallthru
      _
    %v28 = vld [vmem:[%s1] sm:$0xff]
    %v29 = vld [vmem:[%s1 + $0x8] sm:$0xff]
    %vm30 = vcmask 130048
    %v31 = vsel %vm30, %v28, 0.0
    %v32 = vsel %vm30, %v29, 0.0
    %35 = vrot.lane.b32.xlu0 %v28, 16
    %v36 = vpop.permute.xlu0 %35
    %37 = vrot.lane.b32.xlu0 %v29, 16
    %v38 = vpop.permute.xlu0 %37
    %v41 = vsel %vm30, 0.0, %v36
    %v42 = vsel %vm30, 0.0, %v38
    %vm43 = vcmp.gt.f32.partialorder %v31, 0.0
    %vm44 = vcmp.gt.f32.partialorder %v32, 0.0
    %vm45 = vcmp.gt.f32.partialorder %v41, 0.0
    %vm46 = vcmp.gt.f32.partialorder %v42, 0.0
    %v47 = vld [vmem:[%s0] sm:$0xff]
    %v48 = vld [vmem:[%s0 + $0x8] sm:$0xff]
    %v49 = vld [vmem:[%s0 + $0x10] sm:$0xff]
    %v50 = vld [vmem:[%s0 + $0x18] sm:$0xff]
    %v51 = vld [vmem:[%s0 + $0x20] sm:$0xff]
    %v52 = vld [vmem:[%s0 + $0x28] sm:$0xff]
    %v53 = vld [vmem:[%s0 + $0x30] sm:$0xff]
    %v54 = vld [vmem:[%s0 + $0x38] sm:$0xff]
    %v55 = vld [vmem:[%s0 + $0x40] sm:$0xff]
    %v56 = vld [vmem:[%s0 + $0x48] sm:$0xff]
    %v57 = vld [vmem:[%s0 + $0x60] sm:$0xff]
    %v58 = vld [vmem:[%s0 + $0x68] sm:$0xff]
    %v59 = vld [vmem:[%s0 + $0x70] sm:$0xff]
    %v60 = vld [vmem:[%s0 + $0x78] sm:$0xff]
    %v61 = vld [vmem:[%s0 + $0x80] sm:$0xff]
    %v62 = vld [vmem:[%s0 + $0x88] sm:$0xff]
    %v63 = vld [vmem:[%s0 + $0x90] sm:$0xff]
    %v64 = vld [vmem:[%s0 + $0x98] sm:$0xff]
    %v65 = vld [vmem:[%s0 + $0xa0] sm:$0xff]
    %v66 = vld [vmem:[%s0 + $0xa8] sm:$0xff]
    %vm67 = vcmask 261120
    %v68 = vsel %vm67, %v47, 0.0
    %69 = vadd.xlane.f32.xlu0 %v68
    %v70 = vpop.xlane.xlu0 %69
    %v71 = vsel %vm67, %v48, 0.0
    %72 = vadd.xlane.f32.xlu0 %v71
    %v73 = vpop.xlane.xlu0 %72
    %v74 = vsel %vm67, %v49, 0.0
    %75 = vadd.xlane.f32.xlu0 %v74
    %v76 = vpop.xlane.xlu0 %75
    %v77 = vsel %vm67, %v50, 0.0
    %78 = vadd.xlane.f32.xlu0 %v77
    %v79 = vpop.xlane.xlu0 %78
    %v80 = vsel %vm67, %v51, 0.0
    %81 = vadd.xlane.f32.xlu0 %v80
    %v82 = vpop.xlane.xlu0 %81
    %v83 = vsel %vm67, %v52, 0.0
    %84 = vadd.xlane.f32.xlu0 %v83
    %v85 = vpop.xlane.xlu0 %84
    %v86 = vsel %vm67, %v53, 0.0
    %87 = vadd.xlane.f32.xlu0 %v86
    %v88 = vpop.xlane.xlu0 %87
    %v89 = vsel %vm67, %v54, 0.0
    %90 = vadd.xlane.f32.xlu0 %v89
    %v91 = vpop.xlane.xlu0 %90
    %v92 = vsel %vm67, %v55, 0.0
    %93 = vadd.xlane.f32.xlu0 %v92
    %v94 = vpop.xlane.xlu0 %93
    %v95 = vsel %vm67, %v56, 0.0
    %96 = vadd.xlane.f32.xlu0 %v95
    %v97 = vpop.xlane.xlu0 %96
    %v98 = vsel %vm67, %v57, 0.0
    %99 = vadd.xlane.f32.xlu0 %v98
    %v100 = vpop.xlane.xlu0 %99
    %v101 = vsel %vm67, %v58, 0.0
    %102 = vadd.xlane.f32.xlu0 %v101
    %v103 = vpop.xlane.xlu0 %102
    %v104 = vsel %vm67, %v59, 0.0
    %105 = vadd.xlane.f32.xlu0 %v104
    %v106 = vpop.xlane.xlu0 %105
    %v107 = vsel %vm67, %v60, 0.0
    %108 = vadd.xlane.f32.xlu0 %v107
    %v109 = vpop.xlane.xlu0 %108
    %v110 = vsel %vm67, %v61, 0.0
    %111 = vadd.xlane.f32.xlu0 %v110
    %v112 = vpop.xlane.xlu0 %111
    %v113 = vsel %vm67, %v62, 0.0
    %114 = vadd.xlane.f32.xlu0 %v113
    %v115 = vpop.xlane.xlu0 %114
    %v116 = vsel %vm67, %v63, 0.0
    %117 = vadd.xlane.f32.xlu0 %v116
    %v118 = vpop.xlane.xlu0 %117
    %v119 = vsel %vm67, %v64, 0.0
    %120 = vadd.xlane.f32.xlu0 %v119
    %v121 = vpop.xlane.xlu0 %120
    %v122 = vsel %vm67, %v65, 0.0
    %123 = vadd.xlane.f32.xlu0 %v122
    %v124 = vpop.xlane.xlu0 %123
    %v125 = vsel %vm67, %v66, 0.0
    %126 = vadd.xlane.f32.xlu0 %v125
    %v127 = vpop.xlane.xlu0 %126
    %v128 = vrcp.pop 32.0
    %v129 = vmul.f32 %v70, %v128
    %v130 = vmul.f32 %v73, %v128
    %v131 = vmul.f32 %v76, %v128
    %v132 = vmul.f32 %v79, %v128
    %v133 = vmul.f32 %v82, %v128
    %v134 = vmul.f32 %v85, %v128
    %v135 = vmul.f32 %v88, %v128
    %v136 = vmul.f32 %v91, %v128
    %v137 = vmul.f32 %v94, %v128
    %v138 = vmul.f32 %v97, %v128
    %v139 = vmul.f32 %v100, %v128
    %v140 = vmul.f32 %v103, %v128
    %v141 = vmul.f32 %v106, %v128
    %v142 = vmul.f32 %v109, %v128
    %v143 = vmul.f32 %v112, %v128
    %v144 = vmul.f32 %v115, %v128
    %v145 = vmul.f32 %v118, %v128
    %v146 = vmul.f32 %v121, %v128
    %v147 = vmul.f32 %v124, %v128
    %v148 = vmul.f32 %v127, %v128
    %v149 = vld [vmem:[%s0 + $0x50] sm:$0xff]
    %v150 = vld [vmem:[%s0 + $0x58] sm:$0xff]
    %v151 = vld [vmem:[%s0 + $0xb0] sm:$0xff]
    %v152 = vld [vmem:[%s0 + $0xb8] sm:$0xff]
    %v153 = vsel %vm67, %v149, 0.0
    %154 = vadd.xlane.f32.xlu0 %v153
    %v155 = vpop.xlane.xlu0 %154
    %v156 = vsel %vm67, %v150, 0.0
    %157 = vadd.xlane.f32.xlu0 %v156
    %v158 = vpop.xlane.xlu0 %157
    %v159 = vsel %vm67, %v151, 0.0
    %160 = vadd.xlane.f32.xlu0 %v159
    %v161 = vpop.xlane.xlu0 %160
    %v162 = vsel %vm67, %v152, 0.0
    %163 = vadd.xlane.f32.xlu0 %v162
    %v164 = vpop.xlane.xlu0 %163
    %v165 = vmul.f32 %v155, %v128
    %v166 = vmul.f32 %v158, %v128
    %v167 = vmul.f32 %v161, %v128
    %v168 = vmul.f32 %v164, %v128
    %v169 = vld [vmem:[#allocation2 + $0x1f8] sm:$0x1]
    %v170 = vld [vmem:[#allocation2] sm:$0xff]
    %v171 = vld [vmem:[#allocation2 + $0x8] sm:$0xff]
    %v172 = vld [vmem:[#allocation2 + $0x10] sm:$0xff]
    %v173 = vld [vmem:[#allocation2 + $0x18] sm:$0xff]
    %v174 = vld [vmem:[#allocation2 + $0x20] sm:$0xff]
    %v175 = vld [vmem:[#allocation2 + $0x28] sm:$0xff]
    %v176 = vld [vmem:[#allocation2 + $0x30] sm:$0xff]
    %v177 = vld [vmem:[#allocation2 + $0x38] sm:$0xff]
    %v178 = vld [vmem:[#allocation2 + $0x40] sm:$0xf]
    %v180 = vsel %vm67, %v149, 0
    %v183 = vsel %vm67, %v150, 0
    %v186 = vsel %vm67, %v151, 0
    %v189 = vsel %vm67, %v152, 0
    %191 = vmatprep.subr.mxu0 0.0
    %192 = vmatpush1.msra.mxu0 %v170
    %193 = vmatprep.subr.mxu0 0.0
    %194 = vmatpush1.msra.mxu0 %v171
    %195 = vmatprep.subr.mxu0 0.0
    %196 = vmatpush1.msra.mxu0 %v172
    %197 = vmatprep.subr.mxu0 0.0
    %198 = vmatpush1.msra.mxu0 %v173
    %199 = vmatprep.subr.mxu0 0.0
    %200 = vmatpush1.msra.mxu0 0.0
    %201 = vmatprep.subr.mxu0 0.0
    %202 = vmatpush1.msra.mxu0 0.0
    %203 = vmatprep.subr.mxu0 0.0
    %204 = vmatpush1.msra.mxu0 0.0
    %205 = vmatprep.subr.mxu0 0.0
    %206 = vmatpush1.msra.mxu0 0.0
    %207 = vmatprep.subr.mxu0 0.0
    %208 = vmatpush1.msra.mxu0 0.0
    %209 = vmatprep.subr.mxu0 0.0
    %210 = vmatpush1.msra.mxu0 0.0
    %211 = vmatprep.subr.mxu0 0.0
    %212 = vmatpush1.msra.mxu0 0.0
    %213 = vmatprep.subr.mxu0 0.0
    %214 = vmatpush1.msra.mxu0 0.0
    %215 = vmatprep.subr.mxu0 0.0
    %216 = vmatpush1.msra.mxu0 0.0
    %217 = vmatprep.subr.mxu0 0.0
    %218 = vmatpush1.msra.mxu0 0.0
    %219 = vmatprep.subr.mxu0 0.0
    %220 = vmatpush1.msra.mxu0 0.0
    %221 = vmatprep.subr.mxu0 0.0
    %222 = vmatpush1.msra.mxu0 0.0
    %223 = vmatprep.subr.mxu0 0.0
    %224 = vmatpush1.msra.mxu0 0.0
    %225 = vmatprep.subr.mxu0 0.0
    %226 = vmatpush1.msra.mxu0 0.0
    %227 = vmatprep.subr.mxu0 0.0
    %228 = vmatpush1.msra.mxu0 0.0
    %229 = vmatprep.subr.mxu0 0.0
    %230 = vmatpush1.msra.mxu0 0.0
    %231 = vmatprep.subr.mxu0 0.0
    %232 = vmatpush1.msra.mxu0 0.0
    %233 = vmatprep.subr.mxu0 0.0
    %234 = vmatpush1.msra.mxu0 0.0
    %235 = vmatprep.subr.mxu0 0.0
    %236 = vmatpush1.msra.mxu0 0.0
    %237 = vmatprep.subr.mxu0 0.0
    %238 = vmatpush1.msra.mxu0 0.0
    %239 = vmatprep.subr.mxu0 0.0
    %240 = vmatpush1.msra.mxu0 0.0
    %241 = vmatprep.subr.mxu0 0.0
    %242 = vmatpush1.msra.mxu0 0.0
    %243 = vmatprep.subr.mxu0 0.0
    %244 = vmatpush1.msra.mxu0 0.0
    %245 = vmatprep.subr.mxu0 0.0
    %246 = vmatpush1.msra.mxu0 0.0
    %247 = vmatprep.subr.mxu0 0.0
    %248 = vmatpush1.msra.mxu0 0.0
    %249 = vmatprep.subr.mxu0 0.0
    %250 = vmatpush1.msra.mxu0 0.0
    %251 = vmatprep.subr.mxu0 0.0
    %252 = vmatpush1.msra.mxu0 0.0
    %253 = vmatprep.subr.mxu0 0.0
    %254 = vmatpush1.msra.mxu0 0.0
    %255 = vmatprep.mubr.f32.mxu0 0.0
    %256 = vmatmul.mubr.f32.gmra.mrb[0].mxu0 %v180
    %v257 = vpop.f32.mrb[0].mxu0
    %v258 = vadd.f32 0.0, %v257
    %v259 = vpop.f32.mrb[0].mxu0
    %260 = vmatprep.mubr.f32.mxu0 0.0
    %261 = vmatmul.mubr.f32.gmra.mrb[0].mxu0 %v183
    %v262 = vpop.f32.mrb[0].mxu0
    %v263 = vadd.f32 0.0, %v262
    %v264 = vpop.f32.mrb[0].mxu0
    %265 = vmatprep.mubr.f32.mxu0 0.0
    %266 = vmatmul.mubr.f32.gmra.mrb[0].mxu0 %v186
    %v267 = vpop.f32.mrb[0].mxu0
    %v268 = vadd.f32 0.0, %v267
    %v269 = vpop.f32.mrb[0].mxu0
    %270 = vmatprep.mubr.f32.mxu0 0.0
    %271 = vmatmul.mubr.f32.gmra.mrb[0].mxu0 %v189
    %v272 = vpop.f32.mrb[0].mxu0
    %v273 = vadd.f32 0.0, %v272
    %v274 = vpop.f32.mrb[0].mxu0
    %275 = vdwg.mxu0
    %v277 = vsel %vm67, %v258, 0
    %v280 = vsel %vm67, %v263, 0
    %v283 = vsel %vm67, %v268, 0
    %v286 = vsel %vm67, %v273, 0
    %288 = vmatprep.subr.mxu0 0.0
    %289 = vmatpush1.msra.mxu0 %v174
    %290 = vmatprep.subr.mxu0 0.0
    %291 = vmatpush1.msra.mxu0 %v175
    %292 = vmatprep.subr.mxu0 0.0
    %293 = vmatpush1.msra.mxu0 %v176
    %294 = vmatprep.subr.mxu0 0.0
    %295 = vmatpush1.msra.mxu0 %v177
    %296 = vmatprep.subr.mxu0 0.0
    %297 = vmatpush1.msra.mxu0 0.0
    %298 = vmatprep.subr.mxu0 0.0
    %299 = vmatpush1.msra.mxu0 0.0
    %300 = vmatprep.subr.mxu0 0.0
    %301 = vmatpush1.msra.mxu0 0.0
    %302 = vmatprep.subr.mxu0 0.0
    %303 = vmatpush1.msra.mxu0 0.0
    %304 = vmatprep.subr.mxu0 0.0
    %305 = vmatpush1.msra.mxu0 0.0
    %306 = vmatprep.subr.mxu0 0.0
    %307 = vmatpush1.msra.mxu0 0.0
    %308 = vmatprep.subr.mxu0 0.0
    %309 = vmatpush1.msra.mxu0 0.0
    %310 = vmatprep.subr.mxu0 0.0
    %311 = vmatpush1.msra.mxu0 0.0
    %312 = vmatprep.subr.mxu0 0.0
    %313 = vmatpush1.msra.mxu0 0.0
    %314 = vmatprep.subr.mxu0 0.0
    %315 = vmatpush1.msra.mxu0 0.0
    %316 = vmatprep.subr.mxu0 0.0
    %317 = vmatpush1.msra.mxu0 0.0
    %318 = vmatprep.subr.mxu0 0.0
    %319 = vmatpush1.msra.mxu0 0.0
    %320 = vmatprep.subr.mxu0 0.0
    %321 = vmatpush1.msra.mxu0 0.0
    %322 = vmatprep.subr.mxu0 0.0
    %323 = vmatpush1.msra.mxu0 0.0
    %324 = vmatprep.subr.mxu0 0.0
    %325 = vmatpush1.msra.mxu0 0.0
    %326 = vmatprep.subr.mxu0 0.0
    %327 = vmatpush1.msra.mxu0 0.0
    %328 = vmatprep.subr.mxu0 0.0
    %329 = vmatpush1.msra.mxu0 0.0
    %330 = vmatprep.subr.mxu0 0.0
    %331 = vmatpush1.msra.mxu0 0.0
    %332 = vmatprep.subr.mxu0 0.0
    %333 = vmatpush1.msra.mxu0 0.0
    %334 = vmatprep.subr.mxu0 0.0
    %335 = vmatpush1.msra.mxu0 0.0
    %336 = vmatprep.subr.mxu0 0.0
    %337 = vmatpush1.msra.mxu0 0.0
    %338 = vmatprep.subr.mxu0 0.0
    %339 = vmatpush1.msra.mxu0 0.0
    %340 = vmatprep.subr.mxu0 0.0
    %341 = vmatpush1.msra.mxu0 0.0
    %342 = vmatprep.subr.mxu0 0.0
    %343 = vmatpush1.msra.mxu0 0.0
    %344 = vmatprep.subr.mxu0 0.0
    %345 = vmatpush1.msra.mxu0 0.0
    %346 = vmatprep.subr.mxu0 0.0
    %347 = vmatpush1.msra.mxu0 0.0
    %348 = vmatprep.subr.mxu0 0.0
    %349 = vmatpush1.msra.mxu0 0.0
    %350 = vmatprep.subr.mxu0 0.0
    %351 = vmatpush1.msra.mxu0 0.0
    %352 = vmatprep.mubr.f32.mxu0 0.0
    %353 = vmatmul.mubr.f32.gmra.mrb[0].mxu0 %v277
    %v354 = vpop.f32.mrb[0].mxu0
    %v355 = vadd.f32 0.0, %v354
    %v356 = vpop.f32.mrb[0].mxu0
    %357 = vmatprep.mubr.f32.mxu0 0.0
    %358 = vmatmul.mubr.f32.gmra.mrb[0].mxu0 %v280
    %v359 = vpop.f32.mrb[0].mxu0
    %v360 = vadd.f32 0.0, %v359
    %v361 = vpop.f32.mrb[0].mxu0
    %362 = vmatprep.mubr.f32.mxu0 0.0
    %363 = vmatmul.mubr.f32.gmra.mrb[0].mxu0 %v283
    %v364 = vpop.f32.mrb[0].mxu0
    %v365 = vadd.f32 0.0, %v364
    %v366 = vpop.f32.mrb[0].mxu0
    %367 = vmatprep.mubr.f32.mxu0 0.0
    %368 = vmatmul.mubr.f32.gmra.mrb[0].mxu0 %v286
    %v369 = vpop.f32.mrb[0].mxu0
    %v370 = vadd.f32 0.0, %v369
    %v371 = vpop.f32.mrb[0].mxu0
    %372 = vdwg.mxu0
    %377 = vrot.lane.b32.xlu0 %v355, 120
    %v378 = vpop.permute.xlu0 %377
    %379 = vrot.lane.b32.xlu0 %v360, 120
    %v380 = vpop.permute.xlu0 %379
    %381 = vrot.lane.b32.xlu0 %v365, 120
    %v382 = vpop.permute.xlu0 %381
    %383 = vrot.lane.b32.xlu0 %v370, 120
    %v384 = vpop.permute.xlu0 %383
    %389 = vxpose.xlu0.b32.start [1/16] %v378, 128
    %390 = vxpose.xlu0.b32.cont [2/16] %v380, 128
    %391 = vxpose.xlu0.b32.cont [3/16] %v382, 128
    %392 = vxpose.xlu0.b32.cont [4/16] %v384, 128
    %393 = vxpose.xlu0.b32.cont [5/16] 0.0, 128
    %394 = vxpose.xlu0.b32.cont [6/16] 0.0, 128
    %395 = vxpose.xlu0.b32.cont [7/16] 0.0, 128
    %396 = vxpose.xlu0.b32.cont [8/16] 0.0, 128
    %397 = vxpose.xlu0.b32.cont [9/16] 0.0, 128
    %398 = vxpose.xlu0.b32.cont [10/16] 0.0, 128
    %399 = vxpose.xlu0.b32.cont [11/16] 0.0, 128
    %400 = vxpose.xlu0.b32.cont [12/16] 0.0, 128
    %401 = vxpose.xlu0.b32.cont [13/16] 0.0, 128
    %402 = vxpose.xlu0.b32.cont [14/16] 0.0, 128
    %403 = vxpose.xlu0.b32.cont [15/16] 0.0, 128
    %404 = vxpose.xlu0.b32.end [16/16] 0.0, 128
    %v405 = vpop.trf.xlu0
    %v406 = vpop.trf.xlu0
    %v407 = vpop.trf.xlu0
    %v408 = vpop.trf.xlu0
    %v409 = vpop.trf.xlu0
    %v410 = vpop.trf.xlu0
    %v411 = vpop.trf.xlu0
    %v412 = vpop.trf.xlu0
    %v413 = vpop.trf.xlu0
    %v414 = vpop.trf.xlu0
    %v415 = vpop.trf.xlu0
    %v416 = vpop.trf.xlu0
    %v417 = vpop.trf.xlu0
    %v418 = vpop.trf.xlu0
    %v419 = vpop.trf.xlu0
    %v420 = vpop.trf.xlu0
    %421 = vset.pattern.permute.xlu0 0
    %422 = vperm.xlu0 %421, %v355
    %v423 = vpop.permute.xlu0 %422
    %425 = vset.pattern.permute.xlu0 0
    %426 = vperm.xlu0 %425, %v360
    %v427 = vpop.permute.xlu0 %426
    %429 = vset.pattern.permute.xlu0 0
    %430 = vperm.xlu0 %429, %v365
    %v431 = vpop.permute.xlu0 %430
    %433 = vset.pattern.permute.xlu0 0
    %434 = vperm.xlu0 %433, %v370
    %v435 = vpop.permute.xlu0 %434
    %v437 = vlaneseq
    %v438 = vshrl.u32 %v437, 7
    %v439 = vsub.s32 0, %v438
    %v440 = vrot.slane %v405, %v439
    %v441 = vadd.f32 %v423, %v440
    %v442 = vadd.f32 %v427, %v440
    %v443 = vadd.f32 %v431, %v440
    %v444 = vadd.f32 %v435, %v440
    %vm445 = vcmp.gt.f32.partialorder %v441, 0.0
    %vm446 = vcmp.gt.f32.partialorder %v442, 0.0
    %vm447 = vcmp.gt.f32.partialorder %v443, 0.0
    %vm448 = vcmp.gt.f32.partialorder %v444, 0.0
    %v449 = vmul.f32 %v441, 0.2
    %v450 = vmul.f32 %v442, 0.2
    %v451 = vmul.f32 %v443, 0.2
    %v452 = vmul.f32 %v444, 0.2
    %v453 = vsel %vm445, %v441, %v449
    %v454 = vsel %vm446, %v442, %v450
    %v455 = vsel %vm447, %v443, %v451
    %v456 = vsel %vm448, %v444, %v452
    %v457 = vsel %vm43, %v453, -9e+15
    %v458 = vsel %vm44, %v454, -9e+15
    %v459 = vsel %vm45, %v455, -9e+15
    %v460 = vsel %vm46, %v456, -9e+15
    %v461 = vsel %vm67, %v457, -inf
    %462 = vmax.xlane.f32.xlu0 %v461
    %v463 = vpop.xlane.xlu0 %462
    %v464 = vsel %vm67, %v458, -inf
    %465 = vmax.xlane.f32.xlu0 %v464
    %v466 = vpop.xlane.xlu0 %465
    %v467 = vsel %vm67, %v459, -inf
    %468 = vmax.xlane.f32.xlu0 %v467
    %v469 = vpop.xlane.xlu0 %468
    %v470 = vsel %vm67, %v460, -inf
    %471 = vmax.xlane.f32.xlu0 %v470
    %v472 = vpop.xlane.xlu0 %471
    %v473 = vsub.f32 %v457, %v463
    %v474 = vsub.f32 %v458, %v466
    %v475 = vsub.f32 %v459, %v469
    %v476 = vsub.f32 %v460, %v472
    %v477 = vmul.f32 %v473, 1.442695
    %v478 = vpow.pop %v477
    %v479 = vmul.f32 %v474, 1.442695
    %v480 = vpow.pop %v479
    %v481 = vmul.f32 %v475, 1.442695
    %v482 = vpow.pop %v481
    %v483 = vmul.f32 %v476, 1.442695
    %v484 = vpow.pop %v483
    %v485 = vsel %vm67, %v478, 0.0
    %486 = vadd.xlane.f32.xlu0 %v485
    %v487 = vpop.xlane.xlu0 %486
    %v488 = vsel %vm67, %v480, 0.0
    %489 = vadd.xlane.f32.xlu0 %v488
    %v490 = vpop.xlane.xlu0 %489
    %v491 = vsel %vm67, %v482, 0.0
    %492 = vadd.xlane.f32.xlu0 %v491
    %v493 = vpop.xlane.xlu0 %492
    %v494 = vsel %vm67, %v484, 0.0
    %495 = vadd.xlane.f32.xlu0 %v494
    %v496 = vpop.xlane.xlu0 %495
    %v497 = vrcp.pop %v487
    %v498 = vmul.f32 %v478, %v497
    %v499 = vrcp.pop %v490
    %v500 = vmul.f32 %v480, %v499
    %v501 = vrcp.pop %v493
    %v502 = vmul.f32 %v482, %v501
    %v503 = vrcp.pop %v496
    %v504 = vmul.f32 %v484, %v503
    %v506 = vsel %vm67, %v498, 0
    %v509 = vsel %vm67, %v500, 0
    %v512 = vsel %vm67, %v502, 0
    %v515 = vsel %vm67, %v504, 0
    %517 = vmatprep.subr.mxu0 0.0
    %518 = vmatpush1.msra.mxu0 %v258
    %519 = vmatprep.subr.mxu0 0.0
    %520 = vmatpush1.msra.mxu0 %v263
    %521 = vmatprep.subr.mxu0 0.0
    %522 = vmatpush1.msra.mxu0 %v268
    %523 = vmatprep.subr.mxu0 0.0
    %524 = vmatpush1.msra.mxu0 %v273
    %525 = vmatprep.subr.mxu0 0.0
    %526 = vmatpush1.msra.mxu0 0.0
    %527 = vmatprep.subr.mxu0 0.0
    %528 = vmatpush1.msra.mxu0 0.0
    %529 = vmatprep.subr.mxu0 0.0
    %530 = vmatpush1.msra.mxu0 0.0
    %531 = vmatprep.subr.mxu0 0.0
    %532 = vmatpush1.msra.mxu0 0.0
    %533 = vmatprep.subr.mxu0 0.0
    %534 = vmatpush1.msra.mxu0 0.0
    %535 = vmatprep.subr.mxu0 0.0
    %536 = vmatpush1.msra.mxu0 0.0
    %537 = vmatprep.subr.mxu0 0.0
    %538 = vmatpush1.msra.mxu0 0.0
    %539 = vmatprep.subr.mxu0 0.0
    %540 = vmatpush1.msra.mxu0 0.0
    %541 = vmatprep.subr.mxu0 0.0
    %542 = vmatpush1.msra.mxu0 0.0
    %543 = vmatprep.subr.mxu0 0.0
    %544 = vmatpush1.msra.mxu0 0.0
    %545 = vmatprep.subr.mxu0 0.0
    %546 = vmatpush1.msra.mxu0 0.0
    %547 = vmatprep.subr.mxu0 0.0
    %548 = vmatpush1.msra.mxu0 0.0
    %549 = vmatprep.subr.mxu0 0.0
    %550 = vmatpush1.msra.mxu0 0.0
    %551 = vmatprep.subr.mxu0 0.0
    %552 = vmatpush1.msra.mxu0 0.0
    %553 = vmatprep.subr.mxu0 0.0
    %554 = vmatpush1.msra.mxu0 0.0
    %555 = vmatprep.subr.mxu0 0.0
    %556 = vmatpush1.msra.mxu0 0.0
    %557 = vmatprep.subr.mxu0 0.0
    %558 = vmatpush1.msra.mxu0 0.0
    %559 = vmatprep.subr.mxu0 0.0
    %560 = vmatpush1.msra.mxu0 0.0
    %561 = vmatprep.subr.mxu0 0.0
    %562 = vmatpush1.msra.mxu0 0.0
    %563 = vmatprep.subr.mxu0 0.0
    %564 = vmatpush1.msra.mxu0 0.0
    %565 = vmatprep.subr.mxu0 0.0
    %566 = vmatpush1.msra.mxu0 0.0
    %567 = vmatprep.subr.mxu0 0.0
    %568 = vmatpush1.msra.mxu0 0.0
    %569 = vmatprep.subr.mxu0 0.0
    %570 = vmatpush1.msra.mxu0 0.0
    %571 = vmatprep.subr.mxu0 0.0
    %572 = vmatpush1.msra.mxu0 0.0
    %573 = vmatprep.subr.mxu0 0.0
    %574 = vmatpush1.msra.mxu0 0.0
    %575 = vmatprep.subr.mxu0 0.0
    %576 = vmatpush1.msra.mxu0 0.0
    %577 = vmatprep.subr.mxu0 0.0
    %578 = vmatpush1.msra.mxu0 0.0
    %579 = vmatprep.subr.mxu0 0.0
    %580 = vmatpush1.msra.mxu0 0.0
    %581 = vmatprep.mubr.f32.mxu0 0.0
    %582 = vmatmul.mubr.f32.gmra.mrb[0].mxu0 %v506
    %v583 = vpop.f32.mrb[0].mxu0
    %v584 = vadd.f32 0.0, %v583
    %v585 = vpop.f32.mrb[0].mxu0
    %586 = vmatprep.mubr.f32.mxu0 0.0
    %587 = vmatmul.mubr.f32.gmra.mrb[0].mxu0 %v509
    %v588 = vpop.f32.mrb[0].mxu0
    %v589 = vadd.f32 0.0, %v588
    %v590 = vpop.f32.mrb[0].mxu0
    %591 = vmatprep.mubr.f32.mxu0 0.0
    %592 = vmatmul.mubr.f32.gmra.mrb[0].mxu0 %v512
    %v593 = vpop.f32.mrb[0].mxu0
    %v594 = vadd.f32 0.0, %v593
    %v595 = vpop.f32.mrb[0].mxu0
    %596 = vmatprep.mubr.f32.mxu0 0.0
    %597 = vmatmul.mubr.f32.gmra.mrb[0].mxu0 %v515
    %v598 = vpop.f32.mrb[0].mxu0
    %v599 = vadd.f32 0.0, %v598
    %v600 = vpop.f32.mrb[0].mxu0
    %601 = vdwg.mxu0
    %v602 = vlaneseq
    %v603 = vshrl.u32 %v602, 7
    %v604 = vsub.s32 0, %v603
    %v605 = vrot.slane %v178, %v604
    %v606 = vmul.f32 %v605, %v584
    %v607 = vmul.f32 %v605, %v589
    %v608 = vmul.f32 %v605, %v594
    %v609 = vmul.f32 %v605, %v599
    %v610 = vadd.f32 %v606, 0.0
    %v611 = vadd.f32 %v607, 0.0
    %v612 = vadd.f32 %v608, 0.0
    %v613 = vadd.f32 %v609, 0.0
    %614 = vset.pattern.permute.xlu0 1
    %615 = vperm.xlu0 %614, %v355
    %v616 = vpop.permute.xlu0 %615
    %618 = vset.pattern.permute.xlu0 1
    %619 = vperm.xlu0 %618, %v360
    %v620 = vpop.permute.xlu0 %619
    %622 = vset.pattern.permute.xlu0 1
    %623 = vperm.xlu0 %622, %v365
    %v624 = vpop.permute.xlu0 %623
    %626 = vset.pattern.permute.xlu0 1
    %627 = vperm.xlu0 %626, %v370
    %v628 = vpop.permute.xlu0 %627
    %v630 = vlaneseq
    %v631 = vshrl.u32 %v630, 7
    %v632 = vsub.s32 1, %v631
    %v633 = vrot.slane %v405, %v632
    %v634 = vadd.f32 %v616, %v633
    %v635 = vadd.f32 %v620, %v633
    %v636 = vadd.f32 %v624, %v633
    %v637 = vadd.f32 %v628, %v633
    %vm638 = vcmp.gt.f32.partialorder %v634, 0.0
    %vm639 = vcmp.gt.f32.partialorder %v635, 0.0
    %vm640 = vcmp.gt.f32.partialorder %v636, 0.0
    %vm641 = vcmp.gt.f32.partialorder %v637, 0.0
    %v642 = vmul.f32 %v634, 0.2
    %v643 = vmul.f32 %v635, 0.2
    %v644 = vmul.f32 %v636, 0.2
    %v645 = vmul.f32 %v637, 0.2
    %v646 = vsel %vm638, %v634, %v642
    %v647 = vsel %vm639, %v635, %v643
    %v648 = vsel %vm640, %v636, %v644
    %v649 = vsel %vm641, %v637, %v645
    %v650 = vsel %vm43, %v646, -9e+15
    %v651 = vsel %vm44, %v647, -9e+15
    %v652 = vsel %vm45, %v648, -9e+15
    %v653 = vsel %vm46, %v649, -9e+15
    %v654 = vsel %vm67, %v650, -inf
    %655 = vmax.xlane.f32.xlu0 %v654
    %v656 = vpop.xlane.xlu0 %655
    %v657 = vsel %vm67, %v651, -inf
    %658 = vmax.xlane.f32.xlu0 %v657
    %v659 = vpop.xlane.xlu0 %658
    %v660 = vsel %vm67, %v652, -inf
    %661 = vmax.xlane.f32.xlu0 %v660
    %v662 = vpop.xlane.xlu0 %661
    %v663 = vsel %vm67, %v653, -inf
    %664 = vmax.xlane.f32.xlu0 %v663
    %v665 = vpop.xlane.xlu0 %664
    %v666 = vsub.f32 %v650, %v656
    %v667 = vsub.f32 %v651, %v659
    %v668 = vsub.f32 %v652, %v662
    %v669 = vsub.f32 %v653, %v665
    %v670 = vmul.f32 %v666, 1.442695
    %v671 = vpow.pop %v670
    %v672 = vmul.f32 %v667, 1.442695
    %v673 = vpow.pop %v672
    %v674 = vmul.f32 %v668, 1.442695
    %v675 = vpow.pop %v674
    %v676 = vmul.f32 %v669, 1.442695
    %v677 = vpow.pop %v676
    %v678 = vsel %vm67, %v671, 0.0
    %679 = vadd.xlane.f32.xlu0 %v678
    %v680 = vpop.xlane.xlu0 %679
    %v681 = vsel %vm67, %v673, 0.0
    %682 = vadd.xlane.f32.xlu0 %v681
    %v683 = vpop.xlane.xlu0 %682
    %v684 = vsel %vm67, %v675, 0.0
    %685 = vadd.xlane.f32.xlu0 %v684
    %v686 = vpop.xlane.xlu0 %685
    %v687 = vsel %vm67, %v677, 0.0
    %688 = vadd.xlane.f32.xlu0 %v687
    %v689 = vpop.xlane.xlu0 %688
    %v690 = vrcp.pop %v680
    %v691 = vmul.f32 %v671, %v690
    %v692 = vrcp.pop %v683
    %v693 = vmul.f32 %v673, %v692
    %v694 = vrcp.pop %v686
    %v695 = vmul.f32 %v675, %v694
    %v696 = vrcp.pop %v689
    %v697 = vmul.f32 %v677, %v696
    %v699 = vsel %vm67, %v691, 0
    %v702 = vsel %vm67, %v693, 0
    %v705 = vsel %vm67, %v695, 0
    %v708 = vsel %vm67, %v697, 0
    %710 = vmatprep.subr.mxu0 0.0
    %711 = vmatpush1.msra.mxu0 %v258
    %712 = vmatprep.subr.mxu0 0.0
    %713 = vmatpush1.msra.mxu0 %v263
    %714 = vmatprep.subr.mxu0 0.0
    %715 = vmatpush1.msra.mxu0 %v268
    %716 = vmatprep.subr.mxu0 0.0
    %717 = vmatpush1.msra.mxu0 %v273
    %718 = vmatprep.subr.mxu0 0.0
    %719 = vmatpush1.msra.mxu0 0.0
    %720 = vmatprep.subr.mxu0 0.0
    %721 = vmatpush1.msra.mxu0 0.0
    %722 = vmatprep.subr.mxu0 0.0
    %723 = vmatpush1.msra.mxu0 0.0
    %724 = vmatprep.subr.mxu0 0.0
    %725 = vmatpush1.msra.mxu0 0.0
    %726 = vmatprep.subr.mxu0 0.0
    %727 = vmatpush1.msra.mxu0 0.0
    %728 = vmatprep.subr.mxu0 0.0
    %729 = vmatpush1.msra.mxu0 0.0
    %730 = vmatprep.subr.mxu0 0.0
    %731 = vmatpush1.msra.mxu0 0.0
    %732 = vmatprep.subr.mxu0 0.0
    %733 = vmatpush1.msra.mxu0 0.0
    %734 = vmatprep.subr.mxu0 0.0
    %735 = vmatpush1.msra.mxu0 0.0
    %736 = vmatprep.subr.mxu0 0.0
    %737 = vmatpush1.msra.mxu0 0.0
    %738 = vmatprep.subr.mxu0 0.0
    %739 = vmatpush1.msra.mxu0 0.0
    %740 = vmatprep.subr.mxu0 0.0
    %741 = vmatpush1.msra.mxu0 0.0
    %742 = vmatprep.subr.mxu0 0.0
    %743 = vmatpush1.msra.mxu0 0.0
    %744 = vmatprep.subr.mxu0 0.0
    %745 = vmatpush1.msra.mxu0 0.0
    %746 = vmatprep.subr.mxu0 0.0
    %747 = vmatpush1.msra.mxu0 0.0
    %748 = vmatprep.subr.mxu0 0.0
    %749 = vmatpush1.msra.mxu0 0.0
    %750 = vmatprep.subr.mxu0 0.0
    %751 = vmatpush1.msra.mxu0 0.0
    %752 = vmatprep.subr.mxu0 0.0
    %753 = vmatpush1.msra.mxu0 0.0
    %754 = vmatprep.subr.mxu0 0.0
    %755 = vmatpush1.msra.mxu0 0.0
    %756 = vmatprep.subr.mxu0 0.0
    %757 = vmatpush1.msra.mxu0 0.0
    %758 = vmatprep.subr.mxu0 0.0
    %759 = vmatpush1.msra.mxu0 0.0
    %760 = vmatprep.subr.mxu0 0.0
    %761 = vmatpush1.msra.mxu0 0.0
    %762 = vmatprep.subr.mxu0 0.0
    %763 = vmatpush1.msra.mxu0 0.0
    %764 = vmatprep.subr.mxu0 0.0
    %765 = vmatpush1.msra.mxu0 0.0
    %766 = vmatprep.subr.mxu0 0.0
    %767 = vmatpush1.msra.mxu0 0.0
    %768 = vmatprep.subr.mxu0 0.0
    %769 = vmatpush1.msra.mxu0 0.0
    %770 = vmatprep.subr.mxu0 0.0
    %771 = vmatpush1.msra.mxu0 0.0
    %772 = vmatprep.subr.mxu0 0.0
    %773 = vmatpush1.msra.mxu0 0.0
    %774 = vmatprep.mubr.f32.mxu0 0.0
    %775 = vmatmul.mubr.f32.gmra.mrb[0].mxu0 %v699
    %v776 = vpop.f32.mrb[0].mxu0
    %v777 = vadd.f32 0.0, %v776
    %v778 = vpop.f32.mrb[0].mxu0
    %779 = vmatprep.mubr.f32.mxu0 0.0
    %780 = vmatmul.mubr.f32.gmra.mrb[0].mxu0 %v702
    %v781 = vpop.f32.mrb[0].mxu0
    %v782 = vadd.f32 0.0, %v781
    %v783 = vpop.f32.mrb[0].mxu0
    %784 = vmatprep.mubr.f32.mxu0 0.0
    %785 = vmatmul.mubr.f32.gmra.mrb[0].mxu0 %v705
    %v786 = vpop.f32.mrb[0].mxu0
    %v787 = vadd.f32 0.0, %v786
    %v788 = vpop.f32.mrb[0].mxu0
    %789 = vmatprep.mubr.f32.mxu0 0.0
    %790 = vmatmul.mubr.f32.gmra.mrb[0].mxu0 %v708
    %v791 = vpop.f32.mrb[0].mxu0
    %v792 = vadd.f32 0.0, %v791
    %v793 = vpop.f32.mrb[0].mxu0
    %794 = vdwg.mxu0
    %v795 = vlaneseq
    %v796 = vshrl.u32 %v795, 7
    %v797 = vsub.s32 1, %v796
    %v798 = vrot.slane %v178, %v797
    %v799 = vmul.f32 %v798, %v777
    %v800 = vmul.f32 %v798, %v782
    %v801 = vmul.f32 %v798, %v787
    %v802 = vmul.f32 %v798, %v792
    %v803 = vadd.f32 %v610, %v799
    %v804 = vadd.f32 %v611, %v800
    %v805 = vadd.f32 %v612, %v801
    %v806 = vadd.f32 %v613, %v802
    %807 = vset.pattern.permute.xlu0 2
    %808 = vperm.xlu0 %807, %v355
    %v809 = vpop.permute.xlu0 %808
    %811 = vset.pattern.permute.xlu0 2
    %812 = vperm.xlu0 %811, %v360
    %v813 = vpop.permute.xlu0 %812
    %815 = vset.pattern.permute.xlu0 2
    %816 = vperm.xlu0 %815, %v365
    %v817 = vpop.permute.xlu0 %816
    %819 = vset.pattern.permute.xlu0 2
    %820 = vperm.xlu0 %819, %v370
    %v821 = vpop.permute.xlu0 %820
    %v823 = vlaneseq
    %v824 = vshrl.u32 %v823, 7
    %v825 = vsub.s32 2, %v824
    %v826 = vrot.slane %v405, %v825
    %v827 = vadd.f32 %v809, %v826
    %v828 = vadd.f32 %v813, %v826
    %v829 = vadd.f32 %v817, %v826
    %v830 = vadd.f32 %v821, %v826
    %vm831 = vcmp.gt.f32.partialorder %v827, 0.0
    %vm832 = vcmp.gt.f32.partialorder %v828, 0.0
    %vm833 = vcmp.gt.f32.partialorder %v829, 0.0
    %vm834 = vcmp.gt.f32.partialorder %v830, 0.0
    %v835 = vmul.f32 %v827, 0.2
    %v836 = vmul.f32 %v828, 0.2
    %v837 = vmul.f32 %v829, 0.2
    %v838 = vmul.f32 %v830, 0.2
    %v839 = vsel %vm831, %v827, %v835
    %v840 = vsel %vm832, %v828, %v836
    %v841 = vsel %vm833, %v829, %v837
    %v842 = vsel %vm834, %v830, %v838
    %v843 = vsel %vm43, %v839, -9e+15
    %v844 = vsel %vm44, %v840, -9e+15
    %v845 = vsel %vm45, %v841, -9e+15
    %v846 = vsel %vm46, %v842, -9e+15
    %v847 = vsel %vm67, %v843, -inf
    %848 = vmax.xlane.f32.xlu0 %v847
    %v849 = vpop.xlane.xlu0 %848
    %v850 = vsel %vm67, %v844, -inf
    %851 = vmax.xlane.f32.xlu0 %v850
    %v852 = vpop.xlane.xlu0 %851
    %v853 = vsel %vm67, %v845, -inf
    %854 = vmax.xlane.f32.xlu0 %v853
    %v855 = vpop.xlane.xlu0 %854
    %v856 = vsel %vm67, %v846, -inf
    %857 = vmax.xlane.f32.xlu0 %v856
    %v858 = vpop.xlane.xlu0 %857
    %v859 = vsub.f32 %v843, %v849
    %v860 = vsub.f32 %v844, %v852
    %v861 = vsub.f32 %v845, %v855
    %v862 = vsub.f32 %v846, %v858
    %v863 = vmul.f32 %v859, 1.442695
    %v864 = vpow.pop %v863
    %v865 = vmul.f32 %v860, 1.442695
    %v866 = vpow.pop %v865
    %v867 = vmul.f32 %v861, 1.442695
    %v868 = vpow.pop %v867
    %v869 = vmul.f32 %v862, 1.442695
    %v870 = vpow.pop %v869
    %v871 = vsel %vm67, %v864, 0.0
    %872 = vadd.xlane.f32.xlu0 %v871
    %v873 = vpop.xlane.xlu0 %872
    %v874 = vsel %vm67, %v866, 0.0
    %875 = vadd.xlane.f32.xlu0 %v874
    %v876 = vpop.xlane.xlu0 %875
    %v877 = vsel %vm67, %v868, 0.0
    %878 = vadd.xlane.f32.xlu0 %v877
    %v879 = vpop.xlane.xlu0 %878
    %v880 = vsel %vm67, %v870, 0.0
    %881 = vadd.xlane.f32.xlu0 %v880
    %v882 = vpop.xlane.xlu0 %881
    %v883 = vrcp.pop %v873
    %v884 = vmul.f32 %v864, %v883
    %v885 = vrcp.pop %v876
    %v886 = vmul.f32 %v866, %v885
    %v887 = vrcp.pop %v879
    %v888 = vmul.f32 %v868, %v887
    %v889 = vrcp.pop %v882
    %v890 = vmul.f32 %v870, %v889
    %v892 = vsel %vm67, %v884, 0
    %v895 = vsel %vm67, %v886, 0
    %v898 = vsel %vm67, %v888, 0
    %v901 = vsel %vm67, %v890, 0
    %903 = vmatprep.subr.mxu0 0.0
    %904 = vmatpush1.msra.mxu0 %v258
    %905 = vmatprep.subr.mxu0 0.0
    %906 = vmatpush1.msra.mxu0 %v263
    %907 = vmatprep.subr.mxu0 0.0
    %908 = vmatpush1.msra.mxu0 %v268
    %909 = vmatprep.subr.mxu0 0.0
    %910 = vmatpush1.msra.mxu0 %v273
    %911 = vmatprep.subr.mxu0 0.0
    %912 = vmatpush1.msra.mxu0 0.0
    %913 = vmatprep.subr.mxu0 0.0
    %914 = vmatpush1.msra.mxu0 0.0
    %915 = vmatprep.subr.mxu0 0.0
    %916 = vmatpush1.msra.mxu0 0.0
    %917 = vmatprep.subr.mxu0 0.0
    %918 = vmatpush1.msra.mxu0 0.0
    %919 = vmatprep.subr.mxu0 0.0
    %920 = vmatpush1.msra.mxu0 0.0
    %921 = vmatprep.subr.mxu0 0.0
    %922 = vmatpush1.msra.mxu0 0.0
    %923 = vmatprep.subr.mxu0 0.0
    %924 = vmatpush1.msra.mxu0 0.0
    %925 = vmatprep.subr.mxu0 0.0
    %926 = vmatpush1.msra.mxu0 0.0
    %927 = vmatprep.subr.mxu0 0.0
    %928 = vmatpush1.msra.mxu0 0.0
    %929 = vmatprep.subr.mxu0 0.0
    %930 = vmatpush1.msra.mxu0 0.0
    %931 = vmatprep.subr.mxu0 0.0
    %932 = vmatpush1.msra.mxu0 0.0
    %933 = vmatprep.subr.mxu0 0.0
    %934 = vmatpush1.msra.mxu0 0.0
    %935 = vmatprep.subr.mxu0 0.0
    %936 = vmatpush1.msra.mxu0 0.0
    %937 = vmatprep.subr.mxu0 0.0
    %938 = vmatpush1.msra.mxu0 0.0
    %939 = vmatprep.subr.mxu0 0.0
    %940 = vmatpush1.msra.mxu0 0.0
    %941 = vmatprep.subr.mxu0 0.0
    %942 = vmatpush1.msra.mxu0 0.0
    %943 = vmatprep.subr.mxu0 0.0
    %944 = vmatpush1.msra.mxu0 0.0
    %945 = vmatprep.subr.mxu0 0.0
    %946 = vmatpush1.msra.mxu0 0.0
    %947 = vmatprep.subr.mxu0 0.0
    %948 = vmatpush1.msra.mxu0 0.0
    %949 = vmatprep.subr.mxu0 0.0
    %950 = vmatpush1.msra.mxu0 0.0
    %951 = vmatprep.subr.mxu0 0.0
    %952 = vmatpush1.msra.mxu0 0.0
    %953 = vmatprep.subr.mxu0 0.0
    %954 = vmatpush1.msra.mxu0 0.0
    %955 = vmatprep.subr.mxu0 0.0
    %956 = vmatpush1.msra.mxu0 0.0
    %957 = vmatprep.subr.mxu0 0.0
    %958 = vmatpush1.msra.mxu0 0.0
    %959 = vmatprep.subr.mxu0 0.0
    %960 = vmatpush1.msra.mxu0 0.0
    %961 = vmatprep.subr.mxu0 0.0
    %962 = vmatpush1.msra.mxu0 0.0
    %963 = vmatprep.subr.mxu0 0.0
    %964 = vmatpush1.msra.mxu0 0.0
    %965 = vmatprep.subr.mxu0 0.0
    %966 = vmatpush1.msra.mxu0 0.0
    %967 = vmatprep.mubr.f32.mxu0 0.0
    %968 = vmatmul.mubr.f32.gmra.mrb[0].mxu0 %v892
    %v969 = vpop.f32.mrb[0].mxu0
    %v970 = vadd.f32 0.0, %v969
    %v971 = vpop.f32.mrb[0].mxu0
    %972 = vmatprep.mubr.f32.mxu0 0.0
    %973 = vmatmul.mubr.f32.gmra.mrb[0].mxu0 %v895
    %v974 = vpop.f32.mrb[0].mxu0
    %v975 = vadd.f32 0.0, %v974
    %v976 = vpop.f32.mrb[0].mxu0
    %977 = vmatprep.mubr.f32.mxu0 0.0
    %978 = vmatmul.mubr.f32.gmra.mrb[0].mxu0 %v898
    %v979 = vpop.f32.mrb[0].mxu0
    %v980 = vadd.f32 0.0, %v979
    %v981 = vpop.f32.mrb[0].mxu0
    %982 = vmatprep.mubr.f32.mxu0 0.0
    %983 = vmatmul.mubr.f32.gmra.mrb[0].mxu0 %v901
    %v984 = vpop.f32.mrb[0].mxu0
    %v985 = vadd.f32 0.0, %v984
    %v986 = vpop.f32.mrb[0].mxu0
    %987 = vdwg.mxu0
    %v988 = vlaneseq
    %v989 = vshrl.u32 %v988, 7
    %v990 = vsub.s32 2, %v989
    %v991 = vrot.slane %v178, %v990
    %v992 = vmul.f32 %v991, %v970
    %v993 = vmul.f32 %v991, %v975
    %v994 = vmul.f32 %v991, %v980
    %v995 = vmul.f32 %v991, %v985
    %v996 = vadd.f32 %v803, %v992
    %v997 = vadd.f32 %v804, %v993
    %v998 = vadd.f32 %v805, %v994
    %v999 = vadd.f32 %v806, %v995
    %1000 = vset.pattern.permute.xlu0 3
    %1001 = vperm.xlu0 %1000, %v355
    %v1002 = vpop.permute.xlu0 %1001
    %1004 = vset.pattern.permute.xlu0 3
    %1005 = vperm.xlu0 %1004, %v360
    %v1006 = vpop.permute.xlu0 %1005
    %1008 = vset.pattern.permute.xlu0 3
    %1009 = vperm.xlu0 %1008, %v365
    %v1010 = vpop.permute.xlu0 %1009
    %1012 = vset.pattern.permute.xlu0 3
    %1013 = vperm.xlu0 %1012, %v370
    %v1014 = vpop.permute.xlu0 %1013
    %v1016 = vlaneseq
    %v1017 = vshrl.u32 %v1016, 7
    %v1018 = vsub.s32 3, %v1017
    %v1019 = vrot.slane %v405, %v1018
    %v1020 = vadd.f32 %v1002, %v1019
    %v1021 = vadd.f32 %v1006, %v1019
    %v1022 = vadd.f32 %v1010, %v1019
    %v1023 = vadd.f32 %v1014, %v1019
    %vm1024 = vcmp.gt.f32.partialorder %v1020, 0.0
    %vm1025 = vcmp.gt.f32.partialorder %v1021, 0.0
    %vm1026 = vcmp.gt.f32.partialorder %v1022, 0.0
    %vm1027 = vcmp.gt.f32.partialorder %v1023, 0.0
    %v1028 = vmul.f32 %v1020, 0.2
    %v1029 = vmul.f32 %v1021, 0.2
    %v1030 = vmul.f32 %v1022, 0.2
    %v1031 = vmul.f32 %v1023, 0.2
    %v1032 = vsel %vm1024, %v1020, %v1028
    %v1033 = vsel %vm1025, %v1021, %v1029
    %v1034 = vsel %vm1026, %v1022, %v1030
    %v1035 = vsel %vm1027, %v1023, %v1031
    %v1036 = vsel %vm43, %v1032, -9e+15
    %v1037 = vsel %vm44, %v1033, -9e+15
    %v1038 = vsel %vm45, %v1034, -9e+15
    %v1039 = vsel %vm46, %v1035, -9e+15
    %v1040 = vsel %vm67, %v1036, -inf
    %1041 = vmax.xlane.f32.xlu0 %v1040
    %v1042 = vpop.xlane.xlu0 %1041
    %v1043 = vsel %vm67, %v1037, -inf
    %1044 = vmax.xlane.f32.xlu0 %v1043
    %v1045 = vpop.xlane.xlu0 %1044
    %v1046 = vsel %vm67, %v1038, -inf
    %1047 = vmax.xlane.f32.xlu0 %v1046
    %v1048 = vpop.xlane.xlu0 %1047
    %v1049 = vsel %vm67, %v1039, -inf
    %1050 = vmax.xlane.f32.xlu0 %v1049
    %v1051 = vpop.xlane.xlu0 %1050
    %v1052 = vsub.f32 %v1036, %v1042
    %v1053 = vsub.f32 %v1037, %v1045
    %v1054 = vsub.f32 %v1038, %v1048
    %v1055 = vsub.f32 %v1039, %v1051
    %v1056 = vmul.f32 %v1052, 1.442695
    %v1057 = vpow.pop %v1056
    %v1058 = vmul.f32 %v1053, 1.442695
    %v1059 = vpow.pop %v1058
    %v1060 = vmul.f32 %v1054, 1.442695
    %v1061 = vpow.pop %v1060
    %v1062 = vmul.f32 %v1055, 1.442695
    %v1063 = vpow.pop %v1062
    %v1064 = vsel %vm67, %v1057, 0.0
    %1065 = vadd.xlane.f32.xlu0 %v1064
    %v1066 = vpop.xlane.xlu0 %1065
    %v1067 = vsel %vm67, %v1059, 0.0
    %1068 = vadd.xlane.f32.xlu0 %v1067
    %v1069 = vpop.xlane.xlu0 %1068
    %v1070 = vsel %vm67, %v1061, 0.0
    %1071 = vadd.xlane.f32.xlu0 %v1070
    %v1072 = vpop.xlane.xlu0 %1071
    %v1073 = vsel %vm67, %v1063, 0.0
    %1074 = vadd.xlane.f32.xlu0 %v1073
    %v1075 = vpop.xlane.xlu0 %1074
    %v1076 = vrcp.pop %v1066
    %v1077 = vmul.f32 %v1057, %v1076
    %v1078 = vrcp.pop %v1069
    %v1079 = vmul.f32 %v1059, %v1078
    %v1080 = vrcp.pop %v1072
    %v1081 = vmul.f32 %v1061, %v1080
    %v1082 = vrcp.pop %v1075
    %v1083 = vmul.f32 %v1063, %v1082
    %v1085 = vsel %vm67, %v1077, 0
    %v1088 = vsel %vm67, %v1079, 0
    %v1091 = vsel %vm67, %v1081, 0
    %v1094 = vsel %vm67, %v1083, 0
    %1096 = vmatprep.subr.mxu0 0.0
    %1097 = vmatpush1.msra.mxu0 %v258
    %1098 = vmatprep.subr.mxu0 0.0
    %1099 = vmatpush1.msra.mxu0 %v263
    %1100 = vmatprep.subr.mxu0 0.0
    %1101 = vmatpush1.msra.mxu0 %v268
    %1102 = vmatprep.subr.mxu0 0.0
    %1103 = vmatpush1.msra.mxu0 %v273
    %1104 = vmatprep.subr.mxu0 0.0
    %1105 = vmatpush1.msra.mxu0 0.0
    %1106 = vmatprep.subr.mxu0 0.0
    %1107 = vmatpush1.msra.mxu0 0.0
    %1108 = vmatprep.subr.mxu0 0.0
    %1109 = vmatpush1.msra.mxu0 0.0
    %1110 = vmatprep.subr.mxu0 0.0
    %1111 = vmatpush1.msra.mxu0 0.0
    %1112 = vmatprep.subr.mxu0 0.0
    %1113 = vmatpush1.msra.mxu0 0.0
    %1114 = vmatprep.subr.mxu0 0.0
    %1115 = vmatpush1.msra.mxu0 0.0
    %1116 = vmatprep.subr.mxu0 0.0
    %1117 = vmatpush1.msra.mxu0 0.0
    %1118 = vmatprep.subr.mxu0 0.0
    %1119 = vmatpush1.msra.mxu0 0.0
    %1120 = vmatprep.subr.mxu0 0.0
    %1121 = vmatpush1.msra.mxu0 0.0
    %1122 = vmatprep.subr.mxu0 0.0
    %1123 = vmatpush1.msra.mxu0 0.0
    %1124 = vmatprep.subr.mxu0 0.0
    %1125 = vmatpush1.msra.mxu0 0.0
    %1126 = vmatprep.subr.mxu0 0.0
    %1127 = vmatpush1.msra.mxu0 0.0
    %1128 = vmatprep.subr.mxu0 0.0
    %1129 = vmatpush1.msra.mxu0 0.0
    %1130 = vmatprep.subr.mxu0 0.0
    %1131 = vmatpush1.msra.mxu0 0.0
    %1132 = vmatprep.subr.mxu0 0.0
    %1133 = vmatpush1.msra.mxu0 0.0
    %1134 = vmatprep.subr.mxu0 0.0
    %1135 = vmatpush1.msra.mxu0 0.0
    %1136 = vmatprep.subr.mxu0 0.0
    %1137 = vmatpush1.msra.mxu0 0.0
    %1138 = vmatprep.subr.mxu0 0.0
    %1139 = vmatpush1.msra.mxu0 0.0
    %1140 = vmatprep.subr.mxu0 0.0
    %1141 = vmatpush1.msra.mxu0 0.0
    %1142 = vmatprep.subr.mxu0 0.0
    %1143 = vmatpush1.msra.mxu0 0.0
    %1144 = vmatprep.subr.mxu0 0.0
    %1145 = vmatpush1.msra.mxu0 0.0
    %1146 = vmatprep.subr.mxu0 0.0
    %1147 = vmatpush1.msra.mxu0 0.0
    %1148 = vmatprep.subr.mxu0 0.0
    %1149 = vmatpush1.msra.mxu0 0.0
    %1150 = vmatprep.subr.mxu0 0.0
    %1151 = vmatpush1.msra.mxu0 0.0
    %1152 = vmatprep.subr.mxu0 0.0
    %1153 = vmatpush1.msra.mxu0 0.0
    %1154 = vmatprep.subr.mxu0 0.0
    %1155 = vmatpush1.msra.mxu0 0.0
    %1156 = vmatprep.subr.mxu0 0.0
    %1157 = vmatpush1.msra.mxu0 0.0
    %1158 = vmatprep.subr.mxu0 0.0
    %1159 = vmatpush1.msra.mxu0 0.0
    %1160 = vmatprep.mubr.f32.mxu0 0.0
    %1161 = vmatmul.mubr.f32.gmra.mrb[0].mxu0 %v1085
    %v1162 = vpop.f32.mrb[0].mxu0
    %v1163 = vadd.f32 0.0, %v1162
    %v1164 = vpop.f32.mrb[0].mxu0
    %1165 = vmatprep.mubr.f32.mxu0 0.0
    %1166 = vmatmul.mubr.f32.gmra.mrb[0].mxu0 %v1088
    %v1167 = vpop.f32.mrb[0].mxu0
    %v1168 = vadd.f32 0.0, %v1167
    %v1169 = vpop.f32.mrb[0].mxu0
    %1170 = vmatprep.mubr.f32.mxu0 0.0
    %1171 = vmatmul.mubr.f32.gmra.mrb[0].mxu0 %v1091
    %v1172 = vpop.f32.mrb[0].mxu0
    %v1173 = vadd.f32 0.0, %v1172
    %v1174 = vpop.f32.mrb[0].mxu0
    %1175 = vmatprep.mubr.f32.mxu0 0.0
    %1176 = vmatmul.mubr.f32.gmra.mrb[0].mxu0 %v1094
    %v1177 = vpop.f32.mrb[0].mxu0
    %v1178 = vadd.f32 0.0, %v1177
    %v1179 = vpop.f32.mrb[0].mxu0
    %1180 = vdwg.mxu0
    %v1181 = vlaneseq
    %v1182 = vshrl.u32 %v1181, 7
    %v1183 = vsub.s32 3, %v1182
    %v1184 = vrot.slane %v178, %v1183
    %v1185 = vmul.f32 %v1184, %v1163
    %v1186 = vmul.f32 %v1184, %v1168
    %v1187 = vmul.f32 %v1184, %v1173
    %v1188 = vmul.f32 %v1184, %v1178
    %v1189 = vadd.f32 %v996, %v1185
    %v1190 = vadd.f32 %v997, %v1186
    %v1191 = vadd.f32 %v998, %v1187
    %v1192 = vadd.f32 %v999, %v1188
    %vm1193 = vcmp.gt.f32.partialorder %v1189, 0.0
    %vm1194 = vcmp.gt.f32.partialorder %v1190, 0.0
    %vm1195 = vcmp.gt.f32.partialorder %v1191, 0.0
    %vm1196 = vcmp.gt.f32.partialorder %v1192, 0.0
    %v1197 = vmin.f32 %v1189, 0.0
    %v1198 = vmin.f32 %v1190, 0.0
    %v1199 = vmin.f32 %v1191, 0.0
    %v1200 = vmin.f32 %v1192, 0.0
    %v1201 = vmul.f32 %v1197, 1.442695
    %v1202 = vpow.pop %v1201
    %v1203 = vmul.f32 %v1198, 1.442695
    %v1204 = vpow.pop %v1203
    %v1205 = vmul.f32 %v1199, 1.442695
    %v1206 = vpow.pop %v1205
    %v1207 = vmul.f32 %v1200, 1.442695
    %v1208 = vpow.pop %v1207
    %v1209 = vsub.f32 %v1202, 1.0
    %v1210 = vsub.f32 %v1204, 1.0
    %v1211 = vsub.f32 %v1206, 1.0
    %v1212 = vsub.f32 %v1208, 1.0
    %v1213 = vsel %vm1193, %v1189, %v1209
    %v1214 = vsel %vm1194, %v1190, %v1210
    %v1215 = vsel %vm1195, %v1191, %v1211
    %v1216 = vsel %vm1196, %v1192, %v1212
    %v1217 = vld [vmem:[#allocation2 + $0x48] sm:$0x1]
    %v1218 = vlaneseq
    %v1219 = vshrl.u32 %v1218, 7
    %v1220 = vsub.s32 0, %v1219
    %v1221 = vrot.slane %v1217, %v1220
    %v1222 = vmul.f32 %v1213, %v1221
    %v1223 = vmul.f32 %v1214, %v1221
    %v1224 = vmul.f32 %v1215, %v1221
    %v1225 = vmul.f32 %v1216, %v1221
    %v1226 = vsel %vm67, %v1222, 0.0
    %1227 = vadd.xlane.f32.xlu0 %v1226
    %v1228 = vpop.xlane.xlu0 %1227
    %v1229 = vsel %vm67, %v1223, 0.0
    %1230 = vadd.xlane.f32.xlu0 %v1229
    %v1231 = vpop.xlane.xlu0 %1230
    %v1232 = vsel %vm67, %v1224, 0.0
    %1233 = vadd.xlane.f32.xlu0 %v1232
    %v1234 = vpop.xlane.xlu0 %1233
    %v1235 = vsel %vm67, %v1225, 0.0
    %1236 = vadd.xlane.f32.xlu0 %v1235
    %v1237 = vpop.xlane.xlu0 %1236
    %s1239 = vtos %v169
    %v1240 = vstv %s1239
    %v1242 = vadd.f32 %v1228, %v1240
    %v1243 = vadd.f32 %v1231, %v1240
    %v1244 = vadd.f32 %v1234, %v1240
    %v1245 = vadd.f32 %v1237, %v1240
    %v1246 = vld [vmem:[#allocation2 + $0x50] sm:$0xff]
    %v1247 = vld [vmem:[#allocation2 + $0x58] sm:$0xff]
    %v1248 = vld [vmem:[#allocation2 + $0x60] sm:$0xff]
    %v1249 = vld [vmem:[#allocation2 + $0x68] sm:$0xff]
    %v1250 = vld [vmem:[#allocation2 + $0x70] sm:$0xff]
    %v1251 = vld [vmem:[#allocation2 + $0x78] sm:$0xff]
    %v1252 = vld [vmem:[#allocation2 + $0x80] sm:$0xff]
    %v1253 = vld [vmem:[#allocation2 + $0x88] sm:$0xff]
    %v1254 = vld [vmem:[#allocation2 + $0x90] sm:$0xff]
    %v1255 = vld [vmem:[#allocation2 + $0x98] sm:$0xff]
    %v1256 = vld [vmem:[#allocation2 + $0xa0] sm:$0x7]
    %v1258 = vsel %vm67, %v1213, 0
    %v1261 = vsel %vm67, %v1214, 0
    %v1264 = vsel %vm67, %v1215, 0
    %v1267 = vsel %vm67, %v1216, 0
    %1269 = vmatprep.subr.mxu0 0.0
    %1270 = vmatpush1.msra.mxu0 %v1246
    %1271 = vmatprep.subr.mxu0 0.0
    %1272 = vmatpush1.msra.mxu0 %v1247
    %1273 = vmatprep.subr.mxu0 0.0
    %1274 = vmatpush1.msra.mxu0 %v1248
    %1275 = vmatprep.subr.mxu0 0.0
    %1276 = vmatpush1.msra.mxu0 %v1249
    %1277 = vmatprep.subr.mxu0 0.0
    %1278 = vmatpush1.msra.mxu0 0.0
    %1279 = vmatprep.subr.mxu0 0.0
    %1280 = vmatpush1.msra.mxu0 0.0
    %1281 = vmatprep.subr.mxu0 0.0
    %1282 = vmatpush1.msra.mxu0 0.0
    %1283 = vmatprep.subr.mxu0 0.0
    %1284 = vmatpush1.msra.mxu0 0.0
    %1285 = vmatprep.subr.mxu0 0.0
    %1286 = vmatpush1.msra.mxu0 0.0
    %1287 = vmatprep.subr.mxu0 0.0
    %1288 = vmatpush1.msra.mxu0 0.0
    %1289 = vmatprep.subr.mxu0 0.0
    %1290 = vmatpush1.msra.mxu0 0.0
    %1291 = vmatprep.subr.mxu0 0.0
    %1292 = vmatpush1.msra.mxu0 0.0
    %1293 = vmatprep.subr.mxu0 0.0
    %1294 = vmatpush1.msra.mxu0 0.0
    %1295 = vmatprep.subr.mxu0 0.0
    %1296 = vmatpush1.msra.mxu0 0.0
    %1297 = vmatprep.subr.mxu0 0.0
    %1298 = vmatpush1.msra.mxu0 0.0
    %1299 = vmatprep.subr.mxu0 0.0
    %1300 = vmatpush1.msra.mxu0 0.0
    %1301 = vmatprep.subr.mxu0 0.0
    %1302 = vmatpush1.msra.mxu0 0.0
    %1303 = vmatprep.subr.mxu0 0.0
    %1304 = vmatpush1.msra.mxu0 0.0
    %1305 = vmatprep.subr.mxu0 0.0
    %1306 = vmatpush1.msra.mxu0 0.0
    %1307 = vmatprep.subr.mxu0 0.0
    %1308 = vmatpush1.msra.mxu0 0.0
    %1309 = vmatprep.subr.mxu0 0.0
    %1310 = vmatpush1.msra.mxu0 0.0
    %1311 = vmatprep.subr.mxu0 0.0
    %1312 = vmatpush1.msra.mxu0 0.0
    %1313 = vmatprep.subr.mxu0 0.0
    %1314 = vmatpush1.msra.mxu0 0.0
    %1315 = vmatprep.subr.mxu0 0.0
    %1316 = vmatpush1.msra.mxu0 0.0
    %1317 = vmatprep.subr.mxu0 0.0
    %1318 = vmatpush1.msra.mxu0 0.0
    %1319 = vmatprep.subr.mxu0 0.0
    %1320 = vmatpush1.msra.mxu0 0.0
    %1321 = vmatprep.subr.mxu0 0.0
    %1322 = vmatpush1.msra.mxu0 0.0
    %1323 = vmatprep.subr.mxu0 0.0
    %1324 = vmatpush1.msra.mxu0 0.0
    %1325 = vmatprep.subr.mxu0 0.0
    %1326 = vmatpush1.msra.mxu0 0.0
    %1327 = vmatprep.subr.mxu0 0.0
    %1328 = vmatpush1.msra.mxu0 0.0
    %1329 = vmatprep.subr.mxu0 0.0
    %1330 = vmatpush1.msra.mxu0 0.0
    %1331 = vmatprep.subr.mxu0 0.0
    %1332 = vmatpush1.msra.mxu0 0.0
    %1333 = vmatprep.mubr.f32.mxu0 0.0
    %1334 = vmatmul.mubr.f32.gmra.mrb[0].mxu0 %v1258
    %v1335 = vpop.f32.mrb[0].mxu0
    %v1336 = vadd.f32 0.0, %v1335
    %v1337 = vpop.f32.mrb[0].mxu0
    %1338 = vmatprep.mubr.f32.mxu0 0.0
    %1339 = vmatmul.mubr.f32.gmra.mrb[0].mxu0 %v1261
    %v1340 = vpop.f32.mrb[0].mxu0
    %v1341 = vadd.f32 0.0, %v1340
    %v1342 = vpop.f32.mrb[0].mxu0
    %1343 = vmatprep.mubr.f32.mxu0 0.0
    %1344 = vmatmul.mubr.f32.gmra.mrb[0].mxu0 %v1264
    %v1345 = vpop.f32.mrb[0].mxu0
    %v1346 = vadd.f32 0.0, %v1345
    %v1347 = vpop.f32.mrb[0].mxu0
    %1348 = vmatprep.mubr.f32.mxu0 0.0
    %1349 = vmatmul.mubr.f32.gmra.mrb[0].mxu0 %v1267
    %v1350 = vpop.f32.mrb[0].mxu0
    %v1351 = vadd.f32 0.0, %v1350
    %v1352 = vpop.f32.mrb[0].mxu0
    %1353 = vdwg.mxu0
    %vm1354 = vcmask 392192
    %v1356 = vsel %vm1354, %v1336, 0
    %v1359 = vsel %vm1354, %v1341, 0
    %v1362 = vsel %vm1354, %v1346, 0
    %v1365 = vsel %vm1354, %v1351, 0
    %1367 = vmatprep.subr.mxu0 0.0
    %1368 = vmatpush1.msra.mxu0 %v1250
    %1369 = vmatprep.subr.mxu0 0.0
    %1370 = vmatpush1.msra.mxu0 %v1251
    %1371 = vmatprep.subr.mxu0 0.0
    %1372 = vmatpush1.msra.mxu0 %v1252
    %1373 = vmatprep.subr.mxu0 0.0
    %1374 = vmatpush1.msra.mxu0 %v1253
    %1375 = vmatprep.subr.mxu0 0.0
    %1376 = vmatpush1.msra.mxu0 %v1254
    %1377 = vmatprep.subr.mxu0 0.0
    %1378 = vmatpush1.msra.mxu0 %v1255
    %1379 = vmatprep.subr.mxu0 0.0
    %1380 = vmatpush1.msra.mxu0 0.0
    %1381 = vmatprep.subr.mxu0 0.0
    %1382 = vmatpush1.msra.mxu0 0.0
    %1383 = vmatprep.subr.mxu0 0.0
    %1384 = vmatpush1.msra.mxu0 0.0
    %1385 = vmatprep.subr.mxu0 0.0
    %1386 = vmatpush1.msra.mxu0 0.0
    %1387 = vmatprep.subr.mxu0 0.0
    %1388 = vmatpush1.msra.mxu0 0.0
    %1389 = vmatprep.subr.mxu0 0.0
    %1390 = vmatpush1.msra.mxu0 0.0
    %1391 = vmatprep.subr.mxu0 0.0
    %1392 = vmatpush1.msra.mxu0 0.0
    %1393 = vmatprep.subr.mxu0 0.0
    %1394 = vmatpush1.msra.mxu0 0.0
    %1395 = vmatprep.subr.mxu0 0.0
    %1396 = vmatpush1.msra.mxu0 0.0
    %1397 = vmatprep.subr.mxu0 0.0
    %1398 = vmatpush1.msra.mxu0 0.0
    %1399 = vmatprep.subr.mxu0 0.0
    %1400 = vmatpush1.msra.mxu0 0.0
    %1401 = vmatprep.subr.mxu0 0.0
    %1402 = vmatpush1.msra.mxu0 0.0
    %1403 = vmatprep.subr.mxu0 0.0
    %1404 = vmatpush1.msra.mxu0 0.0
    %1405 = vmatprep.subr.mxu0 0.0
    %1406 = vmatpush1.msra.mxu0 0.0
    %1407 = vmatprep.subr.mxu0 0.0
    %1408 = vmatpush1.msra.mxu0 0.0
    %1409 = vmatprep.subr.mxu0 0.0
    %1410 = vmatpush1.msra.mxu0 0.0
    %1411 = vmatprep.subr.mxu0 0.0
    %1412 = vmatpush1.msra.mxu0 0.0
    %1413 = vmatprep.subr.mxu0 0.0
    %1414 = vmatpush1.msra.mxu0 0.0
    %1415 = vmatprep.subr.mxu0 0.0
    %1416 = vmatpush1.msra.mxu0 0.0
    %1417 = vmatprep.subr.mxu0 0.0
    %1418 = vmatpush1.msra.mxu0 0.0
    %1419 = vmatprep.subr.mxu0 0.0
    %1420 = vmatpush1.msra.mxu0 0.0
    %1421 = vmatprep.subr.mxu0 0.0
    %1422 = vmatpush1.msra.mxu0 0.0
    %1423 = vmatprep.subr.mxu0 0.0
    %1424 = vmatpush1.msra.mxu0 0.0
    %1425 = vmatprep.subr.mxu0 0.0
    %1426 = vmatpush1.msra.mxu0 0.0
    %1427 = vmatprep.subr.mxu0 0.0
    %1428 = vmatpush1.msra.mxu0 0.0
    %1429 = vmatprep.subr.mxu0 0.0
    %1430 = vmatpush1.msra.mxu0 0.0
    %1431 = vmatprep.mubr.f32.mxu0 0.0
    %1432 = vmatmul.mubr.f32.gmra.mrb[0].mxu0 %v1356
    %v1433 = vpop.f32.mrb[0].mxu0
    %v1434 = vadd.f32 0.0, %v1433
    %v1435 = vpop.f32.mrb[0].mxu0
    %1436 = vmatprep.mubr.f32.mxu0 0.0
    %1437 = vmatmul.mubr.f32.gmra.mrb[0].mxu0 %v1359
    %v1438 = vpop.f32.mrb[0].mxu0
    %v1439 = vadd.f32 0.0, %v1438
    %v1440 = vpop.f32.mrb[0].mxu0
    %1441 = vmatprep.mubr.f32.mxu0 0.0
    %1442 = vmatmul.mubr.f32.gmra.mrb[0].mxu0 %v1362
    %v1443 = vpop.f32.mrb[0].mxu0
    %v1444 = vadd.f32 0.0, %v1443
    %v1445 = vpop.f32.mrb[0].mxu0
    %1446 = vmatprep.mubr.f32.mxu0 0.0
    %1447 = vmatmul.mubr.f32.gmra.mrb[0].mxu0 %v1365
    %v1448 = vpop.f32.mrb[0].mxu0
    %v1449 = vadd.f32 0.0, %v1448
    %v1450 = vpop.f32.mrb[0].mxu0
    %1451 = vdwg.mxu0
    %1456 = vrot.lane.b32.xlu0 %v1434, 120
    %v1457 = vpop.permute.xlu0 %1456
    %1458 = vrot.lane.b32.xlu0 %v1439, 120
    %v1459 = vpop.permute.xlu0 %1458
    %1460 = vrot.lane.b32.xlu0 %v1444, 120
    %v1461 = vpop.permute.xlu0 %1460
    %1462 = vrot.lane.b32.xlu0 %v1449, 120
    %v1463 = vpop.permute.xlu0 %1462
    %1468 = vxpose.xlu0.b32.start [1/16] %v1457, 128
    %1469 = vxpose.xlu0.b32.cont [2/16] %v1459, 128
    %1470 = vxpose.xlu0.b32.cont [3/16] %v1461, 128
    %1471 = vxpose.xlu0.b32.cont [4/16] %v1463, 128
    %1472 = vxpose.xlu0.b32.cont [5/16] 0.0, 128
    %1473 = vxpose.xlu0.b32.cont [6/16] 0.0, 128
    %1474 = vxpose.xlu0.b32.cont [7/16] 0.0, 128
    %1475 = vxpose.xlu0.b32.cont [8/16] 0.0, 128
    %1476 = vxpose.xlu0.b32.cont [9/16] 0.0, 128
    %1477 = vxpose.xlu0.b32.cont [10/16] 0.0, 128
    %1478 = vxpose.xlu0.b32.cont [11/16] 0.0, 128
    %1479 = vxpose.xlu0.b32.cont [12/16] 0.0, 128
    %1480 = vxpose.xlu0.b32.cont [13/16] 0.0, 128
    %1481 = vxpose.xlu0.b32.cont [14/16] 0.0, 128
    %1482 = vxpose.xlu0.b32.cont [15/16] 0.0, 128
    %1483 = vxpose.xlu0.b32.end [16/16] 0.0, 128
    %v1484 = vpop.trf.xlu0
    %v1485 = vpop.trf.xlu0
    %v1486 = vpop.trf.xlu0
    %v1487 = vpop.trf.xlu0
    %v1488 = vpop.trf.xlu0
    %v1489 = vpop.trf.xlu0
    %v1490 = vpop.trf.xlu0
    %v1491 = vpop.trf.xlu0
    %v1492 = vpop.trf.xlu0
    %v1493 = vpop.trf.xlu0
    %v1494 = vpop.trf.xlu0
    %v1495 = vpop.trf.xlu0
    %v1496 = vpop.trf.xlu0
    %v1497 = vpop.trf.xlu0
    %v1498 = vpop.trf.xlu0
    %v1499 = vpop.trf.xlu0
    %1500 = vset.pattern.permute.xlu0 0
    %1501 = vperm.xlu0 %1500, %v1434
    %v1502 = vpop.permute.xlu0 %1501
    %1504 = vset.pattern.permute.xlu0 0
    %1505 = vperm.xlu0 %1504, %v1439
    %v1506 = vpop.permute.xlu0 %1505
    %1508 = vset.pattern.permute.xlu0 0
    %1509 = vperm.xlu0 %1508, %v1444
    %v1510 = vpop.permute.xlu0 %1509
    %1512 = vset.pattern.permute.xlu0 0
    %1513 = vperm.xlu0 %1512, %v1449
    %v1514 = vpop.permute.xlu0 %1513
    %v1516 = vlaneseq
    %v1517 = vshrl.u32 %v1516, 7
    %v1518 = vsub.s32 0, %v1517
    %v1519 = vrot.slane %v1484, %v1518
    %v1520 = vadd.f32 %v1502, %v1519
    %v1521 = vadd.f32 %v1506, %v1519
    %v1522 = vadd.f32 %v1510, %v1519
    %v1523 = vadd.f32 %v1514, %v1519
    %vm1524 = vcmp.gt.f32.partialorder %v1520, 0.0
    %vm1525 = vcmp.gt.f32.partialorder %v1521, 0.0
    %vm1526 = vcmp.gt.f32.partialorder %v1522, 0.0
    %vm1527 = vcmp.gt.f32.partialorder %v1523, 0.0
    %v1528 = vmul.f32 %v1520, 0.2
    %v1529 = vmul.f32 %v1521, 0.2
    %v1530 = vmul.f32 %v1522, 0.2
    %v1531 = vmul.f32 %v1523, 0.2
    %v1532 = vsel %vm1524, %v1520, %v1528
    %v1533 = vsel %vm1525, %v1521, %v1529
    %v1534 = vsel %vm1526, %v1522, %v1530
    %v1535 = vsel %vm1527, %v1523, %v1531
    %v1536 = vsel %vm43, %v1532, -9e+15
    %v1537 = vsel %vm44, %v1533, -9e+15
    %v1538 = vsel %vm45, %v1534, -9e+15
    %v1539 = vsel %vm46, %v1535, -9e+15
    %v1540 = vsel %vm67, %v1536, -inf
    %1541 = vmax.xlane.f32.xlu0 %v1540
    %v1542 = vpop.xlane.xlu0 %1541
    %v1543 = vsel %vm67, %v1537, -inf
    %1544 = vmax.xlane.f32.xlu0 %v1543
    %v1545 = vpop.xlane.xlu0 %1544
    %v1546 = vsel %vm67, %v1538, -inf
    %1547 = vmax.xlane.f32.xlu0 %v1546
    %v1548 = vpop.xlane.xlu0 %1547
    %v1549 = vsel %vm67, %v1539, -inf
    %1550 = vmax.xlane.f32.xlu0 %v1549
    %v1551 = vpop.xlane.xlu0 %1550
    %v1552 = vsub.f32 %v1536, %v1542
    %v1553 = vsub.f32 %v1537, %v1545
    %v1554 = vsub.f32 %v1538, %v1548
    %v1555 = vsub.f32 %v1539, %v1551
    %v1556 = vmul.f32 %v1552, 1.442695
    %v1557 = vpow.pop %v1556
    %v1558 = vmul.f32 %v1553, 1.442695
    %v1559 = vpow.pop %v1558
    %v1560 = vmul.f32 %v1554, 1.442695
    %v1561 = vpow.pop %v1560
    %v1562 = vmul.f32 %v1555, 1.442695
    %v1563 = vpow.pop %v1562
    %v1564 = vsel %vm67, %v1557, 0.0
    %1565 = vadd.xlane.f32.xlu0 %v1564
    %v1566 = vpop.xlane.xlu0 %1565
    %v1567 = vsel %vm67, %v1559, 0.0
    %1568 = vadd.xlane.f32.xlu0 %v1567
    %v1569 = vpop.xlane.xlu0 %1568
    %v1570 = vsel %vm67, %v1561, 0.0
    %1571 = vadd.xlane.f32.xlu0 %v1570
    %v1572 = vpop.xlane.xlu0 %1571
    %v1573 = vsel %vm67, %v1563, 0.0
    %1574 = vadd.xlane.f32.xlu0 %v1573
    %v1575 = vpop.xlane.xlu0 %1574
    %v1576 = vrcp.pop %v1566
    %v1577 = vmul.f32 %v1557, %v1576
    %v1578 = vrcp.pop %v1569
    %v1579 = vmul.f32 %v1559, %v1578
    %v1580 = vrcp.pop %v1572
    %v1581 = vmul.f32 %v1561, %v1580
    %v1582 = vrcp.pop %v1575
    %v1583 = vmul.f32 %v1563, %v1582
    %v1585 = vsel %vm67, %v1577, 0
    %v1588 = vsel %vm67, %v1579, 0
    %v1591 = vsel %vm67, %v1581, 0
    %v1594 = vsel %vm67, %v1583, 0
    %1596 = vmatprep.subr.mxu0 0.0
    %1597 = vmatpush1.msra.mxu0 %v1336
    %1598 = vmatprep.subr.mxu0 0.0
    %1599 = vmatpush1.msra.mxu0 %v1341
    %1600 = vmatprep.subr.mxu0 0.0
    %1601 = vmatpush1.msra.mxu0 %v1346
    %1602 = vmatprep.subr.mxu0 0.0
    %1603 = vmatpush1.msra.mxu0 %v1351
    %1604 = vmatprep.subr.mxu0 0.0
    %1605 = vmatpush1.msra.mxu0 0.0
    %1606 = vmatprep.subr.mxu0 0.0
    %1607 = vmatpush1.msra.mxu0 0.0
    %1608 = vmatprep.subr.mxu0 0.0
    %1609 = vmatpush1.msra.mxu0 0.0
    %1610 = vmatprep.subr.mxu0 0.0
    %1611 = vmatpush1.msra.mxu0 0.0
    %1612 = vmatprep.subr.mxu0 0.0
    %1613 = vmatpush1.msra.mxu0 0.0
    %1614 = vmatprep.subr.mxu0 0.0
    %1615 = vmatpush1.msra.mxu0 0.0
    %1616 = vmatprep.subr.mxu0 0.0
    %1617 = vmatpush1.msra.mxu0 0.0
    %1618 = vmatprep.subr.mxu0 0.0
    %1619 = vmatpush1.msra.mxu0 0.0
    %1620 = vmatprep.subr.mxu0 0.0
    %1621 = vmatpush1.msra.mxu0 0.0
    %1622 = vmatprep.subr.mxu0 0.0
    %1623 = vmatpush1.msra.mxu0 0.0
    %1624 = vmatprep.subr.mxu0 0.0
    %1625 = vmatpush1.msra.mxu0 0.0
    %1626 = vmatprep.subr.mxu0 0.0
    %1627 = vmatpush1.msra.mxu0 0.0
    %1628 = vmatprep.subr.mxu0 0.0
    %1629 = vmatpush1.msra.mxu0 0.0
    %1630 = vmatprep.subr.mxu0 0.0
    %1631 = vmatpush1.msra.mxu0 0.0
    %1632 = vmatprep.subr.mxu0 0.0
    %1633 = vmatpush1.msra.mxu0 0.0
    %1634 = vmatprep.subr.mxu0 0.0
    %1635 = vmatpush1.msra.mxu0 0.0
    %1636 = vmatprep.subr.mxu0 0.0
    %1637 = vmatpush1.msra.mxu0 0.0
    %1638 = vmatprep.subr.mxu0 0.0
    %1639 = vmatpush1.msra.mxu0 0.0
    %1640 = vmatprep.subr.mxu0 0.0
    %1641 = vmatpush1.msra.mxu0 0.0
    %1642 = vmatprep.subr.mxu0 0.0
    %1643 = vmatpush1.msra.mxu0 0.0
    %1644 = vmatprep.subr.mxu0 0.0
    %1645 = vmatpush1.msra.mxu0 0.0
    %1646 = vmatprep.subr.mxu0 0.0
    %1647 = vmatpush1.msra.mxu0 0.0
    %1648 = vmatprep.subr.mxu0 0.0
    %1649 = vmatpush1.msra.mxu0 0.0
    %1650 = vmatprep.subr.mxu0 0.0
    %1651 = vmatpush1.msra.mxu0 0.0
    %1652 = vmatprep.subr.mxu0 0.0
    %1653 = vmatpush1.msra.mxu0 0.0
    %1654 = vmatprep.subr.mxu0 0.0
    %1655 = vmatpush1.msra.mxu0 0.0
    %1656 = vmatprep.subr.mxu0 0.0
    %1657 = vmatpush1.msra.mxu0 0.0
    %1658 = vmatprep.subr.mxu0 0.0
    %1659 = vmatpush1.msra.mxu0 0.0
    %1660 = vmatprep.mubr.f32.mxu0 0.0
    %1661 = vmatmul.mubr.f32.gmra.mrb[0].mxu0 %v1585
    %v1662 = vpop.f32.mrb[0].mxu0
    %v1663 = vadd.f32 0.0, %v1662
    %v1664 = vpop.f32.mrb[0].mxu0
    %1665 = vmatprep.mubr.f32.mxu0 0.0
    %1666 = vmatmul.mubr.f32.gmra.mrb[0].mxu0 %v1588
    %v1667 = vpop.f32.mrb[0].mxu0
    %v1668 = vadd.f32 0.0, %v1667
    %v1669 = vpop.f32.mrb[0].mxu0
    %1670 = vmatprep.mubr.f32.mxu0 0.0
    %1671 = vmatmul.mubr.f32.gmra.mrb[0].mxu0 %v1591
    %v1672 = vpop.f32.mrb[0].mxu0
    %v1673 = vadd.f32 0.0, %v1672
    %v1674 = vpop.f32.mrb[0].mxu0
    %1675 = vmatprep.mubr.f32.mxu0 0.0
    %1676 = vmatmul.mubr.f32.gmra.mrb[0].mxu0 %v1594
    %v1677 = vpop.f32.mrb[0].mxu0
    %v1678 = vadd.f32 0.0, %v1677
    %v1679 = vpop.f32.mrb[0].mxu0
    %1680 = vdwg.mxu0
    %v1681 = vlaneseq
    %v1682 = vshrl.u32 %v1681, 7
    %v1683 = vsub.s32 0, %v1682
    %v1684 = vrot.slane %v1256, %v1683
    %v1685 = vmul.f32 %v1684, %v1663
    %v1686 = vmul.f32 %v1684, %v1668
    %v1687 = vmul.f32 %v1684, %v1673
    %v1688 = vmul.f32 %v1684, %v1678
    %v1689 = vadd.f32 %v1685, 0.0
    %v1690 = vadd.f32 %v1686, 0.0
    %v1691 = vadd.f32 %v1687, 0.0
    %v1692 = vadd.f32 %v1688, 0.0
    %1693 = vset.pattern.permute.xlu0 1
    %1694 = vperm.xlu0 %1693, %v1434
    %v1695 = vpop.permute.xlu0 %1694
    %1697 = vset.pattern.permute.xlu0 1
    %1698 = vperm.xlu0 %1697, %v1439
    %v1699 = vpop.permute.xlu0 %1698
    %1701 = vset.pattern.permute.xlu0 1
    %1702 = vperm.xlu0 %1701, %v1444
    %v1703 = vpop.permute.xlu0 %1702
    %1705 = vset.pattern.permute.xlu0 1
    %1706 = vperm.xlu0 %1705, %v1449
    %v1707 = vpop.permute.xlu0 %1706
    %v1709 = vlaneseq
    %v1710 = vshrl.u32 %v1709, 7
    %v1711 = vsub.s32 1, %v1710
    %v1712 = vrot.slane %v1484, %v1711
    %v1713 = vadd.f32 %v1695, %v1712
    %v1714 = vadd.f32 %v1699, %v1712
    %v1715 = vadd.f32 %v1703, %v1712
    %v1716 = vadd.f32 %v1707, %v1712
    %vm1717 = vcmp.gt.f32.partialorder %v1713, 0.0
    %vm1718 = vcmp.gt.f32.partialorder %v1714, 0.0
    %vm1719 = vcmp.gt.f32.partialorder %v1715, 0.0
    %vm1720 = vcmp.gt.f32.partialorder %v1716, 0.0
    %v1721 = vmul.f32 %v1713, 0.2
    %v1722 = vmul.f32 %v1714, 0.2
    %v1723 = vmul.f32 %v1715, 0.2
    %v1724 = vmul.f32 %v1716, 0.2
    %v1725 = vsel %vm1717, %v1713, %v1721
    %v1726 = vsel %vm1718, %v1714, %v1722
    %v1727 = vsel %vm1719, %v1715, %v1723
    %v1728 = vsel %vm1720, %v1716, %v1724
    %v1729 = vsel %vm43, %v1725, -9e+15
    %v1730 = vsel %vm44, %v1726, -9e+15
    %v1731 = vsel %vm45, %v1727, -9e+15
    %v1732 = vsel %vm46, %v1728, -9e+15
    %v1733 = vsel %vm67, %v1729, -inf
    %1734 = vmax.xlane.f32.xlu0 %v1733
    %v1735 = vpop.xlane.xlu0 %1734
    %v1736 = vsel %vm67, %v1730, -inf
    %1737 = vmax.xlane.f32.xlu0 %v1736
    %v1738 = vpop.xlane.xlu0 %1737
    %v1739 = vsel %vm67, %v1731, -inf
    %1740 = vmax.xlane.f32.xlu0 %v1739
    %v1741 = vpop.xlane.xlu0 %1740
    %v1742 = vsel %vm67, %v1732, -inf
    %1743 = vmax.xlane.f32.xlu0 %v1742
    %v1744 = vpop.xlane.xlu0 %1743
    %v1745 = vsub.f32 %v1729, %v1735
    %v1746 = vsub.f32 %v1730, %v1738
    %v1747 = vsub.f32 %v1731, %v1741
    %v1748 = vsub.f32 %v1732, %v1744
    %v1749 = vmul.f32 %v1745, 1.442695
    %v1750 = vpow.pop %v1749
    %v1751 = vmul.f32 %v1746, 1.442695
    %v1752 = vpow.pop %v1751
    %v1753 = vmul.f32 %v1747, 1.442695
    %v1754 = vpow.pop %v1753
    %v1755 = vmul.f32 %v1748, 1.442695
    %v1756 = vpow.pop %v1755
    %v1757 = vsel %vm67, %v1750, 0.0
    %1758 = vadd.xlane.f32.xlu0 %v1757
    %v1759 = vpop.xlane.xlu0 %1758
    %v1760 = vsel %vm67, %v1752, 0.0
    %1761 = vadd.xlane.f32.xlu0 %v1760
    %v1762 = vpop.xlane.xlu0 %1761
    %v1763 = vsel %vm67, %v1754, 0.0
    %1764 = vadd.xlane.f32.xlu0 %v1763
    %v1765 = vpop.xlane.xlu0 %1764
    %v1766 = vsel %vm67, %v1756, 0.0
    %1767 = vadd.xlane.f32.xlu0 %v1766
    %v1768 = vpop.xlane.xlu0 %1767
    %v1769 = vrcp.pop %v1759
    %v1770 = vmul.f32 %v1750, %v1769
    %v1771 = vrcp.pop %v1762
    %v1772 = vmul.f32 %v1752, %v1771
    %v1773 = vrcp.pop %v1765
    %v1774 = vmul.f32 %v1754, %v1773
    %v1775 = vrcp.pop %v1768
    %v1776 = vmul.f32 %v1756, %v1775
    %v1778 = vsel %vm67, %v1770, 0
    %v1781 = vsel %vm67, %v1772, 0
    %v1784 = vsel %vm67, %v1774, 0
    %v1787 = vsel %vm67, %v1776, 0
    %1789 = vmatprep.subr.mxu0 0.0
    %1790 = vmatpush1.msra.mxu0 %v1336
    %1791 = vmatprep.subr.mxu0 0.0
    %1792 = vmatpush1.msra.mxu0 %v1341
    %1793 = vmatprep.subr.mxu0 0.0
    %1794 = vmatpush1.msra.mxu0 %v1346
    %1795 = vmatprep.subr.mxu0 0.0
    %1796 = vmatpush1.msra.mxu0 %v1351
    %1797 = vmatprep.subr.mxu0 0.0
    %1798 = vmatpush1.msra.mxu0 0.0
    %1799 = vmatprep.subr.mxu0 0.0
    %1800 = vmatpush1.msra.mxu0 0.0
    %1801 = vmatprep.subr.mxu0 0.0
    %1802 = vmatpush1.msra.mxu0 0.0
    %1803 = vmatprep.subr.mxu0 0.0
    %1804 = vmatpush1.msra.mxu0 0.0
    %1805 = vmatprep.subr.mxu0 0.0
    %1806 = vmatpush1.msra.mxu0 0.0
    %1807 = vmatprep.subr.mxu0 0.0
    %1808 = vmatpush1.msra.mxu0 0.0
    %1809 = vmatprep.subr.mxu0 0.0
    %1810 = vmatpush1.msra.mxu0 0.0
    %1811 = vmatprep.subr.mxu0 0.0
    %1812 = vmatpush1.msra.mxu0 0.0
    %1813 = vmatprep.subr.mxu0 0.0
    %1814 = vmatpush1.msra.mxu0 0.0
    %1815 = vmatprep.subr.mxu0 0.0
    %1816 = vmatpush1.msra.mxu0 0.0
    %1817 = vmatprep.subr.mxu0 0.0
    %1818 = vmatpush1.msra.mxu0 0.0
    %1819 = vmatprep.subr.mxu0 0.0
    %1820 = vmatpush1.msra.mxu0 0.0
    %1821 = vmatprep.subr.mxu0 0.0
    %1822 = vmatpush1.msra.mxu0 0.0
    %1823 = vmatprep.subr.mxu0 0.0
    %1824 = vmatpush1.msra.mxu0 0.0
    %1825 = vmatprep.subr.mxu0 0.0
    %1826 = vmatpush1.msra.mxu0 0.0
    %1827 = vmatprep.subr.mxu0 0.0
    %1828 = vmatpush1.msra.mxu0 0.0
    %1829 = vmatprep.subr.mxu0 0.0
    %1830 = vmatpush1.msra.mxu0 0.0
    %1831 = vmatprep.subr.mxu0 0.0
    %1832 = vmatpush1.msra.mxu0 0.0
    %1833 = vmatprep.subr.mxu0 0.0
    %1834 = vmatpush1.msra.mxu0 0.0
    %1835 = vmatprep.subr.mxu0 0.0
    %1836 = vmatpush1.msra.mxu0 0.0
    %1837 = vmatprep.subr.mxu0 0.0
    %1838 = vmatpush1.msra.mxu0 0.0
    %1839 = vmatprep.subr.mxu0 0.0
    %1840 = vmatpush1.msra.mxu0 0.0
    %1841 = vmatprep.subr.mxu0 0.0
    %1842 = vmatpush1.msra.mxu0 0.0
    %1843 = vmatprep.subr.mxu0 0.0
    %1844 = vmatpush1.msra.mxu0 0.0
    %1845 = vmatprep.subr.mxu0 0.0
    %1846 = vmatpush1.msra.mxu0 0.0
    %1847 = vmatprep.subr.mxu0 0.0
    %1848 = vmatpush1.msra.mxu0 0.0
    %1849 = vmatprep.subr.mxu0 0.0
    %1850 = vmatpush1.msra.mxu0 0.0
    %1851 = vmatprep.subr.mxu0 0.0
    %1852 = vmatpush1.msra.mxu0 0.0
    %1853 = vmatprep.mubr.f32.mxu0 0.0
    %1854 = vmatmul.mubr.f32.gmra.mrb[0].mxu0 %v1778
    %v1855 = vpop.f32.mrb[0].mxu0
    %v1856 = vadd.f32 0.0, %v1855
    %v1857 = vpop.f32.mrb[0].mxu0
    %1858 = vmatprep.mubr.f32.mxu0 0.0
    %1859 = vmatmul.mubr.f32.gmra.mrb[0].mxu0 %v1781
    %v1860 = vpop.f32.mrb[0].mxu0
    %v1861 = vadd.f32 0.0, %v1860
    %v1862 = vpop.f32.mrb[0].mxu0
    %1863 = vmatprep.mubr.f32.mxu0 0.0
    %1864 = vmatmul.mubr.f32.gmra.mrb[0].mxu0 %v1784
    %v1865 = vpop.f32.mrb[0].mxu0
    %v1866 = vadd.f32 0.0, %v1865
    %v1867 = vpop.f32.mrb[0].mxu0
    %1868 = vmatprep.mubr.f32.mxu0 0.0
    %1869 = vmatmul.mubr.f32.gmra.mrb[0].mxu0 %v1787
    %v1870 = vpop.f32.mrb[0].mxu0
    %v1871 = vadd.f32 0.0, %v1870
    %v1872 = vpop.f32.mrb[0].mxu0
    %1873 = vdwg.mxu0
    %v1874 = vlaneseq
    %v1875 = vshrl.u32 %v1874, 7
    %v1876 = vsub.s32 1, %v1875
    %v1877 = vrot.slane %v1256, %v1876
    %v1878 = vmul.f32 %v1877, %v1856
    %v1879 = vmul.f32 %v1877, %v1861
    %v1880 = vmul.f32 %v1877, %v1866
    %v1881 = vmul.f32 %v1877, %v1871
    %v1882 = vadd.f32 %v1689, %v1878
    %v1883 = vadd.f32 %v1690, %v1879
    %v1884 = vadd.f32 %v1691, %v1880
    %v1885 = vadd.f32 %v1692, %v1881
    %1886 = vset.pattern.permute.xlu0 2
    %1887 = vperm.xlu0 %1886, %v1434
    %v1888 = vpop.permute.xlu0 %1887
    %1890 = vset.pattern.permute.xlu0 2
    %1891 = vperm.xlu0 %1890, %v1439
    %v1892 = vpop.permute.xlu0 %1891
    %1894 = vset.pattern.permute.xlu0 2
    %1895 = vperm.xlu0 %1894, %v1444
    %v1896 = vpop.permute.xlu0 %1895
    %1898 = vset.pattern.permute.xlu0 2
    %1899 = vperm.xlu0 %1898, %v1449
    %v1900 = vpop.permute.xlu0 %1899
    %v1902 = vlaneseq
    %v1903 = vshrl.u32 %v1902, 7
    %v1904 = vsub.s32 2, %v1903
    %v1905 = vrot.slane %v1484, %v1904
    %v1906 = vadd.f32 %v1888, %v1905
    %v1907 = vadd.f32 %v1892, %v1905
    %v1908 = vadd.f32 %v1896, %v1905
    %v1909 = vadd.f32 %v1900, %v1905
    %vm1910 = vcmp.gt.f32.partialorder %v1906, 0.0
    %vm1911 = vcmp.gt.f32.partialorder %v1907, 0.0
    %vm1912 = vcmp.gt.f32.partialorder %v1908, 0.0
    %vm1913 = vcmp.gt.f32.partialorder %v1909, 0.0
    %v1914 = vmul.f32 %v1906, 0.2
    %v1915 = vmul.f32 %v1907, 0.2
    %v1916 = vmul.f32 %v1908, 0.2
    %v1917 = vmul.f32 %v1909, 0.2
    %v1918 = vsel %vm1910, %v1906, %v1914
    %v1919 = vsel %vm1911, %v1907, %v1915
    %v1920 = vsel %vm1912, %v1908, %v1916
    %v1921 = vsel %vm1913, %v1909, %v1917
    %v1922 = vsel %vm43, %v1918, -9e+15
    %v1923 = vsel %vm44, %v1919, -9e+15
    %v1924 = vsel %vm45, %v1920, -9e+15
    %v1925 = vsel %vm46, %v1921, -9e+15
    %v1926 = vsel %vm67, %v1922, -inf
    %1927 = vmax.xlane.f32.xlu0 %v1926
    %v1928 = vpop.xlane.xlu0 %1927
    %v1929 = vsel %vm67, %v1923, -inf
    %1930 = vmax.xlane.f32.xlu0 %v1929
    %v1931 = vpop.xlane.xlu0 %1930
    %v1932 = vsel %vm67, %v1924, -inf
    %1933 = vmax.xlane.f32.xlu0 %v1932
    %v1934 = vpop.xlane.xlu0 %1933
    %v1935 = vsel %vm67, %v1925, -inf
    %1936 = vmax.xlane.f32.xlu0 %v1935
    %v1937 = vpop.xlane.xlu0 %1936
    %v1938 = vsub.f32 %v1922, %v1928
    %v1939 = vsub.f32 %v1923, %v1931
    %v1940 = vsub.f32 %v1924, %v1934
    %v1941 = vsub.f32 %v1925, %v1937
    %v1942 = vmul.f32 %v1938, 1.442695
    %v1943 = vpow.pop %v1942
    %v1944 = vmul.f32 %v1939, 1.442695
    %v1945 = vpow.pop %v1944
    %v1946 = vmul.f32 %v1940, 1.442695
    %v1947 = vpow.pop %v1946
    %v1948 = vmul.f32 %v1941, 1.442695
    %v1949 = vpow.pop %v1948
    %v1950 = vsel %vm67, %v1943, 0.0
    %1951 = vadd.xlane.f32.xlu0 %v1950
    %v1952 = vpop.xlane.xlu0 %1951
    %v1953 = vsel %vm67, %v1945, 0.0
    %1954 = vadd.xlane.f32.xlu0 %v1953
    %v1955 = vpop.xlane.xlu0 %1954
    %v1956 = vsel %vm67, %v1947, 0.0
    %1957 = vadd.xlane.f32.xlu0 %v1956
    %v1958 = vpop.xlane.xlu0 %1957
    %v1959 = vsel %vm67, %v1949, 0.0
    %1960 = vadd.xlane.f32.xlu0 %v1959
    %v1961 = vpop.xlane.xlu0 %1960
    %v1962 = vrcp.pop %v1952
    %v1963 = vmul.f32 %v1943, %v1962
    %v1964 = vrcp.pop %v1955
    %v1965 = vmul.f32 %v1945, %v1964
    %v1966 = vrcp.pop %v1958
    %v1967 = vmul.f32 %v1947, %v1966
    %v1968 = vrcp.pop %v1961
    %v1969 = vmul.f32 %v1949, %v1968
    %v1971 = vsel %vm67, %v1963, 0
    %v1974 = vsel %vm67, %v1965, 0
    %v1977 = vsel %vm67, %v1967, 0
    %v1980 = vsel %vm67, %v1969, 0
    %1982 = vmatprep.subr.mxu0 0.0
    %1983 = vmatpush1.msra.mxu0 %v1336
    %1984 = vmatprep.subr.mxu0 0.0
    %1985 = vmatpush1.msra.mxu0 %v1341
    %1986 = vmatprep.subr.mxu0 0.0
    %1987 = vmatpush1.msra.mxu0 %v1346
    %1988 = vmatprep.subr.mxu0 0.0
    %1989 = vmatpush1.msra.mxu0 %v1351
    %1990 = vmatprep.subr.mxu0 0.0
    %1991 = vmatpush1.msra.mxu0 0.0
    %1992 = vmatprep.subr.mxu0 0.0
    %1993 = vmatpush1.msra.mxu0 0.0
    %1994 = vmatprep.subr.mxu0 0.0
    %1995 = vmatpush1.msra.mxu0 0.0
    %1996 = vmatprep.subr.mxu0 0.0
    %1997 = vmatpush1.msra.mxu0 0.0
    %1998 = vmatprep.subr.mxu0 0.0
    %1999 = vmatpush1.msra.mxu0 0.0
    %2000 = vmatprep.subr.mxu0 0.0
    %2001 = vmatpush1.msra.mxu0 0.0
    %2002 = vmatprep.subr.mxu0 0.0
    %2003 = vmatpush1.msra.mxu0 0.0
    %2004 = vmatprep.subr.mxu0 0.0
    %2005 = vmatpush1.msra.mxu0 0.0
    %2006 = vmatprep.subr.mxu0 0.0
    %2007 = vmatpush1.msra.mxu0 0.0
    %2008 = vmatprep.subr.mxu0 0.0
    %2009 = vmatpush1.msra.mxu0 0.0
    %2010 = vmatprep.subr.mxu0 0.0
    %2011 = vmatpush1.msra.mxu0 0.0
    %2012 = vmatprep.subr.mxu0 0.0
    %2013 = vmatpush1.msra.mxu0 0.0
    %2014 = vmatprep.subr.mxu0 0.0
    %2015 = vmatpush1.msra.mxu0 0.0
    %2016 = vmatprep.subr.mxu0 0.0
    %2017 = vmatpush1.msra.mxu0 0.0
    %2018 = vmatprep.subr.mxu0 0.0
    %2019 = vmatpush1.msra.mxu0 0.0
    %2020 = vmatprep.subr.mxu0 0.0
    %2021 = vmatpush1.msra.mxu0 0.0
    %2022 = vmatprep.subr.mxu0 0.0
    %2023 = vmatpush1.msra.mxu0 0.0
    %2024 = vmatprep.subr.mxu0 0.0
    %2025 = vmatpush1.msra.mxu0 0.0
    %2026 = vmatprep.subr.mxu0 0.0
    %2027 = vmatpush1.msra.mxu0 0.0
    %2028 = vmatprep.subr.mxu0 0.0
    %2029 = vmatpush1.msra.mxu0 0.0
    %2030 = vmatprep.subr.mxu0 0.0
    %2031 = vmatpush1.msra.mxu0 0.0
    %2032 = vmatprep.subr.mxu0 0.0
    %2033 = vmatpush1.msra.mxu0 0.0
    %2034 = vmatprep.subr.mxu0 0.0
    %2035 = vmatpush1.msra.mxu0 0.0
    %2036 = vmatprep.subr.mxu0 0.0
    %2037 = vmatpush1.msra.mxu0 0.0
    %2038 = vmatprep.subr.mxu0 0.0
    %2039 = vmatpush1.msra.mxu0 0.0
    %2040 = vmatprep.subr.mxu0 0.0
    %2041 = vmatpush1.msra.mxu0 0.0
    %2042 = vmatprep.subr.mxu0 0.0
    %2043 = vmatpush1.msra.mxu0 0.0
    %2044 = vmatprep.subr.mxu0 0.0
    %2045 = vmatpush1.msra.mxu0 0.0
    %2046 = vmatprep.mubr.f32.mxu0 0.0
    %2047 = vmatmul.mubr.f32.gmra.mrb[0].mxu0 %v1971
    %v2048 = vpop.f32.mrb[0].mxu0
    %v2049 = vadd.f32 0.0, %v2048
    %v2050 = vpop.f32.mrb[0].mxu0
    %2051 = vmatprep.mubr.f32.mxu0 0.0
    %2052 = vmatmul.mubr.f32.gmra.mrb[0].mxu0 %v1974
    %v2053 = vpop.f32.mrb[0].mxu0
    %v2054 = vadd.f32 0.0, %v2053
    %v2055 = vpop.f32.mrb[0].mxu0
    %2056 = vmatprep.mubr.f32.mxu0 0.0
    %2057 = vmatmul.mubr.f32.gmra.mrb[0].mxu0 %v1977
    %v2058 = vpop.f32.mrb[0].mxu0
    %v2059 = vadd.f32 0.0, %v2058
    %v2060 = vpop.f32.mrb[0].mxu0
    %2061 = vmatprep.mubr.f32.mxu0 0.0
    %2062 = vmatmul.mubr.f32.gmra.mrb[0].mxu0 %v1980
    %v2063 = vpop.f32.mrb[0].mxu0
    %v2064 = vadd.f32 0.0, %v2063
    %v2065 = vpop.f32.mrb[0].mxu0
    %2066 = vdwg.mxu0
    %v2067 = vlaneseq
    %v2068 = vshrl.u32 %v2067, 7
    %v2069 = vsub.s32 2, %v2068
    %v2070 = vrot.slane %v1256, %v2069
    %v2071 = vmul.f32 %v2070, %v2049
    %v2072 = vmul.f32 %v2070, %v2054
    %v2073 = vmul.f32 %v2070, %v2059
    %v2074 = vmul.f32 %v2070, %v2064
    %v2075 = vadd.f32 %v1882, %v2071
    %v2076 = vadd.f32 %v1883, %v2072
    %v2077 = vadd.f32 %v1884, %v2073
    %v2078 = vadd.f32 %v1885, %v2074
    %vm2079 = vcmp.gt.f32.partialorder %v2075, 0.0
    %vm2080 = vcmp.gt.f32.partialorder %v2076, 0.0
    %vm2081 = vcmp.gt.f32.partialorder %v2077, 0.0
    %vm2082 = vcmp.gt.f32.partialorder %v2078, 0.0
    %v2083 = vmin.f32 %v2075, 0.0
    %v2084 = vmin.f32 %v2076, 0.0
    %v2085 = vmin.f32 %v2077, 0.0
    %v2086 = vmin.f32 %v2078, 0.0
    %v2087 = vmul.f32 %v2083, 1.442695
    %v2088 = vpow.pop %v2087
    %v2089 = vmul.f32 %v2084, 1.442695
    %v2090 = vpow.pop %v2089
    %v2091 = vmul.f32 %v2085, 1.442695
    %v2092 = vpow.pop %v2091
    %v2093 = vmul.f32 %v2086, 1.442695
    %v2094 = vpow.pop %v2093
    %v2095 = vsub.f32 %v2088, 1.0
    %v2096 = vsub.f32 %v2090, 1.0
    %v2097 = vsub.f32 %v2092, 1.0
    %v2098 = vsub.f32 %v2094, 1.0
    %v2099 = vsel %vm2079, %v2075, %v2095
    %v2100 = vsel %vm2080, %v2076, %v2096
    %v2101 = vsel %vm2081, %v2077, %v2097
    %v2102 = vsel %vm2082, %v2078, %v2098
    %v2103 = vld [vmem:[#allocation2 + $0xa8] sm:$0x1]
    %v2104 = vlaneseq
    %v2105 = vshrl.u32 %v2104, 7
    %v2106 = vsub.s32 0, %v2105
    %v2107 = vrot.slane %v2103, %v2106
    %v2108 = vmul.f32 %v2099, %v2107
    %v2109 = vmul.f32 %v2100, %v2107
    %v2110 = vmul.f32 %v2101, %v2107
    %v2111 = vmul.f32 %v2102, %v2107
    %v2112 = vsel %vm1354, %v2108, 0.0
    %2113 = vadd.xlane.f32.xlu0 %v2112
    %v2114 = vpop.xlane.xlu0 %2113
    %v2115 = vsel %vm1354, %v2109, 0.0
    %2116 = vadd.xlane.f32.xlu0 %v2115
    %v2117 = vpop.xlane.xlu0 %2116
    %v2118 = vsel %vm1354, %v2110, 0.0
    %2119 = vadd.xlane.f32.xlu0 %v2118
    %v2120 = vpop.xlane.xlu0 %2119
    %v2121 = vsel %vm1354, %v2111, 0.0
    %2122 = vadd.xlane.f32.xlu0 %v2121
    %v2123 = vpop.xlane.xlu0 %2122
    %2124 = vrot.lane.b32.xlu0 %v169, 127
    %v2125 = vpop.permute.xlu0 %2124
    %s2126 = vtos %v2125
    %v2127 = vstv %s2126
    %v2129 = vadd.f32 %v2114, %v2127
    %v2130 = vadd.f32 %v2117, %v2127
    %v2131 = vadd.f32 %v2120, %v2127
    %v2132 = vadd.f32 %v2123, %v2127
    %v2133 = vld [vmem:[#allocation2 + $0xb0] sm:$0xff]
    %v2134 = vld [vmem:[#allocation2 + $0xb8] sm:$0xff]
    %v2135 = vld [vmem:[#allocation2 + $0xc0] sm:$0xff]
    %v2136 = vld [vmem:[#allocation2 + $0xc8] sm:$0xff]
    %v2137 = vld [vmem:[#allocation2 + $0xd0] sm:$0xff]
    %v2138 = vld [vmem:[#allocation2 + $0xd8] sm:$0xff]
    %v2139 = vld [vmem:[#allocation2 + $0xe0] sm:$0xff]
    %v2140 = vld [vmem:[#allocation2 + $0xe8] sm:$0xff]
    %v2141 = vld [vmem:[#allocation2 + $0xf0] sm:$0xff]
    %v2142 = vld [vmem:[#allocation2 + $0xf8] sm:$0xff]
    %v2143 = vld [vmem:[#allocation2 + $0x100] sm:$0xff]
    %v2144 = vld [vmem:[#allocation2 + $0x108] sm:$0xff]
    %v2149 = vlaneseq
    %v2150 = vand.u32 %v2149, 127
    %v2151 = vlaneseq
    %v2152 = vshrl.u32 %v2151, 7
    %v2153 = vsub.s32 %v2150, %v2152
    %v2154 = vrot.slane %v165, %v2153
    %v2155 = vadd.s32 %v2150, 4294967288
    %v2156 = vlaneseq
    %v2157 = vshrl.u32 %v2156, 7
    %v2158 = vsub.s32 %v2155, %v2157
    %v2159 = vrot.slane %v166, %v2158
    %vm2160 = vcmask 130112
    %v2161 = vsel %vm2160, %v2159, %v2154
    %v2162 = vlaneseq
    %v2163 = vshrl.u32 %v2162, 7
    %v2164 = vsub.s32 %v2150, %v2163
    %v2165 = vrot.slane %v167, %v2164
    %v2166 = vlaneseq
    %v2167 = vshrl.u32 %v2166, 7
    %v2168 = vsub.s32 %v2155, %v2167
    %v2169 = vrot.slane %v168, %v2168
    %v2170 = vsel %vm2160, %v2169, %v2165
    %vm2171 = vcmask 1041409
    %v2172 = vsel %vm2171, %v2170, %v2161
    %v2173 = vsel %vm30, %v2172, 0
    %2175 = vmatprep.subr.mxu0 0.0
    %2176 = vmatpush1.msra.mxu0 %v2143
    %2177 = vmatprep.subr.mxu0 0.0
    %2178 = vmatpush1.msra.mxu0 %v2144
    %2179 = vmatprep.subr.mxu0 0.0
    %2180 = vmatpush1.msra.mxu0 0.0
    %2181 = vmatprep.subr.mxu0 0.0
    %2182 = vmatpush1.msra.mxu0 0.0
    %2183 = vmatprep.subr.mxu0 0.0
    %2184 = vmatpush1.msra.mxu0 0.0
    %2185 = vmatprep.subr.mxu0 0.0
    %2186 = vmatpush1.msra.mxu0 0.0
    %2187 = vmatprep.subr.mxu0 0.0
    %2188 = vmatpush1.msra.mxu0 0.0
    %2189 = vmatprep.subr.mxu0 0.0
    %2190 = vmatpush1.msra.mxu0 0.0
    %2191 = vmatprep.subr.mxu0 0.0
    %2192 = vmatpush1.msra.mxu0 0.0
    %2193 = vmatprep.subr.mxu0 0.0
    %2194 = vmatpush1.msra.mxu0 0.0
    %2195 = vmatprep.subr.mxu0 0.0
    %2196 = vmatpush1.msra.mxu0 0.0
    %2197 = vmatprep.subr.mxu0 0.0
    %2198 = vmatpush1.msra.mxu0 0.0
    %2199 = vmatprep.subr.mxu0 0.0
    %2200 = vmatpush1.msra.mxu0 0.0
    %2201 = vmatprep.subr.mxu0 0.0
    %2202 = vmatpush1.msra.mxu0 0.0
    %2203 = vmatprep.subr.mxu0 0.0
    %2204 = vmatpush1.msra.mxu0 0.0
    %2205 = vmatprep.subr.mxu0 0.0
    %2206 = vmatpush1.msra.mxu0 0.0
    %2207 = vmatprep.subr.mxu0 0.0
    %2208 = vmatpush1.msra.mxu0 0.0
    %2209 = vmatprep.subr.mxu0 0.0
    %2210 = vmatpush1.msra.mxu0 0.0
    %2211 = vmatprep.subr.mxu0 0.0
    %2212 = vmatpush1.msra.mxu0 0.0
    %2213 = vmatprep.subr.mxu0 0.0
    %2214 = vmatpush1.msra.mxu0 0.0
    %2215 = vmatprep.subr.mxu0 0.0
    %2216 = vmatpush1.msra.mxu0 0.0
    %2217 = vmatprep.subr.mxu0 0.0
    %2218 = vmatpush1.msra.mxu0 0.0
    %2219 = vmatprep.subr.mxu0 0.0
    %2220 = vmatpush1.msra.mxu0 0.0
    %2221 = vmatprep.subr.mxu0 0.0
    %2222 = vmatpush1.msra.mxu0 0.0
    %2223 = vmatprep.subr.mxu0 0.0
    %2224 = vmatpush1.msra.mxu0 0.0
    %2225 = vmatprep.subr.mxu0 0.0
    %2226 = vmatpush1.msra.mxu0 0.0
    %2227 = vmatprep.subr.mxu0 0.0
    %2228 = vmatpush1.msra.mxu0 0.0
    %2229 = vmatprep.subr.mxu0 0.0
    %2230 = vmatpush1.msra.mxu0 0.0
    %2231 = vmatprep.subr.mxu0 0.0
    %2232 = vmatpush1.msra.mxu0 0.0
    %2233 = vmatprep.subr.mxu0 0.0
    %2234 = vmatpush1.msra.mxu0 0.0
    %2235 = vmatprep.subr.mxu0 0.0
    %2236 = vmatpush1.msra.mxu0 0.0
    %2237 = vmatprep.subr.mxu0 0.0
    %2238 = vmatpush1.msra.mxu0 0.0
    %2239 = vmatprep.mubr.f32.mxu0 0.0
    %2240 = vmatmul.mubr.f32.gmra.mrb[0].mxu0 %v2173
    %v2241 = vpop.f32.mrb[0].mxu0
    %v2242 = vadd.f32 0.0, %v2241
    %v2243 = vpop.f32.mrb[0].mxu0
    %2244 = vdwg.mxu0
    %v2265 = vlaneseq
    %v2266 = vshrl.u32 %v2265, 7
    %v2267 = vsub.s32 %v2150, %v2266
    %v2268 = vrot.slane %v129, %v2267
    %v2269 = vlaneseq
    %v2270 = vshrl.u32 %v2269, 7
    %v2271 = vsub.s32 %v2155, %v2270
    %v2272 = vrot.slane %v130, %v2271
    %v2273 = vsel %vm2160, %v2272, %v2268
    %v2274 = vadd.s32 %v2150, 4294967280
    %v2275 = vlaneseq
    %v2276 = vshrl.u32 %v2275, 7
    %v2277 = vsub.s32 %v2274, %v2276
    %v2278 = vrot.slane %v131, %v2277
    %vm2279 = vcmask 195712
    %v2280 = vsel %vm2279, %v2278, %v2273
    %v2281 = vadd.s32 %v2150, 4294967272
    %v2282 = vlaneseq
    %v2283 = vshrl.u32 %v2282, 7
    %v2284 = vsub.s32 %v2281, %v2283
    %v2285 = vrot.slane %v132, %v2284
    %vm2286 = vcmask 261312
    %v2287 = vsel %vm2286, %v2285, %v2280
    %v2288 = vadd.s32 %v2150, 4294967264
    %v2289 = vlaneseq
    %v2290 = vshrl.u32 %v2289, 7
    %v2291 = vsub.s32 %v2288, %v2290
    %v2292 = vrot.slane %v133, %v2291
    %vm2293 = vcmask 326912
    %v2294 = vsel %vm2293, %v2292, %v2287
    %v2295 = vadd.s32 %v2150, 4294967256
    %v2296 = vlaneseq
    %v2297 = vshrl.u32 %v2296, 7
    %v2298 = vsub.s32 %v2295, %v2297
    %v2299 = vrot.slane %v134, %v2298
    %vm2300 = vcmask 392512
    %v2301 = vsel %vm2300, %v2299, %v2294
    %v2302 = vadd.s32 %v2150, 4294967248
    %v2303 = vlaneseq
    %v2304 = vshrl.u32 %v2303, 7
    %v2305 = vsub.s32 %v2302, %v2304
    %v2306 = vrot.slane %v135, %v2305
    %vm2307 = vcmask 458112
    %v2308 = vsel %vm2307, %v2306, %v2301
    %v2309 = vadd.s32 %v2150, 4294967240
    %v2310 = vlaneseq
    %v2311 = vshrl.u32 %v2310, 7
    %v2312 = vsub.s32 %v2309, %v2311
    %v2313 = vrot.slane %v136, %v2312
    %vm2314 = vcmask 523712
    %v2315 = vsel %vm2314, %v2313, %v2308
    %v2316 = vadd.s32 %v2150, 4294967232
    %v2317 = vlaneseq
    %v2318 = vshrl.u32 %v2317, 7
    %v2319 = vsub.s32 %v2316, %v2318
    %v2320 = vrot.slane %v137, %v2319
    %vm2321 = vcmask 589312
    %v2322 = vsel %vm2321, %v2320, %v2315
    %v2323 = vadd.s32 %v2150, 4294967224
    %v2324 = vlaneseq
    %v2325 = vshrl.u32 %v2324, 7
    %v2326 = vsub.s32 %v2323, %v2325
    %v2327 = vrot.slane %v138, %v2326
    %vm2328 = vcmask 654912
    %v2329 = vsel %vm2328, %v2327, %v2322
    %v2330 = vlaneseq
    %v2331 = vshrl.u32 %v2330, 7
    %v2332 = vsub.s32 %v2150, %v2331
    %v2333 = vrot.slane %v139, %v2332
    %v2334 = vlaneseq
    %v2335 = vshrl.u32 %v2334, 7
    %v2336 = vsub.s32 %v2155, %v2335
    %v2337 = vrot.slane %v140, %v2336
    %v2338 = vsel %vm2160, %v2337, %v2333
    %v2339 = vlaneseq
    %v2340 = vshrl.u32 %v2339, 7
    %v2341 = vsub.s32 %v2274, %v2340
    %v2342 = vrot.slane %v141, %v2341
    %v2343 = vsel %vm2279, %v2342, %v2338
    %v2344 = vlaneseq
    %v2345 = vshrl.u32 %v2344, 7
    %v2346 = vsub.s32 %v2281, %v2345
    %v2347 = vrot.slane %v142, %v2346
    %v2348 = vsel %vm2286, %v2347, %v2343
    %v2349 = vlaneseq
    %v2350 = vshrl.u32 %v2349, 7
    %v2351 = vsub.s32 %v2288, %v2350
    %v2352 = vrot.slane %v143, %v2351
    %v2353 = vsel %vm2293, %v2352, %v2348
    %v2354 = vlaneseq
    %v2355 = vshrl.u32 %v2354, 7
    %v2356 = vsub.s32 %v2295, %v2355
    %v2357 = vrot.slane %v144, %v2356
    %v2358 = vsel %vm2300, %v2357, %v2353
    %v2359 = vlaneseq
    %v2360 = vshrl.u32 %v2359, 7
    %v2361 = vsub.s32 %v2302, %v2360
    %v2362 = vrot.slane %v145, %v2361
    %v2363 = vsel %vm2307, %v2362, %v2358
    %v2364 = vlaneseq
    %v2365 = vshrl.u32 %v2364, 7
    %v2366 = vsub.s32 %v2309, %v2365
    %v2367 = vrot.slane %v146, %v2366
    %v2368 = vsel %vm2314, %v2367, %v2363
    %v2369 = vlaneseq
    %v2370 = vshrl.u32 %v2369, 7
    %v2371 = vsub.s32 %v2316, %v2370
    %v2372 = vrot.slane %v147, %v2371
    %v2373 = vsel %vm2321, %v2372, %v2368
    %v2374 = vlaneseq
    %v2375 = vshrl.u32 %v2374, 7
    %v2376 = vsub.s32 %v2323, %v2375
    %v2377 = vrot.slane %v148, %v2376
    %v2378 = vsel %vm2328, %v2377, %v2373
    %v2379 = vsel %vm2171, %v2378, %v2329
    %vm2380 = vcmask 654336
    %v2381 = vsel %vm2380, %v2379, 0
    %2383 = vmatprep.subr.mxu0 0.0
    %2384 = vmatpush1.msra.mxu0 %v2133
    %2385 = vmatprep.subr.mxu0 0.0
    %2386 = vmatpush1.msra.mxu0 %v2134
    %2387 = vmatprep.subr.mxu0 0.0
    %2388 = vmatpush1.msra.mxu0 %v2135
    %2389 = vmatprep.subr.mxu0 0.0
    %2390 = vmatpush1.msra.mxu0 %v2136
    %2391 = vmatprep.subr.mxu0 0.0
    %2392 = vmatpush1.msra.mxu0 %v2137
    %2393 = vmatprep.subr.mxu0 0.0
    %2394 = vmatpush1.msra.mxu0 %v2138
    %2395 = vmatprep.subr.mxu0 0.0
    %2396 = vmatpush1.msra.mxu0 %v2139
    %2397 = vmatprep.subr.mxu0 0.0
    %2398 = vmatpush1.msra.mxu0 %v2140
    %2399 = vmatprep.subr.mxu0 0.0
    %2400 = vmatpush1.msra.mxu0 %v2141
    %2401 = vmatprep.subr.mxu0 0.0
    %2402 = vmatpush1.msra.mxu0 %v2142
    %2403 = vmatprep.subr.mxu0 0.0
    %2404 = vmatpush1.msra.mxu0 0.0
    %2405 = vmatprep.subr.mxu0 0.0
    %2406 = vmatpush1.msra.mxu0 0.0
    %2407 = vmatprep.subr.mxu0 0.0
    %2408 = vmatpush1.msra.mxu0 0.0
    %2409 = vmatprep.subr.mxu0 0.0
    %2410 = vmatpush1.msra.mxu0 0.0
    %2411 = vmatprep.subr.mxu0 0.0
    %2412 = vmatpush1.msra.mxu0 0.0
    %2413 = vmatprep.subr.mxu0 0.0
    %2414 = vmatpush1.msra.mxu0 0.0
    %2415 = vmatprep.subr.mxu0 0.0
    %2416 = vmatpush1.msra.mxu0 0.0
    %2417 = vmatprep.subr.mxu0 0.0
    %2418 = vmatpush1.msra.mxu0 0.0
    %2419 = vmatprep.subr.mxu0 0.0
    %2420 = vmatpush1.msra.mxu0 0.0
    %2421 = vmatprep.subr.mxu0 0.0
    %2422 = vmatpush1.msra.mxu0 0.0
    %2423 = vmatprep.subr.mxu0 0.0
    %2424 = vmatpush1.msra.mxu0 0.0
    %2425 = vmatprep.subr.mxu0 0.0
    %2426 = vmatpush1.msra.mxu0 0.0
    %2427 = vmatprep.subr.mxu0 0.0
    %2428 = vmatpush1.msra.mxu0 0.0
    %2429 = vmatprep.subr.mxu0 0.0
    %2430 = vmatpush1.msra.mxu0 0.0
    %2431 = vmatprep.subr.mxu0 0.0
    %2432 = vmatpush1.msra.mxu0 0.0
    %2433 = vmatprep.subr.mxu0 0.0
    %2434 = vmatpush1.msra.mxu0 0.0
    %2435 = vmatprep.subr.mxu0 0.0
    %2436 = vmatpush1.msra.mxu0 0.0
    %2437 = vmatprep.subr.mxu0 0.0
    %2438 = vmatpush1.msra.mxu0 0.0
    %2439 = vmatprep.subr.mxu0 0.0
    %2440 = vmatpush1.msra.mxu0 0.0
    %2441 = vmatprep.subr.mxu0 0.0
    %2442 = vmatpush1.msra.mxu0 0.0
    %2443 = vmatprep.subr.mxu0 0.0
    %2444 = vmatpush1.msra.mxu0 0.0
    %2445 = vmatprep.subr.mxu0 0.0
    %2446 = vmatpush1.msra.mxu0 0.0
    %2447 = vmatprep.mubr.f32.mxu0 0.0
    %2448 = vmatmul.mubr.f32.gmra.mrb[0].mxu0 %v2381
    %v2449 = vpop.f32.mrb[0].mxu0
    %v2450 = vadd.f32 %v2242, %v2449
    %v2451 = vpop.f32.mrb[0].mxu0
    %2452 = vdwg.mxu0
    %v2453 = vld [vmem:[#allocation2 + $0x110] sm:$0xff]
    %v2454 = vld [vmem:[#allocation2 + $0x118] sm:$0xff]
    %v2459 = vlaneseq
    %v2460 = vshrl.u32 %v2459, 7
    %v2461 = vsub.s32 %v2150, %v2460
    %v2462 = vrot.slane %v1242, %v2461
    %v2463 = vlaneseq
    %v2464 = vshrl.u32 %v2463, 7
    %v2465 = vsub.s32 %v2155, %v2464
    %v2466 = vrot.slane %v1243, %v2465
    %v2467 = vsel %vm2160, %v2466, %v2462
    %v2468 = vlaneseq
    %v2469 = vshrl.u32 %v2468, 7
    %v2470 = vsub.s32 %v2150, %v2469
    %v2471 = vrot.slane %v1244, %v2470
    %v2472 = vlaneseq
    %v2473 = vshrl.u32 %v2472, 7
    %v2474 = vsub.s32 %v2155, %v2473
    %v2475 = vrot.slane %v1245, %v2474
    %v2476 = vsel %vm2160, %v2475, %v2471
    %v2477 = vsel %vm2171, %v2476, %v2467
    %v2478 = vsel %vm30, %v2477, 0
    %2480 = vmatprep.subr.mxu0 0.0
    %2481 = vmatpush1.msra.mxu0 %v2453
    %2482 = vmatprep.subr.mxu0 0.0
    %2483 = vmatpush1.msra.mxu0 %v2454
    %2484 = vmatprep.subr.mxu0 0.0
    %2485 = vmatpush1.msra.mxu0 0.0
    %2486 = vmatprep.subr.mxu0 0.0
    %2487 = vmatpush1.msra.mxu0 0.0
    %2488 = vmatprep.subr.mxu0 0.0
    %2489 = vmatpush1.msra.mxu0 0.0
    %2490 = vmatprep.subr.mxu0 0.0
    %2491 = vmatpush1.msra.mxu0 0.0
    %2492 = vmatprep.subr.mxu0 0.0
    %2493 = vmatpush1.msra.mxu0 0.0
    %2494 = vmatprep.subr.mxu0 0.0
    %2495 = vmatpush1.msra.mxu0 0.0
    %2496 = vmatprep.subr.mxu0 0.0
    %2497 = vmatpush1.msra.mxu0 0.0
    %2498 = vmatprep.subr.mxu0 0.0
    %2499 = vmatpush1.msra.mxu0 0.0
    %2500 = vmatprep.subr.mxu0 0.0
    %2501 = vmatpush1.msra.mxu0 0.0
    %2502 = vmatprep.subr.mxu0 0.0
    %2503 = vmatpush1.msra.mxu0 0.0
    %2504 = vmatprep.subr.mxu0 0.0
    %2505 = vmatpush1.msra.mxu0 0.0
    %2506 = vmatprep.subr.mxu0 0.0
    %2507 = vmatpush1.msra.mxu0 0.0
    %2508 = vmatprep.subr.mxu0 0.0
    %2509 = vmatpush1.msra.mxu0 0.0
    %2510 = vmatprep.subr.mxu0 0.0
    %2511 = vmatpush1.msra.mxu0 0.0
    %2512 = vmatprep.subr.mxu0 0.0
    %2513 = vmatpush1.msra.mxu0 0.0
    %2514 = vmatprep.subr.mxu0 0.0
    %2515 = vmatpush1.msra.mxu0 0.0
    %2516 = vmatprep.subr.mxu0 0.0
    %2517 = vmatpush1.msra.mxu0 0.0
    %2518 = vmatprep.subr.mxu0 0.0
    %2519 = vmatpush1.msra.mxu0 0.0
    %2520 = vmatprep.subr.mxu0 0.0
    %2521 = vmatpush1.msra.mxu0 0.0
    %2522 = vmatprep.subr.mxu0 0.0
    %2523 = vmatpush1.msra.mxu0 0.0
    %2524 = vmatprep.subr.mxu0 0.0
    %2525 = vmatpush1.msra.mxu0 0.0
    %2526 = vmatprep.subr.mxu0 0.0
    %2527 = vmatpush1.msra.mxu0 0.0
    %2528 = vmatprep.subr.mxu0 0.0
    %2529 = vmatpush1.msra.mxu0 0.0
    %2530 = vmatprep.subr.mxu0 0.0
    %2531 = vmatpush1.msra.mxu0 0.0
    %2532 = vmatprep.subr.mxu0 0.0
    %2533 = vmatpush1.msra.mxu0 0.0
    %2534 = vmatprep.subr.mxu0 0.0
    %2535 = vmatpush1.msra.mxu0 0.0
    %2536 = vmatprep.subr.mxu0 0.0
    %2537 = vmatpush1.msra.mxu0 0.0
    %2538 = vmatprep.subr.mxu0 0.0
    %2539 = vmatpush1.msra.mxu0 0.0
    %2540 = vmatprep.subr.mxu0 0.0
    %2541 = vmatpush1.msra.mxu0 0.0
    %2542 = vmatprep.subr.mxu0 0.0
    %2543 = vmatpush1.msra.mxu0 0.0
    %2544 = vmatprep.mubr.f32.mxu0 0.0
    %2545 = vmatmul.mubr.f32.gmra.mrb[0].mxu0 %v2478
    %v2546 = vpop.f32.mrb[0].mxu0
    %v2547 = vadd.f32 0.0, %v2546
    %v2548 = vpop.f32.mrb[0].mxu0
    %2549 = vdwg.mxu0
    %v2550 = vadd.f32 %v2450, %v2547
    %v2551 = vld [vmem:[#allocation2 + $0x120] sm:$0xff]
    %v2552 = vld [vmem:[#allocation2 + $0x128] sm:$0xff]
    %v2557 = vlaneseq
    %v2558 = vshrl.u32 %v2557, 7
    %v2559 = vsub.s32 %v2150, %v2558
    %v2560 = vrot.slane %v2129, %v2559
    %v2561 = vlaneseq
    %v2562 = vshrl.u32 %v2561, 7
    %v2563 = vsub.s32 %v2155, %v2562
    %v2564 = vrot.slane %v2130, %v2563
    %v2565 = vsel %vm2160, %v2564, %v2560
    %v2566 = vlaneseq
    %v2567 = vshrl.u32 %v2566, 7
    %v2568 = vsub.s32 %v2150, %v2567
    %v2569 = vrot.slane %v2131, %v2568
    %v2570 = vlaneseq
    %v2571 = vshrl.u32 %v2570, 7
    %v2572 = vsub.s32 %v2155, %v2571
    %v2573 = vrot.slane %v2132, %v2572
    %v2574 = vsel %vm2160, %v2573, %v2569
    %v2575 = vsel %vm2171, %v2574, %v2565
    %v2576 = vsel %vm30, %v2575, 0
    %2578 = vmatprep.subr.mxu0 0.0
    %2579 = vmatpush1.msra.mxu0 %v2551
    %2580 = vmatprep.subr.mxu0 0.0
    %2581 = vmatpush1.msra.mxu0 %v2552
    %2582 = vmatprep.subr.mxu0 0.0
    %2583 = vmatpush1.msra.mxu0 0.0
    %2584 = vmatprep.subr.mxu0 0.0
    %2585 = vmatpush1.msra.mxu0 0.0
    %2586 = vmatprep.subr.mxu0 0.0
    %2587 = vmatpush1.msra.mxu0 0.0
    %2588 = vmatprep.subr.mxu0 0.0
    %2589 = vmatpush1.msra.mxu0 0.0
    %2590 = vmatprep.subr.mxu0 0.0
    %2591 = vmatpush1.msra.mxu0 0.0
    %2592 = vmatprep.subr.mxu0 0.0
    %2593 = vmatpush1.msra.mxu0 0.0
    %2594 = vmatprep.subr.mxu0 0.0
    %2595 = vmatpush1.msra.mxu0 0.0
    %2596 = vmatprep.subr.mxu0 0.0
    %2597 = vmatpush1.msra.mxu0 0.0
    %2598 = vmatprep.subr.mxu0 0.0
    %2599 = vmatpush1.msra.mxu0 0.0
    %2600 = vmatprep.subr.mxu0 0.0
    %2601 = vmatpush1.msra.mxu0 0.0
    %2602 = vmatprep.subr.mxu0 0.0
    %2603 = vmatpush1.msra.mxu0 0.0
    %2604 = vmatprep.subr.mxu0 0.0
    %2605 = vmatpush1.msra.mxu0 0.0
    %2606 = vmatprep.subr.mxu0 0.0
    %2607 = vmatpush1.msra.mxu0 0.0
    %2608 = vmatprep.subr.mxu0 0.0
    %2609 = vmatpush1.msra.mxu0 0.0
    %2610 = vmatprep.subr.mxu0 0.0
    %2611 = vmatpush1.msra.mxu0 0.0
    %2612 = vmatprep.subr.mxu0 0.0
    %2613 = vmatpush1.msra.mxu0 0.0
    %2614 = vmatprep.subr.mxu0 0.0
    %2615 = vmatpush1.msra.mxu0 0.0
    %2616 = vmatprep.subr.mxu0 0.0
    %2617 = vmatpush1.msra.mxu0 0.0
    %2618 = vmatprep.subr.mxu0 0.0
    %2619 = vmatpush1.msra.mxu0 0.0
    %2620 = vmatprep.subr.mxu0 0.0
    %2621 = vmatpush1.msra.mxu0 0.0
    %2622 = vmatprep.subr.mxu0 0.0
    %2623 = vmatpush1.msra.mxu0 0.0
    %2624 = vmatprep.subr.mxu0 0.0
    %2625 = vmatpush1.msra.mxu0 0.0
    %2626 = vmatprep.subr.mxu0 0.0
    %2627 = vmatpush1.msra.mxu0 0.0
    %2628 = vmatprep.subr.mxu0 0.0
    %2629 = vmatpush1.msra.mxu0 0.0
    %2630 = vmatprep.subr.mxu0 0.0
    %2631 = vmatpush1.msra.mxu0 0.0
    %2632 = vmatprep.subr.mxu0 0.0
    %2633 = vmatpush1.msra.mxu0 0.0
    %2634 = vmatprep.subr.mxu0 0.0
    %2635 = vmatpush1.msra.mxu0 0.0
    %2636 = vmatprep.subr.mxu0 0.0
    %2637 = vmatpush1.msra.mxu0 0.0
    %2638 = vmatprep.subr.mxu0 0.0
    %2639 = vmatpush1.msra.mxu0 0.0
    %2640 = vmatprep.subr.mxu0 0.0
    %2641 = vmatpush1.msra.mxu0 0.0
    %2642 = vmatprep.mubr.f32.mxu0 0.0
    %2643 = vmatmul.mubr.f32.gmra.mrb[0].mxu0 %v2576
    %v2644 = vpop.f32.mrb[0].mxu0
    %v2645 = vadd.f32 0.0, %v2644
    %v2646 = vpop.f32.mrb[0].mxu0
    %2647 = vdwg.mxu0
    %v2648 = vadd.f32 %v2550, %v2645
    %v2649 = vld [vmem:[#allocation2 + $0x130] sm:$0x1]
    %v2650 = vlaneseq
    %v2651 = vshrl.u32 %v2650, 7
    %v2652 = vsub.s32 0, %v2651
    %v2653 = vrot.slane %v2649, %v2652
    %v2654 = vadd.f32 %v2648, %v2653
    %vm2655 = vcmp.gt.f32.partialorder %v2654, 0.0
    %v2656 = vmin.f32 %v2654, 0.0
    %v2657 = vmul.f32 %v2656, 1.442695
    %v2658 = vpow.pop %v2657
    %v2659 = vsub.f32 %v2658, 1.0
    %v2660 = vsel %vm2655, %v2654, %v2659
    %v2661 = vld [vmem:[#allocation2 + $0x138] sm:$0xff]
    %v2662 = vld [vmem:[#allocation2 + $0x140] sm:$0xff]
    %v2663 = vld [vmem:[#allocation2 + $0x148] sm:$0xff]
    %v2664 = vld [vmem:[#allocation2 + $0x150] sm:$0xff]
    %v2665 = vld [vmem:[#allocation2 + $0x158] sm:$0xff]
    %v2666 = vld [vmem:[#allocation2 + $0x160] sm:$0xff]
    %v2667 = vld [vmem:[#allocation2 + $0x168] sm:$0xff]
    %v2668 = vld [vmem:[#allocation2 + $0x170] sm:$0xff]
    %v2669 = vld [vmem:[#allocation2 + $0x178] sm:$0x1]
    %v2670 = vlaneseq
    %v2671 = vshrl.u32 %v2670, 7
    %v2672 = vsub.s32 0, %v2671
    %v2673 = vrot.slane %v2669, %v2672
    %vm2674 = vcmask 523264
    %v2676 = vsel %vm2674, %v2660, 0
    %2678 = vmatprep.subr.mxu0 0.0
    %2679 = vmatpush1.msra.mxu0 %v2661
    %2680 = vmatprep.subr.mxu0 0.0
    %2681 = vmatpush1.msra.mxu0 %v2662
    %2682 = vmatprep.subr.mxu0 0.0
    %2683 = vmatpush1.msra.mxu0 %v2663
    %2684 = vmatprep.subr.mxu0 0.0
    %2685 = vmatpush1.msra.mxu0 %v2664
    %2686 = vmatprep.subr.mxu0 0.0
    %2687 = vmatpush1.msra.mxu0 %v2665
    %2688 = vmatprep.subr.mxu0 0.0
    %2689 = vmatpush1.msra.mxu0 %v2666
    %2690 = vmatprep.subr.mxu0 0.0
    %2691 = vmatpush1.msra.mxu0 %v2667
    %2692 = vmatprep.subr.mxu0 0.0
    %2693 = vmatpush1.msra.mxu0 %v2668
    %2694 = vmatprep.subr.mxu0 0.0
    %2695 = vmatpush1.msra.mxu0 0.0
    %2696 = vmatprep.subr.mxu0 0.0
    %2697 = vmatpush1.msra.mxu0 0.0
    %2698 = vmatprep.subr.mxu0 0.0
    %2699 = vmatpush1.msra.mxu0 0.0
    %2700 = vmatprep.subr.mxu0 0.0
    %2701 = vmatpush1.msra.mxu0 0.0
    %2702 = vmatprep.subr.mxu0 0.0
    %2703 = vmatpush1.msra.mxu0 0.0
    %2704 = vmatprep.subr.mxu0 0.0
    %2705 = vmatpush1.msra.mxu0 0.0
    %2706 = vmatprep.subr.mxu0 0.0
    %2707 = vmatpush1.msra.mxu0 0.0
    %2708 = vmatprep.subr.mxu0 0.0
    %2709 = vmatpush1.msra.mxu0 0.0
    %2710 = vmatprep.subr.mxu0 0.0
    %2711 = vmatpush1.msra.mxu0 0.0
    %2712 = vmatprep.subr.mxu0 0.0
    %2713 = vmatpush1.msra.mxu0 0.0
    %2714 = vmatprep.subr.mxu0 0.0
    %2715 = vmatpush1.msra.mxu0 0.0
    %2716 = vmatprep.subr.mxu0 0.0
    %2717 = vmatpush1.msra.mxu0 0.0
    %2718 = vmatprep.subr.mxu0 0.0
    %2719 = vmatpush1.msra.mxu0 0.0
    %2720 = vmatprep.subr.mxu0 0.0
    %2721 = vmatpush1.msra.mxu0 0.0
    %2722 = vmatprep.subr.mxu0 0.0
    %2723 = vmatpush1.msra.mxu0 0.0
    %2724 = vmatprep.subr.mxu0 0.0
    %2725 = vmatpush1.msra.mxu0 0.0
    %2726 = vmatprep.subr.mxu0 0.0
    %2727 = vmatpush1.msra.mxu0 0.0
    %2728 = vmatprep.subr.mxu0 0.0
    %2729 = vmatpush1.msra.mxu0 0.0
    %2730 = vmatprep.subr.mxu0 0.0
    %2731 = vmatpush1.msra.mxu0 0.0
    %2732 = vmatprep.subr.mxu0 0.0
    %2733 = vmatpush1.msra.mxu0 0.0
    %2734 = vmatprep.subr.mxu0 0.0
    %2735 = vmatpush1.msra.mxu0 0.0
    %2736 = vmatprep.subr.mxu0 0.0
    %2737 = vmatpush1.msra.mxu0 0.0
    %2738 = vmatprep.subr.mxu0 0.0
    %2739 = vmatpush1.msra.mxu0 0.0
    %2740 = vmatprep.subr.mxu0 0.0
    %2741 = vmatpush1.msra.mxu0 0.0
    %2742 = vmatprep.mubr.f32.mxu0 0.0
    %2743 = vmatmul.mubr.f32.gmra.mrb[0].mxu0 %v2676
    %v2744 = vpop.f32.mrb[0].mxu0
    %v2745 = vadd.f32 %v2673, %v2744
    %v2746 = vpop.f32.mrb[0].mxu0
    %2747 = vdwg.mxu0
    %vm2748 = vcmp.gt.f32.partialorder %v2745, 0.0
    %v2749 = vmin.f32 %v2745, 0.0
    %v2750 = vmul.f32 %v2749, 1.442695
    %v2751 = vpow.pop %v2750
    %v2752 = vsub.f32 %v2751, 1.0
    %v2753 = vsel %vm2748, %v2745, %v2752
    %v2754 = vld [vmem:[#allocation2 + $0x180] sm:$0xff]
    %v2755 = vld [vmem:[#allocation2 + $0x188] sm:$0xff]
    %v2756 = vld [vmem:[#allocation2 + $0x190] sm:$0xff]
    %v2757 = vld [vmem:[#allocation2 + $0x198] sm:$0xff]
    %v2758 = vld [vmem:[#allocation2 + $0x1a0] sm:$0xff]
    %v2759 = vld [vmem:[#allocation2 + $0x1a8] sm:$0xff]
    %v2760 = vld [vmem:[#allocation2 + $0x1b0] sm:$0x1]
    %v2761 = vlaneseq
    %v2762 = vshrl.u32 %v2761, 7
    %v2763 = vsub.s32 0, %v2762
    %v2764 = vrot.slane %v2760, %v2763
    %v2766 = vsel %vm1354, %v2753, 0
    %2768 = vmatprep.subr.mxu0 0.0
    %2769 = vmatpush1.msra.mxu0 %v2754
    %2770 = vmatprep.subr.mxu0 0.0
    %2771 = vmatpush1.msra.mxu0 %v2755
    %2772 = vmatprep.subr.mxu0 0.0
    %2773 = vmatpush1.msra.mxu0 %v2756
    %2774 = vmatprep.subr.mxu0 0.0
    %2775 = vmatpush1.msra.mxu0 %v2757
    %2776 = vmatprep.subr.mxu0 0.0
    %2777 = vmatpush1.msra.mxu0 %v2758
    %2778 = vmatprep.subr.mxu0 0.0
    %2779 = vmatpush1.msra.mxu0 %v2759
    %2780 = vmatprep.subr.mxu0 0.0
    %2781 = vmatpush1.msra.mxu0 0.0
    %2782 = vmatprep.subr.mxu0 0.0
    %2783 = vmatpush1.msra.mxu0 0.0
    %2784 = vmatprep.subr.mxu0 0.0
    %2785 = vmatpush1.msra.mxu0 0.0
    %2786 = vmatprep.subr.mxu0 0.0
    %2787 = vmatpush1.msra.mxu0 0.0
    %2788 = vmatprep.subr.mxu0 0.0
    %2789 = vmatpush1.msra.mxu0 0.0
    %2790 = vmatprep.subr.mxu0 0.0
    %2791 = vmatpush1.msra.mxu0 0.0
    %2792 = vmatprep.subr.mxu0 0.0
    %2793 = vmatpush1.msra.mxu0 0.0
    %2794 = vmatprep.subr.mxu0 0.0
    %2795 = vmatpush1.msra.mxu0 0.0
    %2796 = vmatprep.subr.mxu0 0.0
    %2797 = vmatpush1.msra.mxu0 0.0
    %2798 = vmatprep.subr.mxu0 0.0
    %2799 = vmatpush1.msra.mxu0 0.0
    %2800 = vmatprep.subr.mxu0 0.0
    %2801 = vmatpush1.msra.mxu0 0.0
    %2802 = vmatprep.subr.mxu0 0.0
    %2803 = vmatpush1.msra.mxu0 0.0
    %2804 = vmatprep.subr.mxu0 0.0
    %2805 = vmatpush1.msra.mxu0 0.0
    %2806 = vmatprep.subr.mxu0 0.0
    %2807 = vmatpush1.msra.mxu0 0.0
    %2808 = vmatprep.subr.mxu0 0.0
    %2809 = vmatpush1.msra.mxu0 0.0
    %2810 = vmatprep.subr.mxu0 0.0
    %2811 = vmatpush1.msra.mxu0 0.0
    %2812 = vmatprep.subr.mxu0 0.0
    %2813 = vmatpush1.msra.mxu0 0.0
    %2814 = vmatprep.subr.mxu0 0.0
    %2815 = vmatpush1.msra.mxu0 0.0
    %2816 = vmatprep.subr.mxu0 0.0
    %2817 = vmatpush1.msra.mxu0 0.0
    %2818 = vmatprep.subr.mxu0 0.0
    %2819 = vmatpush1.msra.mxu0 0.0
    %2820 = vmatprep.subr.mxu0 0.0
    %2821 = vmatpush1.msra.mxu0 0.0
    %2822 = vmatprep.subr.mxu0 0.0
    %2823 = vmatpush1.msra.mxu0 0.0
    %2824 = vmatprep.subr.mxu0 0.0
    %2825 = vmatpush1.msra.mxu0 0.0
    %2826 = vmatprep.subr.mxu0 0.0
    %2827 = vmatpush1.msra.mxu0 0.0
    %2828 = vmatprep.subr.mxu0 0.0
    %2829 = vmatpush1.msra.mxu0 0.0
    %2830 = vmatprep.subr.mxu0 0.0
    %2831 = vmatpush1.msra.mxu0 0.0
    %2832 = vmatprep.mubr.f32.mxu0 0.0
    %2833 = vmatmul.mubr.f32.gmra.mrb[0].mxu0 %v2766
    %v2834 = vpop.f32.mrb[0].mxu0
    %v2835 = vadd.f32 %v2764, %v2834
    %v2836 = vpop.f32.mrb[0].mxu0
    %2837 = vdwg.mxu0
    %vm2838 = vcmp.gt.f32.partialorder %v2835, 0.0
    %v2839 = vmin.f32 %v2835, 0.0
    %v2840 = vmul.f32 %v2839, 1.442695
    %v2841 = vpow.pop %v2840
    %v2842 = vsub.f32 %v2841, 1.0
    %v2843 = vsel %vm2838, %v2835, %v2842
    %v2844 = vld [vmem:[#allocation2 + $0x1b8] sm:$0xff]
    %v2845 = vld [vmem:[#allocation2 + $0x1c0] sm:$0xff]
    %v2846 = vld [vmem:[#allocation2 + $0x1c8] sm:$0xff]
    %v2847 = vld [vmem:[#allocation2 + $0x1d0] sm:$0xff]
    %v2848 = vld [vmem:[#allocation2 + $0x1d8] sm:$0x1]
    %v2849 = vlaneseq
    %v2850 = vshrl.u32 %v2849, 7
    %v2851 = vsub.s32 0, %v2850
    %v2852 = vrot.slane %v2848, %v2851
    %v2854 = vsel %vm67, %v2843, 0
    %2856 = vmatprep.subr.mxu0 0.0
    %2857 = vmatpush1.msra.mxu0 %v2844
    %2858 = vmatprep.subr.mxu0 0.0
    %2859 = vmatpush1.msra.mxu0 %v2845
    %2860 = vmatprep.subr.mxu0 0.0
    %2861 = vmatpush1.msra.mxu0 %v2846
    %2862 = vmatprep.subr.mxu0 0.0
    %2863 = vmatpush1.msra.mxu0 %v2847
    %2864 = vmatprep.subr.mxu0 0.0
    %2865 = vmatpush1.msra.mxu0 0.0
    %2866 = vmatprep.subr.mxu0 0.0
    %2867 = vmatpush1.msra.mxu0 0.0
    %2868 = vmatprep.subr.mxu0 0.0
    %2869 = vmatpush1.msra.mxu0 0.0
    %2870 = vmatprep.subr.mxu0 0.0
    %2871 = vmatpush1.msra.mxu0 0.0
    %2872 = vmatprep.subr.mxu0 0.0
    %2873 = vmatpush1.msra.mxu0 0.0
    %2874 = vmatprep.subr.mxu0 0.0
    %2875 = vmatpush1.msra.mxu0 0.0
    %2876 = vmatprep.subr.mxu0 0.0
    %2877 = vmatpush1.msra.mxu0 0.0
    %2878 = vmatprep.subr.mxu0 0.0
    %2879 = vmatpush1.msra.mxu0 0.0
    %2880 = vmatprep.subr.mxu0 0.0
    %2881 = vmatpush1.msra.mxu0 0.0
    %2882 = vmatprep.subr.mxu0 0.0
    %2883 = vmatpush1.msra.mxu0 0.0
    %2884 = vmatprep.subr.mxu0 0.0
    %2885 = vmatpush1.msra.mxu0 0.0
    %2886 = vmatprep.subr.mxu0 0.0
    %2887 = vmatpush1.msra.mxu0 0.0
    %2888 = vmatprep.subr.mxu0 0.0
    %2889 = vmatpush1.msra.mxu0 0.0
    %2890 = vmatprep.subr.mxu0 0.0
    %2891 = vmatpush1.msra.mxu0 0.0
    %2892 = vmatprep.subr.mxu0 0.0
    %2893 = vmatpush1.msra.mxu0 0.0
    %2894 = vmatprep.subr.mxu0 0.0
    %2895 = vmatpush1.msra.mxu0 0.0
    %2896 = vmatprep.subr.mxu0 0.0
    %2897 = vmatpush1.msra.mxu0 0.0
    %2898 = vmatprep.subr.mxu0 0.0
    %2899 = vmatpush1.msra.mxu0 0.0
    %2900 = vmatprep.subr.mxu0 0.0
    %2901 = vmatpush1.msra.mxu0 0.0
    %2902 = vmatprep.subr.mxu0 0.0
    %2903 = vmatpush1.msra.mxu0 0.0
    %2904 = vmatprep.subr.mxu0 0.0
    %2905 = vmatpush1.msra.mxu0 0.0
    %2906 = vmatprep.subr.mxu0 0.0
    %2907 = vmatpush1.msra.mxu0 0.0
    %2908 = vmatprep.subr.mxu0 0.0
    %2909 = vmatpush1.msra.mxu0 0.0
    %2910 = vmatprep.subr.mxu0 0.0
    %2911 = vmatpush1.msra.mxu0 0.0
    %2912 = vmatprep.subr.mxu0 0.0
    %2913 = vmatpush1.msra.mxu0 0.0
    %2914 = vmatprep.subr.mxu0 0.0
    %2915 = vmatpush1.msra.mxu0 0.0
    %2916 = vmatprep.subr.mxu0 0.0
    %2917 = vmatpush1.msra.mxu0 0.0
    %2918 = vmatprep.subr.mxu0 0.0
    %2919 = vmatpush1.msra.mxu0 0.0
    %2920 = vmatprep.mubr.f32.mxu0 0.0
    %2921 = vmatmul.mubr.f32.gmra.mrb[0].mxu0 %v2854
    %v2922 = vpop.f32.mrb[0].mxu0
    %v2923 = vadd.f32 %v2852, %v2922
    %v2924 = vpop.f32.mrb[0].mxu0
    %2925 = vdwg.mxu0
    %vm2926 = vcmp.gt.f32.partialorder %v2923, 0.0
    %v2927 = vmin.f32 %v2923, 0.0
    %v2928 = vmul.f32 %v2927, 1.442695
    %v2929 = vpow.pop %v2928
    %v2930 = vsub.f32 %v2929, 1.0
    %v2931 = vsel %vm2926, %v2923, %v2930
    %v2932 = vld [vmem:[#allocation2 + $0x1e0] sm:$0xff]
    %v2933 = vld [vmem:[#allocation2 + $0x1e8] sm:$0xff]
    %v2934 = vld [vmem:[#allocation2 + $0x1f0] sm:$0x1]
    %v2935 = vlaneseq
    %v2936 = vshrl.u32 %v2935, 7
    %v2937 = vsub.s32 0, %v2936
    %v2938 = vrot.slane %v2934, %v2937
    %v2940 = vsel %vm30, %v2931, 0
    %2942 = vmatprep.subr.mxu0 0.0
    %2943 = vmatpush1.msra.mxu0 %v2932
    %2944 = vmatprep.subr.mxu0 0.0
    %2945 = vmatpush1.msra.mxu0 %v2933
    %2946 = vmatprep.subr.mxu0 0.0
    %2947 = vmatpush1.msra.mxu0 0.0
    %2948 = vmatprep.subr.mxu0 0.0
    %2949 = vmatpush1.msra.mxu0 0.0
    %2950 = vmatprep.subr.mxu0 0.0
    %2951 = vmatpush1.msra.mxu0 0.0
    %2952 = vmatprep.subr.mxu0 0.0
    %2953 = vmatpush1.msra.mxu0 0.0
    %2954 = vmatprep.subr.mxu0 0.0
    %2955 = vmatpush1.msra.mxu0 0.0
    %2956 = vmatprep.subr.mxu0 0.0
    %2957 = vmatpush1.msra.mxu0 0.0
    %2958 = vmatprep.subr.mxu0 0.0
    %2959 = vmatpush1.msra.mxu0 0.0
    %2960 = vmatprep.subr.mxu0 0.0
    %2961 = vmatpush1.msra.mxu0 0.0
    %2962 = vmatprep.subr.mxu0 0.0
    %2963 = vmatpush1.msra.mxu0 0.0
    %2964 = vmatprep.subr.mxu0 0.0
    %2965 = vmatpush1.msra.mxu0 0.0
    %2966 = vmatprep.subr.mxu0 0.0
    %2967 = vmatpush1.msra.mxu0 0.0
    %2968 = vmatprep.subr.mxu0 0.0
    %2969 = vmatpush1.msra.mxu0 0.0
    %2970 = vmatprep.subr.mxu0 0.0
    %2971 = vmatpush1.msra.mxu0 0.0
    %2972 = vmatprep.subr.mxu0 0.0
    %2973 = vmatpush1.msra.mxu0 0.0
    %2974 = vmatprep.subr.mxu0 0.0
    %2975 = vmatpush1.msra.mxu0 0.0
    %2976 = vmatprep.subr.mxu0 0.0
    %2977 = vmatpush1.msra.mxu0 0.0
    %2978 = vmatprep.subr.mxu0 0.0
    %2979 = vmatpush1.msra.mxu0 0.0
    %2980 = vmatprep.subr.mxu0 0.0
    %2981 = vmatpush1.msra.mxu0 0.0
    %2982 = vmatprep.subr.mxu0 0.0
    %2983 = vmatpush1.msra.mxu0 0.0
    %2984 = vmatprep.subr.mxu0 0.0
    %2985 = vmatpush1.msra.mxu0 0.0
    %2986 = vmatprep.subr.mxu0 0.0
    %2987 = vmatpush1.msra.mxu0 0.0
    %2988 = vmatprep.subr.mxu0 0.0
    %2989 = vmatpush1.msra.mxu0 0.0
    %2990 = vmatprep.subr.mxu0 0.0
    %2991 = vmatpush1.msra.mxu0 0.0
    %2992 = vmatprep.subr.mxu0 0.0
    %2993 = vmatpush1.msra.mxu0 0.0
    %2994 = vmatprep.subr.mxu0 0.0
    %2995 = vmatpush1.msra.mxu0 0.0
    %2996 = vmatprep.subr.mxu0 0.0
    %2997 = vmatpush1.msra.mxu0 0.0
    %2998 = vmatprep.subr.mxu0 0.0
    %2999 = vmatpush1.msra.mxu0 0.0
    %3000 = vmatprep.subr.mxu0 0.0
    %3001 = vmatpush1.msra.mxu0 0.0
    %3002 = vmatprep.subr.mxu0 0.0
    %3003 = vmatpush1.msra.mxu0 0.0
    %3004 = vmatprep.subr.mxu0 0.0
    %3005 = vmatpush1.msra.mxu0 0.0
    %3006 = vmatprep.mubr.f32.mxu0 0.0
    %3007 = vmatmul.mubr.f32.gmra.mrb[0].mxu0 %v2940
    %v3008 = vpop.f32.mrb[0].mxu0
    %v3009 = vadd.f32 %v2938, %v3008
    %v3010 = vpop.f32.mrb[0].mxu0
    %3011 = vdwg.mxu0
    %v3012 = vxor.u32 %v3009, 2147483648
    %v3013 = vmul.f32 %v3012, 1.442695
    %v3014 = vpow.pop %v3013
    %v3015 = vadd.f32 %v3014, 1.0
    %v3016 = vrcp.pop %v3015
    %v3017 = vmul.f32 1.0, %v3016
    %v3018 = vmul.f32 %v3017, 6.0
    %v3019 = vsub.f32 %v3018, 3.0
    %vm3020 = vcmask 1024
    %3021 = vst.msk [vmem:[%s3] sm:$0x3] %vm3020, %v3019
    // Predicated region
    $region18: #{gat_forward.1} parent=1 // pred_check
      _
    $region19: #{gat_forward.1} parent=1 // pred_check_branch
      %3023 = sbr.rel (0) target = $region21
    $region20: #{gat_forward.1} parent=1 // pred_region
      _
    $region21: #{gat_forward.1} parent=1 // pred_fallthru
      _
    // Predicated region
    $region22: #{gat_forward.1} parent=1 // pred_check
      _
    $region23: #{gat_forward.1} parent=1 // pred_check_branch
      %3025 = sbr.rel (0) target = $region25
    $region24: #{gat_forward.1} parent=1 // pred_region
      _
    $region25: #{gat_forward.1} parent=1 // pred_fallthru
      _
    %3026 = vsyncpa [#allocation3], 1

</llo_original>
